<compile_context>
chip_gen: v6e
topology: v6e:2x2x1
jax: 0.10.0
libtpu: 0.0.40
codegen_flags: <defaults>
</compile_context>

<pallas_src>
import jax
import jax.numpy as jnp
import numpy as np
from jax.experimental import pallas as pl
from jax.experimental.pallas import tpu as pltpu


# ---------------------------------------------------------------------------
# The single fused kernel
# ---------------------------------------------------------------------------
def _fused_cnn_kernel(lhs1_ref, w1s_ref, w2s_ref, fc1m_ref, fw2m_ref,
                      cb_ref, fcb_ref, o_ref):
    f32, bf16 = jnp.float32, jnp.bfloat16
    dot = lambda a, b: jnp.dot(a, b, preferred_element_type=f32)

    n = lhs1_ref.shape[0] // 4        # rows per conv1 row-class = 7 * BP
    bp = n // 7                       # padded batch (multiple of 8)

    cb, fcb = cb_ref[...], fcb_ref[...]
    b1, b2 = cb[0:1, :], cb[1:2, :]

    # ---- conv1 + ReLU + 2x2 maxpool: ONE banded matmul + elementwise epilogue ----
    y1 = dot(lhs1_ref[...], w1s_ref[...])                                   # (4n, 512)
    # H-pool: max of the two conv rows of each pool window (row-classes 0/1 and 2/3).
    q1e = jnp.maximum(jnp.maximum(y1[0:n], y1[n:2 * n]) + b1, 0.0)          # pool1 rows 2m
    q1o = jnp.maximum(jnp.maximum(y1[2 * n:3 * n], y1[3 * n:4 * n]) + b1, 0.0)  # rows 2m+1
    # W-pool: max of the even/odd output-column lane blocks (128-aligned slices).
    p1e = jnp.maximum(q1e[:, 0:256], q1e[:, 256:512])       # (n, 256), lanes = v*16 + c_in
    p1o = jnp.maximum(q1o[:, 0:256], q1o[:, 256:512])

    # per-image +/-1 pooled-row shifts (zero at image borders): aligned block shifts.
    zblk = jnp.zeros((bp, 256), f32)
    p1o_dn = jnp.concatenate([zblk, p1o[0:n - bp]], axis=0)  # pool1 row 2m-1
    p1e_up = jnp.concatenate([p1e[bp:n], zblk], axis=0)      # pool1 row 2m+2

    # ---- conv2 + ReLU + 2x2 maxpool: TWO banded matmuls (3 taps stacked along K) ----
    w2s = w2s_ref[...]
    lhs2a = jnp.concatenate([p1o_dn, p1e, p1o], axis=1).astype(bf16)   # conv2 rows 2t
    lhs2b = jnp.concatenate([p1e, p1o, p1e_up], axis=1).astype(bf16)   # conv2 rows 2t+1
    y2a = dot(lhs2a, w2s)                                              # (n, 512)
    y2b = dot(lhs2b, w2s)
    r2 = jnp.maximum(jnp.maximum(y2a, y2b) + b2, 0.0)        # H-pool2 + bias + relu
    p2 = jnp.maximum(r2[:, 0:256], r2[:, 256:512])           # (n, 256), lanes = s*32 + c_out

    # ---- flatten + fc1 + ReLU + fc2: lane-concatenate 7 aligned row blocks, 2 dots ----
    slab = jnp.concatenate([p2[t * bp:(t + 1) * bp, :] for t in range(7)],
                           axis=1).astype(bf16)              # (bp, 1792)
    h = jnp.maximum(dot(slab, fc1m_ref[...]) + fcb[0:1, :], 0.0)       # (bp, 128)
    out = dot(h.astype(bf16), fw2m_ref[...]) + fcb[1:2, :]             # (bp, 128)
    o_ref[...] = out.astype(o_ref.dtype)


# ---------------------------------------------------------------------------
# One-time weight repacking (outside jit): banded conv matrices, permuted fc weights
# ---------------------------------------------------------------------------
def prepare_constants(params):
    (w1, b1), (w2, b2), (fw1, fb1), (fw2, fb2) = [
        (np.asarray(p), np.asarray(q)) for p, q in params]

    # conv1: K = kh*30 + padded_col (90) -> lanes (col%2)*256 + (col//2)*16 + c_out (512)
    t1 = np.zeros((3, 30, 512), np.float32)
    cb = np.zeros((2, 512), np.float32)
    for j in range(28):
        base = (j % 2) * 256 + (j // 2) * 16
        cb[0, base:base + 16] = b1
        for kh in range(3):
            for kw in range(3):
                t1[kh, j + kw, base:base + 16] = w1[:, 0, kh, kw]
    w1s = t1.reshape(90, 512)

    # conv2: K = kh*256 + v*16 + c_in (768) -> lanes (j%2)*256 + (j//2)*32 + c_out (512)
    t2 = np.zeros((3, 256, 512), np.float32)
    for j in range(14):
        base = (j % 2) * 256 + (j // 2) * 32
        cb[1, base:base + 32] = b2
        for kh in range(3):
            for kw in range(3):
                vin = j + kw - 1
                if 0 <= vin <= 13:
                    t2[kh, vin * 16:(vin + 1) * 16, base:base + 32] = w2[:, :, kh, kw].T
    w2s = t2.reshape(768, 512)

    # fc1: PyTorch CHW-flatten order -> kernel (t*256 + s*32 + c_out) slab layout;
    # rows at the 32 pad lanes of every 256-lane block stay zero.
    fc1m = np.zeros((7 * 256, 128), np.float32)
    for t in range(7):
        for s in range(7):
            for co in range(32):
                fc1m[t * 256 + s * 32 + co, :] = fw1[:, co * 49 + t * 7 + s]

    # fc2 weight padded to 128 output lanes (lane-dense store; sliced to 10 outside).
    fw2m = np.zeros((128, 128), np.float32)
    fw2m[:, 0:10] = fw2.T
    fcb = np.zeros((2, 128), np.float32)
    fcb[0, :] = fb1
    fcb[1, 0:10] = fb2

    bf16 = jnp.bfloat16
    return (jnp.asarray(w1s, bf16), jnp.asarray(w2s, bf16),
            jnp.asarray(fc1m, bf16), jnp.asarray(fw2m, bf16),
            jnp.asarray(cb), jnp.asarray(fcb))


# ---------------------------------------------------------------------------
# Forward: small XLA input prep (pad + sliding window + M-stack) + ONE pallas_call
# ---------------------------------------------------------------------------
def simple_cnn_forward(x_nchw, consts):
    w1s, w2s, fc1m, fw2m, cb, fcb = consts
    B = x_nchw.shape[0]
    BP = ((B + 7) // 8) * 8                                       # batch padded to 8

    xpad = jnp.pad(x_nchw[:, 0], ((0, 0), (1, 1), (1, 1)))        # (B, 30, 30)
    # sliding 3-row window for every conv1 output row r' (0..27)
    win = jnp.stack([xpad[:, 0:28], xpad[:, 1:29], xpad[:, 2:30]], axis=2)  # (B,28,3,30)
    win = win.reshape(B, 7, 4, 90)                                # [b, m, r'=4m+r, kh*30+col]
    lhs1 = jnp.transpose(win, (2, 1, 0, 3))                       # (4, 7, B, 90)
    lhs1 = jnp.pad(lhs1, ((0, 0), (0, 0), (0, BP - B), (0, 0)))   # pad batch to BP
    lhs1 = lhs1.reshape(4 * 7 * BP, 90).astype(jnp.bfloat16)      # M-stacked conv1 LHS

    operands = (lhs1, w1s, w2s, fc1m, fw2m, cb, fcb)
    out = pl.pallas_call(
        _fused_cnn_kernel,
        out_shape=jax.ShapeDtypeStruct((BP, 128), jnp.float32),
        in_specs=[pl.BlockSpec(memory_space=pltpu.MemorySpace.VMEM)] * len(operands),
        out_specs=pl.BlockSpec(memory_space=pltpu.MemorySpace.VMEM),
    )(*operands)
    return out[:B, :10]


# ---------------------------------------------------------------------------
# Deterministic parameter init (PyTorch param shapes)
# ---------------------------------------------------------------------------
def init_params(key):
    ks = jax.random.split(key, 8)
    w1 = jax.random.normal(ks[0], (16, 1, 3, 3), jnp.float32) * 0.10       # Conv2d(1,16,3)
    b1 = jax.random.normal(ks[1], (16,), jnp.float32) * 0.01
    w2 = jax.random.normal(ks[2], (32, 16, 3, 3), jnp.float32) * 0.05      # Conv2d(16,32,3)
    b2 = jax.random.normal(ks[3], (32,), jnp.float32) * 0.01
    fw1 = jax.random.normal(ks[4], (128, 32 * 7 * 7), jnp.float32) * 0.02  # Linear(1568,128)
    fb1 = jax.random.normal(ks[5], (128,), jnp.float32) * 0.01
    fw2 = jax.random.normal(ks[6], (10, 128), jnp.float32) * 0.05          # Linear(128,10)
    fb2 = jax.random.normal(ks[7], (10,), jnp.float32) * 0.01
    return (w1, b1), (w2, b2), (fw1, fb1), (fw2, fb2)


# ---------------------------------------------------------------------------
# Pure-XLA reference (same semantics as the PyTorch module) for validation
# ---------------------------------------------------------------------------
def reference_forward(x_nchw, params):
    (w1, b1), (w2, b2), (fw1, fb1), (fw2, fb2) = params

    def conv(x, w, b):
        y = jax.lax.conv_general_dilated(
            x, w, window_strides=(1, 1), padding=((1, 1), (1, 1)),
            dimension_numbers=("NCHW", "OIHW", "NCHW"))
        return jax.nn.relu(y + b[None, :, None, None])

    def pool(x):
        return jax.lax.reduce_window(x, -jnp.inf, jax.lax.max,
                                     (1, 1, 2, 2), (1, 1, 2, 2), "VALID")

    y = pool(conv(x_nchw, w1, b1))
    y = pool(conv(y, w2, b2))
    y = y.reshape(y.shape[0], -1)
    y = jax.nn.relu(y @ fw1.T + fb1)
    return y @ fw2.T + fb2


if __name__ == "__main__":
    key = jax.random.PRNGKey(0)
    kx, kp = jax.random.split(key)
    x = jax.random.normal(kx, (2, 1, 28, 28), jnp.float32)   # B=2, MNIST-like 28x28
    params = init_params(kp)

    consts = prepare_constants(params)   # one-time weight repacking (outside jit)

    fwd = jax.jit(simple_cnn_forward)
    out = jax.block_until_ready(fwd(x, consts))

    ref = reference_forward(x, params)
    assert out.shape == (2, 10), out.shape
    # bf16 matmul operands (f32 accumulation) are a deliberate precision tradeoff vs f32.
    if not jnp.allclose(out, ref, rtol=1e-2, atol=1e-2):
        raise AssertionError("Pallas result does not match XLA reference")

    print("KERNEL_OK")
</pallas_src>

<mosaic_0001>
module attributes {stable_mosaic.version = 11 : i64} {
  func.func @_fused_cnn_kernel(%arg0: memref<224x90xbf16, #tpu.memory_space<vmem>>, %arg1: memref<90x512xbf16, #tpu.memory_space<vmem>>, %arg2: memref<768x512xbf16, #tpu.memory_space<vmem>>, %arg3: memref<1792x128xbf16, #tpu.memory_space<vmem>>, %arg4: memref<128x128xbf16, #tpu.memory_space<vmem>>, %arg5: memref<2x512xf32, #tpu.memory_space<vmem>>, %arg6: memref<2x128xf32, #tpu.memory_space<vmem>>, %arg7: memref<8x128xf32, #tpu.memory_space<vmem>>) attributes {dimension_semantics = [], scalar_prefetch = 0 : i64, scratch_operands = 0 : i64, tpu.core_type = #tpu.core_type<tc>} {
    %c0 = arith.constant 0 : index
    %c0_0 = arith.constant 0 : index
    %0 = vector.load %arg5[%c0, %c0_0] : memref<2x512xf32, #tpu.memory_space<vmem>>, vector<2x512xf32>
    %c0_1 = arith.constant 0 : index
    %c0_2 = arith.constant 0 : index
    %1 = vector.load %arg6[%c0_1, %c0_2] : memref<2x128xf32, #tpu.memory_space<vmem>>, vector<2x128xf32>
    %2 = vector.extract_strided_slice %0 {offsets = [0, 0], sizes = [1, 512], strides = [1, 1]} : vector<2x512xf32> to vector<1x512xf32>
    %3 = vector.extract_strided_slice %0 {offsets = [1, 0], sizes = [1, 512], strides = [1, 1]} : vector<2x512xf32> to vector<1x512xf32>
    %c0_3 = arith.constant 0 : index
    %c0_4 = arith.constant 0 : index
    %4 = vector.load %arg0[%c0_3, %c0_4] : memref<224x90xbf16, #tpu.memory_space<vmem>>, vector<224x90xbf16>
    %c0_5 = arith.constant 0 : index
    %c0_6 = arith.constant 0 : index
    %5 = vector.load %arg1[%c0_5, %c0_6] : memref<90x512xbf16, #tpu.memory_space<vmem>>, vector<90x512xbf16>
    %cst = arith.constant dense<0.000000e+00> : vector<224x512xf32>
    %6 = tpu.matmul %4, %5, %cst {dimension_numbers = #tpu.dot_dimension_numbers<[1], [0], [0], [1], [0, 0, 1, 1], [], []>} : vector<224x90xbf16>, vector<90x512xbf16>, vector<224x512xf32> -> vector<224x512xf32>
    %7 = vector.extract_strided_slice %6 {offsets = [0, 0], sizes = [56, 512], strides = [1, 1]} : vector<224x512xf32> to vector<56x512xf32>
    %8 = vector.extract_strided_slice %6 {offsets = [56, 0], sizes = [56, 512], strides = [1, 1]} : vector<224x512xf32> to vector<56x512xf32>
    %9 = arith.maximumf %7, %8 : vector<56x512xf32>
    %10 = vector.broadcast %2 : vector<1x512xf32> to vector<56x512xf32>
    %11 = arith.addf %9, %10 : vector<56x512xf32>
    %cst_7 = arith.constant 0.000000e+00 : f32
    %12 = vector.broadcast %cst_7 : f32 to vector<56x512xf32>
    %13 = arith.maximumf %11, %12 : vector<56x512xf32>
    %14 = vector.extract_strided_slice %6 {offsets = [112, 0], sizes = [56, 512], strides = [1, 1]} : vector<224x512xf32> to vector<56x512xf32>
    %15 = vector.extract_strided_slice %6 {offsets = [168, 0], sizes = [56, 512], strides = [1, 1]} : vector<224x512xf32> to vector<56x512xf32>
    %16 = arith.maximumf %14, %15 : vector<56x512xf32>
    %17 = vector.broadcast %2 : vector<1x512xf32> to vector<56x512xf32>
    %18 = arith.addf %16, %17 : vector<56x512xf32>
    %cst_8 = arith.constant 0.000000e+00 : f32
    %19 = vector.broadcast %cst_8 : f32 to vector<56x512xf32>
    %20 = arith.maximumf %18, %19 : vector<56x512xf32>
    %21 = vector.extract_strided_slice %13 {offsets = [0, 0], sizes = [56, 256], strides = [1, 1]} : vector<56x512xf32> to vector<56x256xf32>
    %22 = vector.extract_strided_slice %13 {offsets = [0, 256], sizes = [56, 256], strides = [1, 1]} : vector<56x512xf32> to vector<56x256xf32>
    %23 = arith.maximumf %21, %22 : vector<56x256xf32>
    %24 = vector.extract_strided_slice %20 {offsets = [0, 0], sizes = [56, 256], strides = [1, 1]} : vector<56x512xf32> to vector<56x256xf32>
    %25 = vector.extract_strided_slice %20 {offsets = [0, 256], sizes = [56, 256], strides = [1, 1]} : vector<56x512xf32> to vector<56x256xf32>
    %26 = arith.maximumf %24, %25 : vector<56x256xf32>
    %cst_9 = arith.constant 0.000000e+00 : f32
    %27 = vector.broadcast %cst_9 : f32 to vector<8x256xf32>
    %28 = vector.extract_strided_slice %26 {offsets = [0, 0], sizes = [48, 256], strides = [1, 1]} : vector<56x256xf32> to vector<48x256xf32>
    %29 = tpu.concatenate %27, %28 in 0 : vector<8x256xf32>, vector<48x256xf32> -> vector<56x256xf32>
    %30 = vector.extract_strided_slice %23 {offsets = [8, 0], sizes = [48, 256], strides = [1, 1]} : vector<56x256xf32> to vector<48x256xf32>
    %31 = tpu.concatenate %30, %27 in 0 : vector<48x256xf32>, vector<8x256xf32> -> vector<56x256xf32>
    %c0_10 = arith.constant 0 : index
    %c0_11 = arith.constant 0 : index
    %32 = vector.load %arg2[%c0_10, %c0_11] : memref<768x512xbf16, #tpu.memory_space<vmem>>, vector<768x512xbf16>
    %33 = tpu.concatenate %29, %23, %26 in 1 : vector<56x256xf32>, vector<56x256xf32>, vector<56x256xf32> -> vector<56x768xf32>
    %34 = arith.truncf %33 : vector<56x768xf32> to vector<56x768xbf16>
    %35 = tpu.concatenate %23, %26, %31 in 1 : vector<56x256xf32>, vector<56x256xf32>, vector<56x256xf32> -> vector<56x768xf32>
    %36 = arith.truncf %35 : vector<56x768xf32> to vector<56x768xbf16>
    %cst_12 = arith.constant dense<0.000000e+00> : vector<56x512xf32>
    %37 = tpu.matmul %34, %32, %cst_12 {dimension_numbers = #tpu.dot_dimension_numbers<[1], [0], [0], [1], [0, 0, 1, 1], [], []>} : vector<56x768xbf16>, vector<768x512xbf16>, vector<56x512xf32> -> vector<56x512xf32>
    %cst_13 = arith.constant dense<0.000000e+00> : vector<56x512xf32>
    %38 = tpu.matmul %36, %32, %cst_13 {dimension_numbers = #tpu.dot_dimension_numbers<[1], [0], [0], [1], [0, 0, 1, 1], [], []>} : vector<56x768xbf16>, vector<768x512xbf16>, vector<56x512xf32> -> vector<56x512xf32>
    %39 = arith.maximumf %37, %38 : vector<56x512xf32>
    %40 = vector.broadcast %3 : vector<1x512xf32> to vector<56x512xf32>
    %41 = arith.addf %39, %40 : vector<56x512xf32>
    %cst_14 = arith.constant 0.000000e+00 : f32
    %42 = vector.broadcast %cst_14 : f32 to vector<56x512xf32>
    %43 = arith.maximumf %41, %42 : vector<56x512xf32>
    %44 = vector.extract_strided_slice %43 {offsets = [0, 0], sizes = [56, 256], strides = [1, 1]} : vector<56x512xf32> to vector<56x256xf32>
    %45 = vector.extract_strided_slice %43 {offsets = [0, 256], sizes = [56, 256], strides = [1, 1]} : vector<56x512xf32> to vector<56x256xf32>
    %46 = arith.maximumf %44, %45 : vector<56x256xf32>
    %47 = vector.extract_strided_slice %46 {offsets = [0, 0], sizes = [8, 256], strides = [1, 1]} : vector<56x256xf32> to vector<8x256xf32>
    %48 = vector.extract_strided_slice %46 {offsets = [8, 0], sizes = [8, 256], strides = [1, 1]} : vector<56x256xf32> to vector<8x256xf32>
    %49 = vector.extract_strided_slice %46 {offsets = [16, 0], sizes = [8, 256], strides = [1, 1]} : vector<56x256xf32> to vector<8x256xf32>
    %50 = vector.extract_strided_slice %46 {offsets = [24, 0], sizes = [8, 256], strides = [1, 1]} : vector<56x256xf32> to vector<8x256xf32>
    %51 = vector.extract_strided_slice %46 {offsets = [32, 0], sizes = [8, 256], strides = [1, 1]} : vector<56x256xf32> to vector<8x256xf32>
    %52 = vector.extract_strided_slice %46 {offsets = [40, 0], sizes = [8, 256], strides = [1, 1]} : vector<56x256xf32> to vector<8x256xf32>
    %53 = vector.extract_strided_slice %46 {offsets = [48, 0], sizes = [8, 256], strides = [1, 1]} : vector<56x256xf32> to vector<8x256xf32>
    %54 = tpu.concatenate %47, %48, %49, %50, %51, %52, %53 in 1 : vector<8x256xf32>, vector<8x256xf32>, vector<8x256xf32>, vector<8x256xf32>, vector<8x256xf32>, vector<8x256xf32>, vector<8x256xf32> -> vector<8x1792xf32>
    %55 = arith.truncf %54 : vector<8x1792xf32> to vector<8x1792xbf16>
    %c0_15 = arith.constant 0 : index
    %c0_16 = arith.constant 0 : index
    %56 = vector.load %arg3[%c0_15, %c0_16] : memref<1792x128xbf16, #tpu.memory_space<vmem>>, vector<1792x128xbf16>
    %cst_17 = arith.constant dense<0.000000e+00> : vector<8x128xf32>
    %57 = tpu.matmul %55, %56, %cst_17 {dimension_numbers = #tpu.dot_dimension_numbers<[1], [0], [0], [1], [0, 0, 1, 1], [], []>} : vector<8x1792xbf16>, vector<1792x128xbf16>, vector<8x128xf32> -> vector<8x128xf32>
    %58 = vector.extract_strided_slice %1 {offsets = [0, 0], sizes = [1, 128], strides = [1, 1]} : vector<2x128xf32> to vector<1x128xf32>
    %59 = vector.broadcast %58 : vector<1x128xf32> to vector<8x128xf32>
    %60 = arith.addf %57, %59 : vector<8x128xf32>
    %cst_18 = arith.constant 0.000000e+00 : f32
    %61 = vector.broadcast %cst_18 : f32 to vector<8x128xf32>
    %62 = arith.maximumf %60, %61 : vector<8x128xf32>
    %63 = arith.truncf %62 : vector<8x128xf32> to vector<8x128xbf16>
    %c0_19 = arith.constant 0 : index
    %c0_20 = arith.constant 0 : index
    %64 = vector.load %arg4[%c0_19, %c0_20] : memref<128x128xbf16, #tpu.memory_space<vmem>>, vector<128x128xbf16>
    %cst_21 = arith.constant dense<0.000000e+00> : vector<8x128xf32>
    %65 = tpu.matmul %63, %64, %cst_21 {dimension_numbers = #tpu.dot_dimension_numbers<[1], [0], [0], [1], [0, 0, 1, 1], [], []>} : vector<8x128xbf16>, vector<128x128xbf16>, vector<8x128xf32> -> vector<8x128xf32>
    %66 = vector.extract_strided_slice %1 {offsets = [1, 0], sizes = [1, 128], strides = [1, 1]} : vector<2x128xf32> to vector<1x128xf32>
    %67 = vector.broadcast %66 : vector<1x128xf32> to vector<8x128xf32>
    %68 = arith.addf %65, %67 : vector<8x128xf32>
    %c0_22 = arith.constant 0 : index
    %c0_23 = arith.constant 0 : index
    %69 = vector.load %arg7[%c0_22, %c0_23] : memref<8x128xf32, #tpu.memory_space<vmem>>, vector<8x128xf32>
    tpu.vector_store %arg7[%c0_22, %c0_23], %68 {strides = array<i32>} : memref<8x128xf32, #tpu.memory_space<vmem>>, vector<8x128xf32>,
    return
  }
}

</mosaic_0001>

<llo_original>
// kernel: simple_cnn_forward.1
$region0: #{simple_cnn_forward.1}
  #allocation0 [shape = 'u32[]', space=smem, size = 0x4, offset = 0x4, fixed_abs, tag = 'smem constant byte address 0x4 - core index']
  #allocation1 [shape = 'u32[144,128]{1,0:T(1,128)}', space=vmem, size = 0x12000, scoped, tag = 'internal scratch']
  %s0 = inlined_call_operand.vmem [shape: bf16[224,90], index: 0, kind: input, shape index: {}]
  %s1 = inlined_call_operand.hbm [shape: bf16[90,512], index: 1, kind: input, shape index: {}]
  %s2 = inlined_call_operand.hbm [shape: bf16[768,512], index: 2, kind: input, shape index: {}]
  %s3 = inlined_call_operand.vmem [shape: bf16[1792,128], index: 3, kind: input, shape index: {}]
  %s4 = inlined_call_operand.vmem [shape: bf16[128,128], index: 4, kind: input, shape index: {}]
  %s5 = inlined_call_operand.vmem [shape: f32[2,512], index: 5, kind: input, shape index: {}]
  %s6 = inlined_call_operand.vmem [shape: f32[2,128], index: 6, kind: input, shape index: {}]
  %s7 = inlined_call_operand.vmem [shape: f32[8,128], index: 7, kind: output, shape index: {}]
  %s8 = sld [smem:[#allocation0]]
  $region46: #{simple_cnn_forward.1} parent=0
    _
  %s10 = ssub.s32 1, %s8
  %s11 = scalar_select 0, %s10, %s8
  $region1: #{simple_cnn_forward.1} parent=0
    #allocation2 [shape = 'u8[98304]{0}', space=vmem, size = 0x18000, scoped, tag = 'input window, operand 1, single buffered']
    #allocation3 [shape = 's32[1]{0}', space=sflag, size = 0x4, scoped, tag = 'scoped memory for simple_cnn_forward.1']
    #allocation4 [shape = 'u8[786432]{0}', space=vmem, size = 0xc0000, scoped, tag = 'input window, operand 2, single buffered']
    #allocation5 [shape = 's32[1]{0}', space=sflag, size = 0x4, scoped, tag = 'scoped memory for simple_cnn_forward.1']
    %12 = vsyncpa [#allocation3], 0
    %13 = vsyncpa [#allocation5], 0
    // Predicated region
    $region2: #{simple_cnn_forward.1} parent=1 // pred_check
      _
    $region3: #{simple_cnn_forward.1} parent=1 // pred_check_branch
      %15 = sbr.rel (0) target = $region5
    $region4: #{simple_cnn_forward.1} parent=1 // pred_region
      _
    $region5: #{simple_cnn_forward.1} parent=1 // pred_fallthru
      _
    // Predicated region
    $region6: #{simple_cnn_forward.1} parent=1 // pred_check
      _
    $region7: #{simple_cnn_forward.1} parent=1 // pred_check_branch
      %17 = sbr.rel (0) target = $region9
    $region8: #{simple_cnn_forward.1} parent=1 // pred_region
      %s19 = ssub.s32 3072, 3072
      %20 = vsyncadd [#allocation3], %s19
      %s21 = sshll.u32 [#allocation2], 4
      %s22 = int_to_ptr.vmem [resolvable:$true] %s21
      %27 = dma.hbm_to_vmem [thread:$0]  %s1, 3072, %s22, [#allocation3], 256, 256, 16
    $region9: #{simple_cnn_forward.1} parent=1 // pred_fallthru
      _
    // Predicated region
    $region10: #{simple_cnn_forward.1} parent=1 // pred_check
      _
    $region11: #{simple_cnn_forward.1} parent=1 // pred_check_branch
      %29 = sbr.rel (0) target = $region13
    $region12: #{simple_cnn_forward.1} parent=1 // pred_region
      %s31 = ssub.s32 24576, 24576
      %32 = vsyncadd [#allocation5], %s31
      %s33 = sshll.u32 [#allocation4], 4
      %s34 = int_to_ptr.vmem [resolvable:$true] %s33
      %39 = dma.hbm_to_vmem [thread:$0]  %s2, 24576, %s34, [#allocation5], 256, 256, 16
    $region13: #{simple_cnn_forward.1} parent=1 // pred_fallthru
      _
    // Predicated region
    $region14: #{simple_cnn_forward.1} parent=1 // pred_check
      _
    $region15: #{simple_cnn_forward.1} parent=1 // pred_check_branch
      %41 = sbr.rel (0) target = $region17
    $region16: #{simple_cnn_forward.1} parent=1 // pred_region
      _
    $region17: #{simple_cnn_forward.1} parent=1 // pred_fallthru
      _
    // Predicated region
    $region18: #{simple_cnn_forward.1} parent=1 // pred_check
      _
    $region19: #{simple_cnn_forward.1} parent=1 // pred_check_branch
      %43 = sbr.rel (0) target = $region21
    $region20: #{simple_cnn_forward.1} parent=1 // pred_region
      _
    $region21: #{simple_cnn_forward.1} parent=1 // pred_fallthru
      _
    // Predicated region
    $region22: #{simple_cnn_forward.1} parent=1 // pred_check
      _
    $region23: #{simple_cnn_forward.1} parent=1 // pred_check_branch
      %45 = sbr.rel (0) target = $region25
    $region24: #{simple_cnn_forward.1} parent=1 // pred_region
      _
    $region25: #{simple_cnn_forward.1} parent=1 // pred_fallthru
      _
    // Predicated region
    $region26: #{simple_cnn_forward.1} parent=1 // pred_check
      _
    $region27: #{simple_cnn_forward.1} parent=1 // pred_check_branch
      %47 = sbr.rel (0) target = $region29
    $region28: #{simple_cnn_forward.1} parent=1 // pred_region
      _
    $region29: #{simple_cnn_forward.1} parent=1 // pred_fallthru
      _
    // Predicated region
    $region30: #{simple_cnn_forward.1} parent=1 // pred_check
      _
    $region31: #{simple_cnn_forward.1} parent=1 // pred_check_branch
      %49 = sbr.rel (0) target = $region33
    $region32: #{simple_cnn_forward.1} parent=1 // pred_region
      %50 = dma.done [#allocation3], 3072
    $region33: #{simple_cnn_forward.1} parent=1 // pred_fallthru
      _
    // Predicated region
    $region34: #{simple_cnn_forward.1} parent=1 // pred_check
      _
    $region35: #{simple_cnn_forward.1} parent=1 // pred_check_branch
      %52 = sbr.rel (0) target = $region37
    $region36: #{simple_cnn_forward.1} parent=1 // pred_region
      %53 = dma.done [#allocation5], 24576
    $region37: #{simple_cnn_forward.1} parent=1 // pred_fallthru
      _
    %v55 = vld [vmem:[%s5] sm:$0xff]
    %v56 = vld [vmem:[%s6] sm:$0x3]
    %v57 = vld [vmem:[%s0] sm:$0xf]
    %v58 = vld [vmem:[%s0 + $0x4] sm:$0xf]
    %v59 = vld [vmem:[%s0 + $0x8] sm:$0xf]
    %v60 = vld [vmem:[%s0 + $0xc] sm:$0xf]
    %v61 = vld [vmem:[%s0 + $0x10] sm:$0xf]
    %v62 = vld [vmem:[%s0 + $0x14] sm:$0xf]
    %v63 = vld [vmem:[%s0 + $0x18] sm:$0xf]
    %v64 = vld [vmem:[%s0 + $0x1c] sm:$0xf]
    %v65 = vld [vmem:[%s0 + $0x20] sm:$0xf]
    %v66 = vld [vmem:[%s0 + $0x24] sm:$0xf]
    %v67 = vld [vmem:[%s0 + $0x28] sm:$0xf]
    %v68 = vld [vmem:[%s0 + $0x2c] sm:$0xf]
    %v69 = vld [vmem:[%s0 + $0x30] sm:$0xf]
    %v70 = vld [vmem:[%s0 + $0x34] sm:$0xf]
    %v71 = vld [vmem:[%s0 + $0x38] sm:$0xf]
    %v72 = vld [vmem:[%s0 + $0x3c] sm:$0xf]
    %v73 = vld [vmem:[%s0 + $0x40] sm:$0xf]
    %v74 = vld [vmem:[%s0 + $0x44] sm:$0xf]
    %v75 = vld [vmem:[%s0 + $0x48] sm:$0xf]
    %v76 = vld [vmem:[%s0 + $0x4c] sm:$0xf]
    %v77 = vld [vmem:[%s0 + $0x50] sm:$0xf]
    %v78 = vld [vmem:[%s0 + $0x54] sm:$0xf]
    %v79 = vld [vmem:[%s0 + $0x58] sm:$0xf]
    %v80 = vld [vmem:[%s0 + $0x5c] sm:$0xf]
    %v81 = vld [vmem:[%s0 + $0x60] sm:$0xf]
    %v82 = vld [vmem:[%s0 + $0x64] sm:$0xf]
    %v83 = vld [vmem:[%s0 + $0x68] sm:$0xf]
    %v84 = vld [vmem:[%s0 + $0x6c] sm:$0xf]
    %v85 = vld [vmem:[#allocation2] sm:$0xff]
    %v86 = vld [vmem:[#allocation2 + $0x8] sm:$0xff]
    %v87 = vld [vmem:[#allocation2 + $0x10] sm:$0xff]
    %v88 = vld [vmem:[#allocation2 + $0x18] sm:$0xff]
    %v89 = vld [vmem:[#allocation2 + $0x20] sm:$0xff]
    %v90 = vld [vmem:[#allocation2 + $0x28] sm:$0xff]
    %v91 = vld [vmem:[#allocation2 + $0x30] sm:$0xff]
    %v92 = vld [vmem:[#allocation2 + $0x38] sm:$0xff]
    %v93 = vld [vmem:[#allocation2 + $0x40] sm:$0xff]
    %v94 = vld [vmem:[#allocation2 + $0x48] sm:$0xff]
    %v95 = vld [vmem:[#allocation2 + $0x50] sm:$0xff]
    %v96 = vld [vmem:[#allocation2 + $0x58] sm:$0xff]
    %v97 = vld [vmem:[#allocation2 + $0x60] sm:$0xff]
    %v98 = vld [vmem:[#allocation2 + $0x68] sm:$0xff]
    %v99 = vld [vmem:[#allocation2 + $0x70] sm:$0xff]
    %v100 = vld [vmem:[#allocation2 + $0x78] sm:$0xff]
    %v101 = vld [vmem:[#allocation2 + $0x80] sm:$0xff]
    %v102 = vld [vmem:[#allocation2 + $0x88] sm:$0xff]
    %v103 = vld [vmem:[#allocation2 + $0x90] sm:$0xff]
    %v104 = vld [vmem:[#allocation2 + $0x98] sm:$0xff]
    %v105 = vld [vmem:[#allocation2 + $0xa0] sm:$0xff]
    %v106 = vld [vmem:[#allocation2 + $0xa8] sm:$0xff]
    %v107 = vld [vmem:[#allocation2 + $0xb0] sm:$0x11]
    %v108 = vld [vmem:[#allocation2 + $0xb8] sm:$0x11]
    %v137 = vunpack.c.l.b16 %v57
    %v138 = vunpack.c.l.b16 %v58
    %v139 = vunpack.c.l.b16 %v59
    %v140 = vunpack.c.l.b16 %v60
    %v141 = vunpack.c.l.b16 %v61
    %v142 = vunpack.c.l.b16 %v62
    %v143 = vunpack.c.l.b16 %v63
    %v144 = vunpack.c.l.b16 %v64
    %v145 = vunpack.c.l.b16 %v65
    %v146 = vunpack.c.l.b16 %v66
    %v147 = vunpack.c.l.b16 %v67
    %v148 = vunpack.c.l.b16 %v68
    %v149 = vunpack.c.l.b16 %v69
    %v150 = vunpack.c.l.b16 %v70
    %v151 = vunpack.c.l.b16 %v71
    %v152 = vunpack.c.l.b16 %v72
    %v153 = vunpack.c.l.b16 %v73
    %v154 = vunpack.c.l.b16 %v74
    %v155 = vunpack.c.l.b16 %v75
    %v156 = vunpack.c.l.b16 %v76
    %v157 = vunpack.c.l.b16 %v77
    %v158 = vunpack.c.l.b16 %v78
    %v159 = vunpack.c.l.b16 %v79
    %v160 = vunpack.c.l.b16 %v80
    %v161 = vunpack.c.l.b16 %v81
    %v162 = vunpack.c.l.b16 %v82
    %v163 = vunpack.c.l.b16 %v83
    %v164 = vunpack.c.l.b16 %v84
    %v165 = vpack.c.b16 %v138, %v137
    %v166 = vpack.c.b16 %v140, %v139
    %v167 = vpack.c.b16 %v142, %v141
    %v168 = vpack.c.b16 %v144, %v143
    %v169 = vpack.c.b16 %v146, %v145
    %v170 = vpack.c.b16 %v148, %v147
    %v171 = vpack.c.b16 %v150, %v149
    %v172 = vpack.c.b16 %v152, %v151
    %v173 = vpack.c.b16 %v154, %v153
    %v174 = vpack.c.b16 %v156, %v155
    %v175 = vpack.c.b16 %v158, %v157
    %v176 = vpack.c.b16 %v160, %v159
    %v177 = vpack.c.b16 %v162, %v161
    %v178 = vpack.c.b16 %v164, %v163
    %v203 = vunpack.c.l.b16 %v85
    %v204 = vunpack.c.h.b16 %v85
    %v205 = vunpack.c.l.b16 %v86
    %v206 = vunpack.c.h.b16 %v86
    %v207 = vunpack.c.l.b16 %v87
    %v208 = vunpack.c.h.b16 %v87
    %v209 = vunpack.c.l.b16 %v88
    %v210 = vunpack.c.h.b16 %v88
    %v211 = vunpack.c.l.b16 %v89
    %v212 = vunpack.c.h.b16 %v89
    %v213 = vunpack.c.l.b16 %v90
    %v214 = vunpack.c.h.b16 %v90
    %v215 = vunpack.c.l.b16 %v91
    %v216 = vunpack.c.h.b16 %v91
    %v217 = vunpack.c.l.b16 %v92
    %v218 = vunpack.c.h.b16 %v92
    %v219 = vunpack.c.l.b16 %v93
    %v220 = vunpack.c.h.b16 %v93
    %v221 = vunpack.c.l.b16 %v94
    %v222 = vunpack.c.h.b16 %v94
    %v223 = vunpack.c.l.b16 %v95
    %v224 = vunpack.c.h.b16 %v95
    %v225 = vunpack.c.l.b16 %v96
    %v226 = vunpack.c.h.b16 %v96
    %v227 = vunpack.c.l.b16 %v97
    %v228 = vunpack.c.h.b16 %v97
    %v229 = vunpack.c.l.b16 %v98
    %v230 = vunpack.c.h.b16 %v98
    %v231 = vunpack.c.l.b16 %v99
    %v232 = vunpack.c.h.b16 %v99
    %v233 = vunpack.c.l.b16 %v100
    %v234 = vunpack.c.h.b16 %v100
    %v235 = vunpack.c.l.b16 %v101
    %v236 = vunpack.c.h.b16 %v101
    %v237 = vunpack.c.l.b16 %v102
    %v238 = vunpack.c.h.b16 %v102
    %v239 = vunpack.c.l.b16 %v103
    %v240 = vunpack.c.h.b16 %v103
    %v241 = vunpack.c.l.b16 %v104
    %v242 = vunpack.c.h.b16 %v104
    %v243 = vunpack.c.l.b16 %v105
    %v244 = vunpack.c.h.b16 %v105
    %v245 = vunpack.c.l.b16 %v106
    %v246 = vunpack.c.h.b16 %v106
    %v247 = vunpack.c.l.b16 %v107
    %v248 = vunpack.c.h.b16 %v107
    %v249 = vunpack.c.l.b16 %v108
    %v250 = vunpack.c.h.b16 %v108
    %v251 = vpack.c.b16 %v207, %v203
    %v252 = vpack.c.b16 %v208, %v204
    %v253 = vpack.c.b16 %v209, %v205
    %v254 = vpack.c.b16 %v210, %v206
    %v255 = vpack.c.b16 %v215, %v211
    %v256 = vpack.c.b16 %v216, %v212
    %v257 = vpack.c.b16 %v217, %v213
    %v258 = vpack.c.b16 %v218, %v214
    %v259 = vpack.c.b16 %v223, %v219
    %v260 = vpack.c.b16 %v224, %v220
    %v261 = vpack.c.b16 %v225, %v221
    %v262 = vpack.c.b16 %v226, %v222
    %v263 = vpack.c.b16 %v231, %v227
    %v264 = vpack.c.b16 %v232, %v228
    %v265 = vpack.c.b16 %v233, %v229
    %v266 = vpack.c.b16 %v234, %v230
    %v267 = vpack.c.b16 %v239, %v235
    %v268 = vpack.c.b16 %v240, %v236
    %v269 = vpack.c.b16 %v241, %v237
    %v270 = vpack.c.b16 %v242, %v238
    %v271 = vpack.c.b16 %v247, %v243
    %v272 = vpack.c.b16 %v248, %v244
    %v273 = vpack.c.b16 %v249, %v245
    %v274 = vpack.c.b16 %v250, %v246
    %vm295 = vcmask 736256
    %v297 = vsel %vm295, %v165, 0
    %v300 = vsel %vm295, %v166, 0
    %v303 = vsel %vm295, %v167, 0
    %v306 = vsel %vm295, %v168, 0
    %v309 = vsel %vm295, %v169, 0
    %v312 = vsel %vm295, %v170, 0
    %v315 = vsel %vm295, %v171, 0
    %v318 = vsel %vm295, %v172, 0
    %v321 = vsel %vm295, %v173, 0
    %v324 = vsel %vm295, %v174, 0
    %v327 = vsel %vm295, %v175, 0
    %v330 = vsel %vm295, %v176, 0
    %v333 = vsel %vm295, %v177, 0
    %v336 = vsel %vm295, %v178, 0
    %vm338 = vcmask 1044480
    %v340 = vsel %vm338, %v271, 0
    %v343 = vsel %vm338, %v272, 0
    %v346 = vsel %vm338, %v273, 0
    %v349 = vsel %vm338, %v274, 0
    %351 = vmatprep.subr.bf16.mxu0 0
    %352 = vmatpush1.bf16.msra.mxu0 0
    %353 = vmatprep.subr.bf16.mxu0 0
    %354 = vmatpush1.bf16.msra.mxu0 0
    %355 = vmatprep.subr.bf16.mxu0 %v343
    %356 = vmatpush1.bf16.msra.mxu0 %v340
    %357 = vmatprep.subr.bf16.mxu0 %v268
    %358 = vmatpush1.bf16.msra.mxu0 %v267
    %359 = vmatprep.subr.bf16.mxu0 %v264
    %360 = vmatpush1.bf16.msra.mxu0 %v263
    %361 = vmatprep.subr.bf16.mxu0 %v260
    %362 = vmatpush1.bf16.msra.mxu0 %v259
    %363 = vmatprep.subr.bf16.mxu0 %v256
    %364 = vmatpush1.bf16.msra.mxu0 %v255
    %365 = vmatprep.subr.bf16.mxu0 %v252
    %366 = vmatpush1.bf16.msra.mxu0 %v251
    %367 = vmatprep.subr.bf16.mxu0 0
    %368 = vmatpush2.bf16.msra.mxu0 0
    %369 = vmatprep.subr.bf16.mxu0 0
    %370 = vmatpush2.bf16.msra.mxu0 0
    %371 = vmatprep.subr.bf16.mxu0 0
    %372 = vmatpush2.bf16.msra.mxu0 0
    %373 = vmatprep.subr.bf16.mxu0 0
    %374 = vmatpush2.bf16.msra.mxu0 0
    %375 = vmatprep.subr.bf16.mxu0 0
    %376 = vmatpush2.bf16.msra.mxu0 0
    %377 = vmatprep.subr.bf16.mxu0 0
    %378 = vmatpush2.bf16.msra.mxu0 0
    %379 = vmatprep.subr.bf16.mxu0 0
    %380 = vmatpush2.bf16.msra.mxu0 0
    %381 = vmatprep.subr.bf16.mxu0 0
    %382 = vmatpush2.bf16.msra.mxu0 0
    %383 = vmatprep.mubr.bf16.mxu0 0
    %384 = vmatmul.mubr.bf16.gmra.mxu0 %v297
    %v385 = vpop.f32.mrf.mxu0
    %v386 = vadd.f32 0.0, %v385
    %v387 = vpop.f32.mrf.mxu0
    %v388 = vadd.f32 0.0, %v387
    %v389 = vpop.f32.mrf.mxu0
    %v390 = vadd.f32 0.0, %v389
    %v391 = vpop.f32.mrf.mxu0
    %v392 = vadd.f32 0.0, %v391
    %393 = vmatprep.mubr.bf16.mxu0 0
    %394 = vmatmul.mubr.bf16.gmra.mxu0 %v300
    %v395 = vpop.f32.mrf.mxu0
    %v396 = vadd.f32 0.0, %v395
    %v397 = vpop.f32.mrf.mxu0
    %v398 = vadd.f32 0.0, %v397
    %v399 = vpop.f32.mrf.mxu0
    %v400 = vadd.f32 0.0, %v399
    %v401 = vpop.f32.mrf.mxu0
    %v402 = vadd.f32 0.0, %v401
    %403 = vmatprep.mubr.bf16.mxu0 0
    %404 = vmatmul.mubr.bf16.gmra.mxu0 %v303
    %v405 = vpop.f32.mrf.mxu0
    %v406 = vadd.f32 0.0, %v405
    %v407 = vpop.f32.mrf.mxu0
    %v408 = vadd.f32 0.0, %v407
    %v409 = vpop.f32.mrf.mxu0
    %v410 = vadd.f32 0.0, %v409
    %v411 = vpop.f32.mrf.mxu0
    %v412 = vadd.f32 0.0, %v411
    %413 = vmatprep.mubr.bf16.mxu0 0
    %414 = vmatmul.mubr.bf16.gmra.mxu0 %v306
    %v415 = vpop.f32.mrf.mxu0
    %v416 = vadd.f32 0.0, %v415
    %v417 = vpop.f32.mrf.mxu0
    %v418 = vadd.f32 0.0, %v417
    %v419 = vpop.f32.mrf.mxu0
    %v420 = vadd.f32 0.0, %v419
    %v421 = vpop.f32.mrf.mxu0
    %v422 = vadd.f32 0.0, %v421
    %423 = vmatprep.mubr.bf16.mxu0 0
    %424 = vmatmul.mubr.bf16.gmra.mxu0 %v309
    %v425 = vpop.f32.mrf.mxu0
    %v426 = vadd.f32 0.0, %v425
    %v427 = vpop.f32.mrf.mxu0
    %v428 = vadd.f32 0.0, %v427
    %v429 = vpop.f32.mrf.mxu0
    %v430 = vadd.f32 0.0, %v429
    %v431 = vpop.f32.mrf.mxu0
    %v432 = vadd.f32 0.0, %v431
    %433 = vmatprep.mubr.bf16.mxu0 0
    %434 = vmatmul.mubr.bf16.gmra.mxu0 %v312
    %v435 = vpop.f32.mrf.mxu0
    %v436 = vadd.f32 0.0, %v435
    %v437 = vpop.f32.mrf.mxu0
    %v438 = vadd.f32 0.0, %v437
    %v439 = vpop.f32.mrf.mxu0
    %v440 = vadd.f32 0.0, %v439
    %v441 = vpop.f32.mrf.mxu0
    %v442 = vadd.f32 0.0, %v441
    %443 = vmatprep.mubr.bf16.mxu0 0
    %444 = vmatmul.mubr.bf16.gmra.mxu0 %v315
    %v445 = vpop.f32.mrf.mxu0
    %v446 = vadd.f32 0.0, %v445
    %v447 = vpop.f32.mrf.mxu0
    %v448 = vadd.f32 0.0, %v447
    %v449 = vpop.f32.mrf.mxu0
    %v450 = vadd.f32 0.0, %v449
    %v451 = vpop.f32.mrf.mxu0
    %v452 = vadd.f32 0.0, %v451
    %453 = vmatprep.mubr.bf16.mxu0 0
    %454 = vmatmul.mubr.bf16.gmra.mxu0 %v318
    %v455 = vpop.f32.mrf.mxu0
    %v456 = vadd.f32 0.0, %v455
    %v457 = vpop.f32.mrf.mxu0
    %v458 = vadd.f32 0.0, %v457
    %v459 = vpop.f32.mrf.mxu0
    %v460 = vadd.f32 0.0, %v459
    %v461 = vpop.f32.mrf.mxu0
    %v462 = vadd.f32 0.0, %v461
    %463 = vmatprep.mubr.bf16.mxu0 0
    %464 = vmatmul.mubr.bf16.gmra.mxu0 %v321
    %v465 = vpop.f32.mrf.mxu0
    %v466 = vadd.f32 0.0, %v465
    %v467 = vpop.f32.mrf.mxu0
    %v468 = vadd.f32 0.0, %v467
    %v469 = vpop.f32.mrf.mxu0
    %v470 = vadd.f32 0.0, %v469
    %v471 = vpop.f32.mrf.mxu0
    %v472 = vadd.f32 0.0, %v471
    %473 = vmatprep.mubr.bf16.mxu0 0
    %474 = vmatmul.mubr.bf16.gmra.mxu0 %v324
    %v475 = vpop.f32.mrf.mxu0
    %v476 = vadd.f32 0.0, %v475
    %v477 = vpop.f32.mrf.mxu0
    %v478 = vadd.f32 0.0, %v477
    %v479 = vpop.f32.mrf.mxu0
    %v480 = vadd.f32 0.0, %v479
    %v481 = vpop.f32.mrf.mxu0
    %v482 = vadd.f32 0.0, %v481
    %483 = vmatprep.mubr.bf16.mxu0 0
    %484 = vmatmul.mubr.bf16.gmra.mxu0 %v327
    %v485 = vpop.f32.mrf.mxu0
    %v486 = vadd.f32 0.0, %v485
    %v487 = vpop.f32.mrf.mxu0
    %v488 = vadd.f32 0.0, %v487
    %v489 = vpop.f32.mrf.mxu0
    %v490 = vadd.f32 0.0, %v489
    %v491 = vpop.f32.mrf.mxu0
    %v492 = vadd.f32 0.0, %v491
    %493 = vmatprep.mubr.bf16.mxu0 0
    %494 = vmatmul.mubr.bf16.gmra.mxu0 %v330
    %v495 = vpop.f32.mrf.mxu0
    %v496 = vadd.f32 0.0, %v495
    %v497 = vpop.f32.mrf.mxu0
    %v498 = vadd.f32 0.0, %v497
    %v499 = vpop.f32.mrf.mxu0
    %v500 = vadd.f32 0.0, %v499
    %v501 = vpop.f32.mrf.mxu0
    %v502 = vadd.f32 0.0, %v501
    %503 = vmatprep.mubr.bf16.mxu0 0
    %504 = vmatmul.mubr.bf16.gmra.mxu0 %v333
    %v505 = vpop.f32.mrf.mxu0
    %v506 = vadd.f32 0.0, %v505
    %v507 = vpop.f32.mrf.mxu0
    %v508 = vadd.f32 0.0, %v507
    %v509 = vpop.f32.mrf.mxu0
    %v510 = vadd.f32 0.0, %v509
    %v511 = vpop.f32.mrf.mxu0
    %v512 = vadd.f32 0.0, %v511
    %513 = vmatprep.mubr.bf16.mxu0 0
    %514 = vmatmul.mubr.bf16.gmra.mxu0 %v336
    %v515 = vpop.f32.mrf.mxu0
    %v516 = vadd.f32 0.0, %v515
    %v517 = vpop.f32.mrf.mxu0
    %v518 = vadd.f32 0.0, %v517
    %v519 = vpop.f32.mrf.mxu0
    %v520 = vadd.f32 0.0, %v519
    %v521 = vpop.f32.mrf.mxu0
    %v522 = vadd.f32 0.0, %v521
    %523 = vdwg.mxu0
    %524 = vmatprep.subr.bf16.mxu0 0
    %525 = vmatpush1.bf16.msra.mxu0 0
    %526 = vmatprep.subr.bf16.mxu0 0
    %527 = vmatpush1.bf16.msra.mxu0 0
    %528 = vmatprep.subr.bf16.mxu0 %v349
    %529 = vmatpush1.bf16.msra.mxu0 %v346
    %530 = vmatprep.subr.bf16.mxu0 %v270
    %531 = vmatpush1.bf16.msra.mxu0 %v269
    %532 = vmatprep.subr.bf16.mxu0 %v266
    %533 = vmatpush1.bf16.msra.mxu0 %v265
    %534 = vmatprep.subr.bf16.mxu0 %v262
    %535 = vmatpush1.bf16.msra.mxu0 %v261
    %536 = vmatprep.subr.bf16.mxu0 %v258
    %537 = vmatpush1.bf16.msra.mxu0 %v257
    %538 = vmatprep.subr.bf16.mxu0 %v254
    %539 = vmatpush1.bf16.msra.mxu0 %v253
    %540 = vmatprep.subr.bf16.mxu0 0
    %541 = vmatpush2.bf16.msra.mxu0 0
    %542 = vmatprep.subr.bf16.mxu0 0
    %543 = vmatpush2.bf16.msra.mxu0 0
    %544 = vmatprep.subr.bf16.mxu0 0
    %545 = vmatpush2.bf16.msra.mxu0 0
    %546 = vmatprep.subr.bf16.mxu0 0
    %547 = vmatpush2.bf16.msra.mxu0 0
    %548 = vmatprep.subr.bf16.mxu0 0
    %549 = vmatpush2.bf16.msra.mxu0 0
    %550 = vmatprep.subr.bf16.mxu0 0
    %551 = vmatpush2.bf16.msra.mxu0 0
    %552 = vmatprep.subr.bf16.mxu0 0
    %553 = vmatpush2.bf16.msra.mxu0 0
    %554 = vmatprep.subr.bf16.mxu0 0
    %555 = vmatpush2.bf16.msra.mxu0 0
    %556 = vmatprep.mubr.bf16.mxu0 0
    %557 = vmatmul.mubr.bf16.gmra.mxu0 %v297
    %v558 = vpop.f32.mrf.mxu0
    %v559 = vadd.f32 0.0, %v558
    %v560 = vpop.f32.mrf.mxu0
    %v561 = vadd.f32 0.0, %v560
    %v562 = vpop.f32.mrf.mxu0
    %v563 = vadd.f32 0.0, %v562
    %v564 = vpop.f32.mrf.mxu0
    %v565 = vadd.f32 0.0, %v564
    %566 = vmatprep.mubr.bf16.mxu0 0
    %567 = vmatmul.mubr.bf16.gmra.mxu0 %v300
    %v568 = vpop.f32.mrf.mxu0
    %v569 = vadd.f32 0.0, %v568
    %v570 = vpop.f32.mrf.mxu0
    %v571 = vadd.f32 0.0, %v570
    %v572 = vpop.f32.mrf.mxu0
    %v573 = vadd.f32 0.0, %v572
    %v574 = vpop.f32.mrf.mxu0
    %v575 = vadd.f32 0.0, %v574
    %576 = vmatprep.mubr.bf16.mxu0 0
    %577 = vmatmul.mubr.bf16.gmra.mxu0 %v303
    %v578 = vpop.f32.mrf.mxu0
    %v579 = vadd.f32 0.0, %v578
    %v580 = vpop.f32.mrf.mxu0
    %v581 = vadd.f32 0.0, %v580
    %v582 = vpop.f32.mrf.mxu0
    %v583 = vadd.f32 0.0, %v582
    %v584 = vpop.f32.mrf.mxu0
    %v585 = vadd.f32 0.0, %v584
    %586 = vmatprep.mubr.bf16.mxu0 0
    %587 = vmatmul.mubr.bf16.gmra.mxu0 %v306
    %v588 = vpop.f32.mrf.mxu0
    %v589 = vadd.f32 0.0, %v588
    %v590 = vpop.f32.mrf.mxu0
    %v591 = vadd.f32 0.0, %v590
    %v592 = vpop.f32.mrf.mxu0
    %v593 = vadd.f32 0.0, %v592
    %v594 = vpop.f32.mrf.mxu0
    %v595 = vadd.f32 0.0, %v594
    %596 = vmatprep.mubr.bf16.mxu0 0
    %597 = vmatmul.mubr.bf16.gmra.mxu0 %v309
    %v598 = vpop.f32.mrf.mxu0
    %v599 = vadd.f32 0.0, %v598
    %v600 = vpop.f32.mrf.mxu0
    %v601 = vadd.f32 0.0, %v600
    %v602 = vpop.f32.mrf.mxu0
    %v603 = vadd.f32 0.0, %v602
    %v604 = vpop.f32.mrf.mxu0
    %v605 = vadd.f32 0.0, %v604
    %606 = vmatprep.mubr.bf16.mxu0 0
    %607 = vmatmul.mubr.bf16.gmra.mxu0 %v312
    %v608 = vpop.f32.mrf.mxu0
    %v609 = vadd.f32 0.0, %v608
    %v610 = vpop.f32.mrf.mxu0
    %v611 = vadd.f32 0.0, %v610
    %v612 = vpop.f32.mrf.mxu0
    %v613 = vadd.f32 0.0, %v612
    %v614 = vpop.f32.mrf.mxu0
    %v615 = vadd.f32 0.0, %v614
    %616 = vmatprep.mubr.bf16.mxu0 0
    %617 = vmatmul.mubr.bf16.gmra.mxu0 %v315
    %v618 = vpop.f32.mrf.mxu0
    %v619 = vadd.f32 0.0, %v618
    %v620 = vpop.f32.mrf.mxu0
    %v621 = vadd.f32 0.0, %v620
    %v622 = vpop.f32.mrf.mxu0
    %v623 = vadd.f32 0.0, %v622
    %v624 = vpop.f32.mrf.mxu0
    %v625 = vadd.f32 0.0, %v624
    %626 = vmatprep.mubr.bf16.mxu0 0
    %627 = vmatmul.mubr.bf16.gmra.mxu0 %v318
    %v628 = vpop.f32.mrf.mxu0
    %v629 = vadd.f32 0.0, %v628
    %v630 = vpop.f32.mrf.mxu0
    %v631 = vadd.f32 0.0, %v630
    %v632 = vpop.f32.mrf.mxu0
    %v633 = vadd.f32 0.0, %v632
    %v634 = vpop.f32.mrf.mxu0
    %v635 = vadd.f32 0.0, %v634
    %636 = vmatprep.mubr.bf16.mxu0 0
    %637 = vmatmul.mubr.bf16.gmra.mxu0 %v321
    %v638 = vpop.f32.mrf.mxu0
    %v639 = vadd.f32 0.0, %v638
    %v640 = vpop.f32.mrf.mxu0
    %v641 = vadd.f32 0.0, %v640
    %v642 = vpop.f32.mrf.mxu0
    %v643 = vadd.f32 0.0, %v642
    %v644 = vpop.f32.mrf.mxu0
    %v645 = vadd.f32 0.0, %v644
    %646 = vmatprep.mubr.bf16.mxu0 0
    %647 = vmatmul.mubr.bf16.gmra.mxu0 %v324
    %v648 = vpop.f32.mrf.mxu0
    %v649 = vadd.f32 0.0, %v648
    %v650 = vpop.f32.mrf.mxu0
    %v651 = vadd.f32 0.0, %v650
    %v652 = vpop.f32.mrf.mxu0
    %v653 = vadd.f32 0.0, %v652
    %v654 = vpop.f32.mrf.mxu0
    %v655 = vadd.f32 0.0, %v654
    %656 = vmatprep.mubr.bf16.mxu0 0
    %657 = vmatmul.mubr.bf16.gmra.mxu0 %v327
    %v658 = vpop.f32.mrf.mxu0
    %v659 = vadd.f32 0.0, %v658
    %v660 = vpop.f32.mrf.mxu0
    %v661 = vadd.f32 0.0, %v660
    %v662 = vpop.f32.mrf.mxu0
    %v663 = vadd.f32 0.0, %v662
    %v664 = vpop.f32.mrf.mxu0
    %v665 = vadd.f32 0.0, %v664
    %666 = vmatprep.mubr.bf16.mxu0 0
    %667 = vmatmul.mubr.bf16.gmra.mxu0 %v330
    %v668 = vpop.f32.mrf.mxu0
    %v669 = vadd.f32 0.0, %v668
    %v670 = vpop.f32.mrf.mxu0
    %v671 = vadd.f32 0.0, %v670
    %v672 = vpop.f32.mrf.mxu0
    %v673 = vadd.f32 0.0, %v672
    %v674 = vpop.f32.mrf.mxu0
    %v675 = vadd.f32 0.0, %v674
    %676 = vmatprep.mubr.bf16.mxu0 0
    %677 = vmatmul.mubr.bf16.gmra.mxu0 %v333
    %v678 = vpop.f32.mrf.mxu0
    %v679 = vadd.f32 0.0, %v678
    %v680 = vpop.f32.mrf.mxu0
    %v681 = vadd.f32 0.0, %v680
    %v682 = vpop.f32.mrf.mxu0
    %v683 = vadd.f32 0.0, %v682
    %v684 = vpop.f32.mrf.mxu0
    %v685 = vadd.f32 0.0, %v684
    %686 = vmatprep.mubr.bf16.mxu0 0
    %687 = vmatmul.mubr.bf16.gmra.mxu0 %v336
    %v688 = vpop.f32.mrf.mxu0
    %v689 = vadd.f32 0.0, %v688
    %v690 = vpop.f32.mrf.mxu0
    %v691 = vadd.f32 0.0, %v690
    %v692 = vpop.f32.mrf.mxu0
    %v693 = vadd.f32 0.0, %v692
    %v694 = vpop.f32.mrf.mxu0
    %v695 = vadd.f32 0.0, %v694
    %696 = vdwg.mxu0
    %v697 = vmax.f32 %v386, %v420
    %v698 = vmax.f32 %v388, %v422
    %v699 = vmax.f32 %v559, %v593
    %v700 = vmax.f32 %v561, %v595
    %v701 = vmax.f32 %v390, %v426
    %v702 = vmax.f32 %v392, %v428
    %v703 = vmax.f32 %v563, %v599
    %v704 = vmax.f32 %v565, %v601
    %v705 = vmax.f32 %v396, %v430
    %v706 = vmax.f32 %v398, %v432
    %v707 = vmax.f32 %v569, %v603
    %v708 = vmax.f32 %v571, %v605
    %v709 = vmax.f32 %v400, %v436
    %v710 = vmax.f32 %v402, %v438
    %v711 = vmax.f32 %v573, %v609
    %v712 = vmax.f32 %v575, %v611
    %v713 = vmax.f32 %v406, %v440
    %v714 = vmax.f32 %v408, %v442
    %v715 = vmax.f32 %v579, %v613
    %v716 = vmax.f32 %v581, %v615
    %v717 = vmax.f32 %v410, %v446
    %v718 = vmax.f32 %v412, %v448
    %v719 = vmax.f32 %v583, %v619
    %v720 = vmax.f32 %v585, %v621
    %v721 = vmax.f32 %v416, %v450
    %v722 = vmax.f32 %v418, %v452
    %v723 = vmax.f32 %v589, %v623
    %v724 = vmax.f32 %v591, %v625
    %v726 = vlaneseq
    %v727 = vshrl.u32 %v726, 7
    %v728 = vsub.s32 0, %v727
    %v729 = vrot.slane %v55, %v728
    %v730 = vlaneseq
    %v731 = vshrl.u32 %v730, 7
    %v732 = vsub.s32 2, %v731
    %v733 = vrot.slane %v55, %v732
    %v734 = vlaneseq
    %v735 = vshrl.u32 %v734, 7
    %v736 = vsub.s32 4, %v735
    %v737 = vrot.slane %v55, %v736
    %v738 = vlaneseq
    %v739 = vshrl.u32 %v738, 7
    %v740 = vsub.s32 6, %v739
    %v741 = vrot.slane %v55, %v740
    %v746 = vlaneseq
    %v747 = vshrl.u32 %v746, 7
    %v748 = vsub.s32 0, %v747
    %v749 = vrot.slane %v729, %v748
    %v750 = vlaneseq
    %v751 = vshrl.u32 %v750, 7
    %v752 = vsub.s32 0, %v751
    %v753 = vrot.slane %v733, %v752
    %v754 = vlaneseq
    %v755 = vshrl.u32 %v754, 7
    %v756 = vsub.s32 0, %v755
    %v757 = vrot.slane %v737, %v756
    %v758 = vlaneseq
    %v759 = vshrl.u32 %v758, 7
    %v760 = vsub.s32 0, %v759
    %v761 = vrot.slane %v741, %v760
    %v762 = vadd.f32 %v697, %v749
    %v763 = vadd.f32 %v698, %v753
    %v764 = vadd.f32 %v699, %v757
    %v765 = vadd.f32 %v700, %v761
    %v766 = vadd.f32 %v701, %v749
    %v767 = vadd.f32 %v702, %v753
    %v768 = vadd.f32 %v703, %v757
    %v769 = vadd.f32 %v704, %v761
    %v770 = vadd.f32 %v705, %v749
    %v771 = vadd.f32 %v706, %v753
    %v772 = vadd.f32 %v707, %v757
    %v773 = vadd.f32 %v708, %v761
    %v774 = vadd.f32 %v709, %v749
    %v775 = vadd.f32 %v710, %v753
    %v776 = vadd.f32 %v711, %v757
    %v777 = vadd.f32 %v712, %v761
    %v778 = vadd.f32 %v713, %v749
    %v779 = vadd.f32 %v714, %v753
    %v780 = vadd.f32 %v715, %v757
    %v781 = vadd.f32 %v716, %v761
    %v782 = vadd.f32 %v717, %v749
    %v783 = vadd.f32 %v718, %v753
    %v784 = vadd.f32 %v719, %v757
    %v785 = vadd.f32 %v720, %v761
    %v786 = vadd.f32 %v721, %v749
    %v787 = vadd.f32 %v722, %v753
    %v788 = vadd.f32 %v723, %v757
    %v789 = vadd.f32 %v724, %v761
    %v790 = vmax.f32 %v762, 0.0
    %v791 = vmax.f32 %v763, 0.0
    %v792 = vmax.f32 %v764, 0.0
    %v793 = vmax.f32 %v765, 0.0
    %v794 = vmax.f32 %v766, 0.0
    %v795 = vmax.f32 %v767, 0.0
    %v796 = vmax.f32 %v768, 0.0
    %v797 = vmax.f32 %v769, 0.0
    %v798 = vmax.f32 %v770, 0.0
    %v799 = vmax.f32 %v771, 0.0
    %v800 = vmax.f32 %v772, 0.0
    %v801 = vmax.f32 %v773, 0.0
    %v802 = vmax.f32 %v774, 0.0
    %v803 = vmax.f32 %v775, 0.0
    %v804 = vmax.f32 %v776, 0.0
    %v805 = vmax.f32 %v777, 0.0
    %v806 = vmax.f32 %v778, 0.0
    %v807 = vmax.f32 %v779, 0.0
    %v808 = vmax.f32 %v780, 0.0
    %v809 = vmax.f32 %v781, 0.0
    %v810 = vmax.f32 %v782, 0.0
    %v811 = vmax.f32 %v783, 0.0
    %v812 = vmax.f32 %v784, 0.0
    %v813 = vmax.f32 %v785, 0.0
    %v814 = vmax.f32 %v786, 0.0
    %v815 = vmax.f32 %v787, 0.0
    %v816 = vmax.f32 %v788, 0.0
    %v817 = vmax.f32 %v789, 0.0
    %v818 = vmax.f32 %v456, %v490
    %v819 = vmax.f32 %v458, %v492
    %v820 = vmax.f32 %v629, %v663
    %v821 = vmax.f32 %v631, %v665
    %v822 = vmax.f32 %v460, %v496
    %v823 = vmax.f32 %v462, %v498
    %v824 = vmax.f32 %v633, %v669
    %v825 = vmax.f32 %v635, %v671
    %v826 = vmax.f32 %v466, %v500
    %v827 = vmax.f32 %v468, %v502
    %v828 = vmax.f32 %v639, %v673
    %v829 = vmax.f32 %v641, %v675
    %v830 = vmax.f32 %v470, %v506
    %v831 = vmax.f32 %v472, %v508
    %v832 = vmax.f32 %v643, %v679
    %v833 = vmax.f32 %v645, %v681
    %v834 = vmax.f32 %v476, %v510
    %v835 = vmax.f32 %v478, %v512
    %v836 = vmax.f32 %v649, %v683
    %v837 = vmax.f32 %v651, %v685
    %v838 = vmax.f32 %v480, %v516
    %v839 = vmax.f32 %v482, %v518
    %v840 = vmax.f32 %v653, %v689
    %v841 = vmax.f32 %v655, %v691
    %v842 = vmax.f32 %v486, %v520
    %v843 = vmax.f32 %v488, %v522
    %v844 = vmax.f32 %v659, %v693
    %v845 = vmax.f32 %v661, %v695
    %v846 = vadd.f32 %v818, %v749
    %v847 = vadd.f32 %v819, %v753
    %v848 = vadd.f32 %v820, %v757
    %v849 = vadd.f32 %v821, %v761
    %v850 = vadd.f32 %v822, %v749
    %v851 = vadd.f32 %v823, %v753
    %v852 = vadd.f32 %v824, %v757
    %v853 = vadd.f32 %v825, %v761
    %v854 = vadd.f32 %v826, %v749
    %v855 = vadd.f32 %v827, %v753
    %v856 = vadd.f32 %v828, %v757
    %v857 = vadd.f32 %v829, %v761
    %v858 = vadd.f32 %v830, %v749
    %v859 = vadd.f32 %v831, %v753
    %v860 = vadd.f32 %v832, %v757
    %v861 = vadd.f32 %v833, %v761
    %v862 = vadd.f32 %v834, %v749
    %v863 = vadd.f32 %v835, %v753
    %v864 = vadd.f32 %v836, %v757
    %v865 = vadd.f32 %v837, %v761
    %v866 = vadd.f32 %v838, %v749
    %v867 = vadd.f32 %v839, %v753
    %v868 = vadd.f32 %v840, %v757
    %v869 = vadd.f32 %v841, %v761
    %v870 = vadd.f32 %v842, %v749
    %v871 = vadd.f32 %v843, %v753
    %v872 = vadd.f32 %v844, %v757
    %v873 = vadd.f32 %v845, %v761
    %v874 = vmax.f32 %v846, 0.0
    %v875 = vmax.f32 %v847, 0.0
    %v876 = vmax.f32 %v848, 0.0
    %v877 = vmax.f32 %v849, 0.0
    %v878 = vmax.f32 %v850, 0.0
    %v879 = vmax.f32 %v851, 0.0
    %v880 = vmax.f32 %v852, 0.0
    %v881 = vmax.f32 %v853, 0.0
    %v882 = vmax.f32 %v854, 0.0
    %v883 = vmax.f32 %v855, 0.0
    %v884 = vmax.f32 %v856, 0.0
    %v885 = vmax.f32 %v857, 0.0
    %v886 = vmax.f32 %v858, 0.0
    %v887 = vmax.f32 %v859, 0.0
    %v888 = vmax.f32 %v860, 0.0
    %v889 = vmax.f32 %v861, 0.0
    %v890 = vmax.f32 %v862, 0.0
    %v891 = vmax.f32 %v863, 0.0
    %v892 = vmax.f32 %v864, 0.0
    %v893 = vmax.f32 %v865, 0.0
    %v894 = vmax.f32 %v866, 0.0
    %v895 = vmax.f32 %v867, 0.0
    %v896 = vmax.f32 %v868, 0.0
    %v897 = vmax.f32 %v869, 0.0
    %v898 = vmax.f32 %v870, 0.0
    %v899 = vmax.f32 %v871, 0.0
    %v900 = vmax.f32 %v872, 0.0
    %v901 = vmax.f32 %v873, 0.0
    %v902 = vmax.f32 %v790, %v792
    %v903 = vmax.f32 %v791, %v793
    %v904 = vmax.f32 %v794, %v796
    %v905 = vmax.f32 %v795, %v797
    %v906 = vmax.f32 %v798, %v800
    %v907 = vmax.f32 %v799, %v801
    %v908 = vmax.f32 %v802, %v804
    %v909 = vmax.f32 %v803, %v805
    %v910 = vmax.f32 %v806, %v808
    %v911 = vmax.f32 %v807, %v809
    %v912 = vmax.f32 %v810, %v812
    %v913 = vmax.f32 %v811, %v813
    %v914 = vmax.f32 %v814, %v816
    %v915 = vmax.f32 %v815, %v817
    %v916 = vmax.f32 %v874, %v876
    %v917 = vmax.f32 %v875, %v877
    %v918 = vmax.f32 %v878, %v880
    %v919 = vmax.f32 %v879, %v881
    %v920 = vmax.f32 %v882, %v884
    %v921 = vmax.f32 %v883, %v885
    %v922 = vmax.f32 %v886, %v888
    %v923 = vmax.f32 %v887, %v889
    %v924 = vmax.f32 %v890, %v892
    %v925 = vmax.f32 %v891, %v893
    %v926 = vmax.f32 %v894, %v896
    %v927 = vmax.f32 %v895, %v897
    %v928 = vmax.f32 %v898, %v900
    %v929 = vmax.f32 %v899, %v901
    %v930 = vld [vmem:[#allocation4] sm:$0xff]
    %v931 = vld [vmem:[#allocation4 + $0x8] sm:$0xff]
    %v932 = vld [vmem:[#allocation4 + $0x10] sm:$0xff]
    %v933 = vld [vmem:[#allocation4 + $0x18] sm:$0xff]
    %v934 = vld [vmem:[#allocation4 + $0x20] sm:$0xff]
    %v935 = vld [vmem:[#allocation4 + $0x28] sm:$0xff]
    %v936 = vld [vmem:[#allocation4 + $0x30] sm:$0xff]
    %v937 = vld [vmem:[#allocation4 + $0x38] sm:$0xff]
    %v938 = vld [vmem:[#allocation4 + $0x40] sm:$0xff]
    %v939 = vld [vmem:[#allocation4 + $0x48] sm:$0xff]
    %v940 = vld [vmem:[#allocation4 + $0x50] sm:$0xff]
    %v941 = vld [vmem:[#allocation4 + $0x58] sm:$0xff]
    %v942 = vld [vmem:[#allocation4 + $0x60] sm:$0xff]
    %v943 = vld [vmem:[#allocation4 + $0x68] sm:$0xff]
    %v944 = vld [vmem:[#allocation4 + $0x70] sm:$0xff]
    %v945 = vld [vmem:[#allocation4 + $0x78] sm:$0xff]
    %v946 = vld [vmem:[#allocation4 + $0x80] sm:$0xff]
    %v947 = vld [vmem:[#allocation4 + $0x88] sm:$0xff]
    %v948 = vld [vmem:[#allocation4 + $0x90] sm:$0xff]
    %v949 = vld [vmem:[#allocation4 + $0x98] sm:$0xff]
    %v950 = vld [vmem:[#allocation4 + $0xa0] sm:$0xff]
    %v951 = vld [vmem:[#allocation4 + $0xa8] sm:$0xff]
    %v952 = vld [vmem:[#allocation4 + $0xb0] sm:$0xff]
    %v953 = vld [vmem:[#allocation4 + $0xb8] sm:$0xff]
    %v954 = vld [vmem:[#allocation4 + $0xc0] sm:$0xff]
    %v955 = vld [vmem:[#allocation4 + $0xc8] sm:$0xff]
    %v956 = vld [vmem:[#allocation4 + $0xd0] sm:$0xff]
    %v957 = vld [vmem:[#allocation4 + $0xd8] sm:$0xff]
    %v958 = vld [vmem:[#allocation4 + $0xe0] sm:$0xff]
    %v959 = vld [vmem:[#allocation4 + $0xe8] sm:$0xff]
    %v960 = vld [vmem:[#allocation4 + $0xf0] sm:$0xff]
    %v961 = vld [vmem:[#allocation4 + $0xf8] sm:$0xff]
    %v962 = vld [vmem:[#allocation4 + $0x100] sm:$0xff]
    %v963 = vld [vmem:[#allocation4 + $0x108] sm:$0xff]
    %v964 = vld [vmem:[#allocation4 + $0x110] sm:$0xff]
    %v965 = vld [vmem:[#allocation4 + $0x118] sm:$0xff]
    %v966 = vld [vmem:[#allocation4 + $0x120] sm:$0xff]
    %v967 = vld [vmem:[#allocation4 + $0x128] sm:$0xff]
    %v968 = vld [vmem:[#allocation4 + $0x130] sm:$0xff]
    %v969 = vld [vmem:[#allocation4 + $0x138] sm:$0xff]
    %v970 = vld [vmem:[#allocation4 + $0x140] sm:$0xff]
    %v971 = vld [vmem:[#allocation4 + $0x148] sm:$0xff]
    %v972 = vld [vmem:[#allocation4 + $0x150] sm:$0xff]
    %v973 = vld [vmem:[#allocation4 + $0x158] sm:$0xff]
    %v974 = vld [vmem:[#allocation4 + $0x160] sm:$0xff]
    %v975 = vld [vmem:[#allocation4 + $0x168] sm:$0xff]
    %v976 = vld [vmem:[#allocation4 + $0x170] sm:$0xff]
    %v977 = vld [vmem:[#allocation4 + $0x178] sm:$0xff]
    %v978 = vld [vmem:[#allocation4 + $0x180] sm:$0xff]
    %v979 = vld [vmem:[#allocation4 + $0x188] sm:$0xff]
    %v980 = vld [vmem:[#allocation4 + $0x190] sm:$0xff]
    %v981 = vld [vmem:[#allocation4 + $0x198] sm:$0xff]
    %v982 = vld [vmem:[#allocation4 + $0x1a0] sm:$0xff]
    %v983 = vld [vmem:[#allocation4 + $0x1a8] sm:$0xff]
    %v984 = vld [vmem:[#allocation4 + $0x1b0] sm:$0xff]
    %v985 = vld [vmem:[#allocation4 + $0x1b8] sm:$0xff]
    %v986 = vld [vmem:[#allocation4 + $0x1c0] sm:$0xff]
    %v987 = vld [vmem:[#allocation4 + $0x1c8] sm:$0xff]
    %v988 = vld [vmem:[#allocation4 + $0x1d0] sm:$0xff]
    %v989 = vld [vmem:[#allocation4 + $0x1d8] sm:$0xff]
    %v990 = vld [vmem:[#allocation4 + $0x1e0] sm:$0xff]
    %v991 = vld [vmem:[#allocation4 + $0x1e8] sm:$0xff]
    %v992 = vld [vmem:[#allocation4 + $0x1f0] sm:$0xff]
    %v993 = vld [vmem:[#allocation4 + $0x1f8] sm:$0xff]
    %v994 = vld [vmem:[#allocation4 + $0x200] sm:$0xff]
    %v995 = vld [vmem:[#allocation4 + $0x208] sm:$0xff]
    %v996 = vld [vmem:[#allocation4 + $0x210] sm:$0xff]
    %v997 = vld [vmem:[#allocation4 + $0x218] sm:$0xff]
    %v998 = vld [vmem:[#allocation4 + $0x220] sm:$0xff]
    %v999 = vld [vmem:[#allocation4 + $0x228] sm:$0xff]
    %v1000 = vld [vmem:[#allocation4 + $0x230] sm:$0xff]
    %v1001 = vld [vmem:[#allocation4 + $0x238] sm:$0xff]
    %v1002 = vld [vmem:[#allocation4 + $0x240] sm:$0xff]
    %v1003 = vld [vmem:[#allocation4 + $0x248] sm:$0xff]
    %v1004 = vld [vmem:[#allocation4 + $0x250] sm:$0xff]
    %v1005 = vld [vmem:[#allocation4 + $0x258] sm:$0xff]
    %v1006 = vld [vmem:[#allocation4 + $0x260] sm:$0xff]
    %v1007 = vld [vmem:[#allocation4 + $0x268] sm:$0xff]
    %v1008 = vld [vmem:[#allocation4 + $0x270] sm:$0xff]
    %v1009 = vld [vmem:[#allocation4 + $0x278] sm:$0xff]
    %v1010 = vld [vmem:[#allocation4 + $0x280] sm:$0xff]
    %v1011 = vld [vmem:[#allocation4 + $0x288] sm:$0xff]
    %v1012 = vld [vmem:[#allocation4 + $0x290] sm:$0xff]
    %v1013 = vld [vmem:[#allocation4 + $0x298] sm:$0xff]
    %v1014 = vld [vmem:[#allocation4 + $0x2a0] sm:$0xff]
    %v1015 = vld [vmem:[#allocation4 + $0x2a8] sm:$0xff]
    %v1016 = vld [vmem:[#allocation4 + $0x2b0] sm:$0xff]
    %v1017 = vld [vmem:[#allocation4 + $0x2b8] sm:$0xff]
    %v1018 = vld [vmem:[#allocation4 + $0x2c0] sm:$0xff]
    %v1019 = vld [vmem:[#allocation4 + $0x2c8] sm:$0xff]
    %v1020 = vld [vmem:[#allocation4 + $0x2d0] sm:$0xff]
    %v1021 = vld [vmem:[#allocation4 + $0x2d8] sm:$0xff]
    %v1022 = vld [vmem:[#allocation4 + $0x2e0] sm:$0xff]
    %v1023 = vld [vmem:[#allocation4 + $0x2e8] sm:$0xff]
    %v1024 = vld [vmem:[#allocation4 + $0x2f0] sm:$0xff]
    %v1025 = vld [vmem:[#allocation4 + $0x2f8] sm:$0xff]
    %v1026 = vld [vmem:[#allocation4 + $0x300] sm:$0xff]
    %v1027 = vld [vmem:[#allocation4 + $0x308] sm:$0xff]
    %v1028 = vld [vmem:[#allocation4 + $0x310] sm:$0xff]
    %v1029 = vld [vmem:[#allocation4 + $0x318] sm:$0xff]
    %v1030 = vld [vmem:[#allocation4 + $0x320] sm:$0xff]
    %v1031 = vld [vmem:[#allocation4 + $0x328] sm:$0xff]
    %v1032 = vld [vmem:[#allocation4 + $0x330] sm:$0xff]
    %v1033 = vld [vmem:[#allocation4 + $0x338] sm:$0xff]
    %v1034 = vld [vmem:[#allocation4 + $0x340] sm:$0xff]
    %v1035 = vld [vmem:[#allocation4 + $0x348] sm:$0xff]
    %v1036 = vld [vmem:[#allocation4 + $0x350] sm:$0xff]
    %v1037 = vld [vmem:[#allocation4 + $0x358] sm:$0xff]
    %v1038 = vld [vmem:[#allocation4 + $0x360] sm:$0xff]
    %v1039 = vld [vmem:[#allocation4 + $0x368] sm:$0xff]
    %v1040 = vld [vmem:[#allocation4 + $0x370] sm:$0xff]
    %v1041 = vld [vmem:[#allocation4 + $0x378] sm:$0xff]
    %v1042 = vld [vmem:[#allocation4 + $0x380] sm:$0xff]
    %v1043 = vld [vmem:[#allocation4 + $0x388] sm:$0xff]
    %v1044 = vld [vmem:[#allocation4 + $0x390] sm:$0xff]
    %v1045 = vld [vmem:[#allocation4 + $0x398] sm:$0xff]
    %v1046 = vld [vmem:[#allocation4 + $0x3a0] sm:$0xff]
    %v1047 = vld [vmem:[#allocation4 + $0x3a8] sm:$0xff]
    %v1048 = vld [vmem:[#allocation4 + $0x3b0] sm:$0xff]
    %v1049 = vld [vmem:[#allocation4 + $0x3b8] sm:$0xff]
    %v1050 = vld [vmem:[#allocation4 + $0x3c0] sm:$0xff]
    %v1051 = vld [vmem:[#allocation4 + $0x3c8] sm:$0xff]
    %v1052 = vld [vmem:[#allocation4 + $0x3d0] sm:$0xff]
    %v1053 = vld [vmem:[#allocation4 + $0x3d8] sm:$0xff]
    %v1054 = vld [vmem:[#allocation4 + $0x3e0] sm:$0xff]
    %v1055 = vld [vmem:[#allocation4 + $0x3e8] sm:$0xff]
    %v1056 = vld [vmem:[#allocation4 + $0x3f0] sm:$0xff]
    %v1057 = vld [vmem:[#allocation4 + $0x3f8] sm:$0xff]
    %v1058 = vld [vmem:[#allocation4 + $0x400] sm:$0xff]
    %v1059 = vld [vmem:[#allocation4 + $0x408] sm:$0xff]
    %v1060 = vld [vmem:[#allocation4 + $0x410] sm:$0xff]
    %v1061 = vld [vmem:[#allocation4 + $0x418] sm:$0xff]
    %v1062 = vld [vmem:[#allocation4 + $0x420] sm:$0xff]
    %v1063 = vld [vmem:[#allocation4 + $0x428] sm:$0xff]
    %v1064 = vld [vmem:[#allocation4 + $0x430] sm:$0xff]
    %v1065 = vld [vmem:[#allocation4 + $0x438] sm:$0xff]
    %v1066 = vld [vmem:[#allocation4 + $0x440] sm:$0xff]
    %v1067 = vld [vmem:[#allocation4 + $0x448] sm:$0xff]
    %v1068 = vld [vmem:[#allocation4 + $0x450] sm:$0xff]
    %v1069 = vld [vmem:[#allocation4 + $0x458] sm:$0xff]
    %v1070 = vld [vmem:[#allocation4 + $0x460] sm:$0xff]
    %v1071 = vld [vmem:[#allocation4 + $0x468] sm:$0xff]
    %v1072 = vld [vmem:[#allocation4 + $0x470] sm:$0xff]
    %v1073 = vld [vmem:[#allocation4 + $0x478] sm:$0xff]
    %v1074 = vld [vmem:[#allocation4 + $0x480] sm:$0xff]
    %v1075 = vld [vmem:[#allocation4 + $0x488] sm:$0xff]
    %v1076 = vld [vmem:[#allocation4 + $0x490] sm:$0xff]
    %v1077 = vld [vmem:[#allocation4 + $0x498] sm:$0xff]
    %v1078 = vld [vmem:[#allocation4 + $0x4a0] sm:$0xff]
    %v1079 = vld [vmem:[#allocation4 + $0x4a8] sm:$0xff]
    %v1080 = vld [vmem:[#allocation4 + $0x4b0] sm:$0xff]
    %v1081 = vld [vmem:[#allocation4 + $0x4b8] sm:$0xff]
    %v1082 = vld [vmem:[#allocation4 + $0x4c0] sm:$0xff]
    %v1083 = vld [vmem:[#allocation4 + $0x4c8] sm:$0xff]
    %v1084 = vld [vmem:[#allocation4 + $0x4d0] sm:$0xff]
    %v1085 = vld [vmem:[#allocation4 + $0x4d8] sm:$0xff]
    %v1086 = vld [vmem:[#allocation4 + $0x4e0] sm:$0xff]
    %v1087 = vld [vmem:[#allocation4 + $0x4e8] sm:$0xff]
    %v1088 = vld [vmem:[#allocation4 + $0x4f0] sm:$0xff]
    %v1089 = vld [vmem:[#allocation4 + $0x4f8] sm:$0xff]
    %v1090 = vld [vmem:[#allocation4 + $0x500] sm:$0xff]
    %v1091 = vld [vmem:[#allocation4 + $0x508] sm:$0xff]
    %v1092 = vld [vmem:[#allocation4 + $0x510] sm:$0xff]
    %v1093 = vld [vmem:[#allocation4 + $0x518] sm:$0xff]
    %v1094 = vld [vmem:[#allocation4 + $0x520] sm:$0xff]
    %v1095 = vld [vmem:[#allocation4 + $0x528] sm:$0xff]
    %v1096 = vld [vmem:[#allocation4 + $0x530] sm:$0xff]
    %v1097 = vld [vmem:[#allocation4 + $0x538] sm:$0xff]
    %v1098 = vld [vmem:[#allocation4 + $0x540] sm:$0xff]
    %v1099 = vld [vmem:[#allocation4 + $0x548] sm:$0xff]
    %v1100 = vld [vmem:[#allocation4 + $0x550] sm:$0xff]
    %v1101 = vld [vmem:[#allocation4 + $0x558] sm:$0xff]
    %v1102 = vld [vmem:[#allocation4 + $0x560] sm:$0xff]
    %v1103 = vld [vmem:[#allocation4 + $0x568] sm:$0xff]
    %v1104 = vld [vmem:[#allocation4 + $0x570] sm:$0xff]
    %v1105 = vld [vmem:[#allocation4 + $0x578] sm:$0xff]
    %v1106 = vld [vmem:[#allocation4 + $0x580] sm:$0xff]
    %v1107 = vld [vmem:[#allocation4 + $0x588] sm:$0xff]
    %v1108 = vld [vmem:[#allocation4 + $0x590] sm:$0xff]
    %v1109 = vld [vmem:[#allocation4 + $0x598] sm:$0xff]
    %v1110 = vld [vmem:[#allocation4 + $0x5a0] sm:$0xff]
    %v1111 = vld [vmem:[#allocation4 + $0x5a8] sm:$0xff]
    %v1112 = vld [vmem:[#allocation4 + $0x5b0] sm:$0xff]
    %v1113 = vld [vmem:[#allocation4 + $0x5b8] sm:$0xff]
    %v1114 = vld [vmem:[#allocation4 + $0x5c0] sm:$0xff]
    %v1115 = vld [vmem:[#allocation4 + $0x5c8] sm:$0xff]
    %v1116 = vld [vmem:[#allocation4 + $0x5d0] sm:$0xff]
    %v1117 = vld [vmem:[#allocation4 + $0x5d8] sm:$0xff]
    %v1118 = vld [vmem:[#allocation4 + $0x5e0] sm:$0xff]
    %v1119 = vld [vmem:[#allocation4 + $0x5e8] sm:$0xff]
    %v1120 = vld [vmem:[#allocation4 + $0x5f0] sm:$0xff]
    %v1121 = vld [vmem:[#allocation4 + $0x5f8] sm:$0xff]
    %v1122 = vpack.c.bf16 %v916, 0.0
    %v1123 = vpack.c.bf16 %v917, 0.0
    %v1124 = vpack.c.bf16 %v904, %v902
    %v1125 = vpack.c.bf16 %v905, %v903
    %v1126 = vpack.c.bf16 %v918, %v916
    %v1127 = vpack.c.bf16 %v919, %v917
    %v1128 = vpack.c.bf16 %v920, %v918
    %v1129 = vpack.c.bf16 %v921, %v919
    %v1130 = vpack.c.bf16 %v908, %v906
    %v1131 = vpack.c.bf16 %v909, %v907
    %v1132 = vpack.c.bf16 %v922, %v920
    %v1133 = vpack.c.bf16 %v923, %v921
    %v1134 = vpack.c.bf16 %v924, %v922
    %v1135 = vpack.c.bf16 %v925, %v923
    %v1136 = vpack.c.bf16 %v912, %v910
    %v1137 = vpack.c.bf16 %v913, %v911
    %v1138 = vpack.c.bf16 %v926, %v924
    %v1139 = vpack.c.bf16 %v927, %v925
    %v1140 = vpack.c.bf16 %v926, %v926
    %v1141 = vpack.c.bf16 %v927, %v927
    %v1142 = vpack.c.bf16 %v914, %v914
    %v1143 = vpack.c.bf16 %v915, %v915
    %v1144 = vpack.c.bf16 %v928, %v928
    %v1145 = vpack.c.bf16 %v929, %v929
    %v1146 = vpack.c.bf16 %v906, %v904
    %v1147 = vpack.c.bf16 %v907, %v905
    %v1148 = vpack.c.bf16 %v910, %v908
    %v1149 = vpack.c.bf16 %v911, %v909
    %v1150 = vpack.c.bf16 %v914, %v912
    %v1151 = vpack.c.bf16 %v915, %v913
    %v1152 = vpack.c.bf16 0.0, 0.0
    %v1345 = vunpack.c.l.b16 %v930
    %v1346 = vunpack.c.h.b16 %v930
    %v1347 = vunpack.c.l.b16 %v931
    %v1348 = vunpack.c.h.b16 %v931
    %v1349 = vunpack.c.l.b16 %v932
    %v1350 = vunpack.c.h.b16 %v932
    %v1351 = vunpack.c.l.b16 %v933
    %v1352 = vunpack.c.h.b16 %v933
    %v1353 = vunpack.c.l.b16 %v934
    %v1354 = vunpack.c.h.b16 %v934
    %v1355 = vunpack.c.l.b16 %v935
    %v1356 = vunpack.c.h.b16 %v935
    %v1357 = vunpack.c.l.b16 %v936
    %v1358 = vunpack.c.h.b16 %v936
    %v1359 = vunpack.c.l.b16 %v937
    %v1360 = vunpack.c.h.b16 %v937
    %v1361 = vunpack.c.l.b16 %v938
    %v1362 = vunpack.c.h.b16 %v938
    %v1363 = vunpack.c.l.b16 %v939
    %v1364 = vunpack.c.h.b16 %v939
    %v1365 = vunpack.c.l.b16 %v940
    %v1366 = vunpack.c.h.b16 %v940
    %v1367 = vunpack.c.l.b16 %v941
    %v1368 = vunpack.c.h.b16 %v941
    %v1369 = vunpack.c.l.b16 %v942
    %v1370 = vunpack.c.h.b16 %v942
    %v1371 = vunpack.c.l.b16 %v943
    %v1372 = vunpack.c.h.b16 %v943
    %v1373 = vunpack.c.l.b16 %v944
    %v1374 = vunpack.c.h.b16 %v944
    %v1375 = vunpack.c.l.b16 %v945
    %v1376 = vunpack.c.h.b16 %v945
    %v1377 = vunpack.c.l.b16 %v946
    %v1378 = vunpack.c.h.b16 %v946
    %v1379 = vunpack.c.l.b16 %v947
    %v1380 = vunpack.c.h.b16 %v947
    %v1381 = vunpack.c.l.b16 %v948
    %v1382 = vunpack.c.h.b16 %v948
    %v1383 = vunpack.c.l.b16 %v949
    %v1384 = vunpack.c.h.b16 %v949
    %v1385 = vunpack.c.l.b16 %v950
    %v1386 = vunpack.c.h.b16 %v950
    %v1387 = vunpack.c.l.b16 %v951
    %v1388 = vunpack.c.h.b16 %v951
    %v1389 = vunpack.c.l.b16 %v952
    %v1390 = vunpack.c.h.b16 %v952
    %v1391 = vunpack.c.l.b16 %v953
    %v1392 = vunpack.c.h.b16 %v953
    %v1393 = vunpack.c.l.b16 %v954
    %v1394 = vunpack.c.h.b16 %v954
    %v1395 = vunpack.c.l.b16 %v955
    %v1396 = vunpack.c.h.b16 %v955
    %v1397 = vunpack.c.l.b16 %v956
    %v1398 = vunpack.c.h.b16 %v956
    %v1399 = vunpack.c.l.b16 %v957
    %v1400 = vunpack.c.h.b16 %v957
    %v1401 = vunpack.c.l.b16 %v958
    %v1402 = vunpack.c.h.b16 %v958
    %v1403 = vunpack.c.l.b16 %v959
    %v1404 = vunpack.c.h.b16 %v959
    %v1405 = vunpack.c.l.b16 %v960
    %v1406 = vunpack.c.h.b16 %v960
    %v1407 = vunpack.c.l.b16 %v961
    %v1408 = vunpack.c.h.b16 %v961
    %v1409 = vunpack.c.l.b16 %v962
    %v1410 = vunpack.c.h.b16 %v962
    %v1411 = vunpack.c.l.b16 %v963
    %v1412 = vunpack.c.h.b16 %v963
    %v1413 = vunpack.c.l.b16 %v964
    %v1414 = vunpack.c.h.b16 %v964
    %v1415 = vunpack.c.l.b16 %v965
    %v1416 = vunpack.c.h.b16 %v965
    %v1417 = vunpack.c.l.b16 %v966
    %v1418 = vunpack.c.h.b16 %v966
    %v1419 = vunpack.c.l.b16 %v967
    %v1420 = vunpack.c.h.b16 %v967
    %v1421 = vunpack.c.l.b16 %v968
    %v1422 = vunpack.c.h.b16 %v968
    %v1423 = vunpack.c.l.b16 %v969
    %v1424 = vunpack.c.h.b16 %v969
    %v1425 = vunpack.c.l.b16 %v970
    %v1426 = vunpack.c.h.b16 %v970
    %v1427 = vunpack.c.l.b16 %v971
    %v1428 = vunpack.c.h.b16 %v971
    %v1429 = vunpack.c.l.b16 %v972
    %v1430 = vunpack.c.h.b16 %v972
    %v1431 = vunpack.c.l.b16 %v973
    %v1432 = vunpack.c.h.b16 %v973
    %v1433 = vunpack.c.l.b16 %v974
    %v1434 = vunpack.c.h.b16 %v974
    %v1435 = vunpack.c.l.b16 %v975
    %v1436 = vunpack.c.h.b16 %v975
    %v1437 = vunpack.c.l.b16 %v976
    %v1438 = vunpack.c.h.b16 %v976
    %v1439 = vunpack.c.l.b16 %v977
    %v1440 = vunpack.c.h.b16 %v977
    %v1441 = vunpack.c.l.b16 %v978
    %v1442 = vunpack.c.h.b16 %v978
    %v1443 = vunpack.c.l.b16 %v979
    %v1444 = vunpack.c.h.b16 %v979
    %v1445 = vunpack.c.l.b16 %v980
    %v1446 = vunpack.c.h.b16 %v980
    %v1447 = vunpack.c.l.b16 %v981
    %v1448 = vunpack.c.h.b16 %v981
    %v1449 = vunpack.c.l.b16 %v982
    %v1450 = vunpack.c.h.b16 %v982
    %v1451 = vunpack.c.l.b16 %v983
    %v1452 = vunpack.c.h.b16 %v983
    %v1453 = vunpack.c.l.b16 %v984
    %v1454 = vunpack.c.h.b16 %v984
    %v1455 = vunpack.c.l.b16 %v985
    %v1456 = vunpack.c.h.b16 %v985
    %v1457 = vunpack.c.l.b16 %v986
    %v1458 = vunpack.c.h.b16 %v986
    %v1459 = vunpack.c.l.b16 %v987
    %v1460 = vunpack.c.h.b16 %v987
    %v1461 = vunpack.c.l.b16 %v988
    %v1462 = vunpack.c.h.b16 %v988
    %v1463 = vunpack.c.l.b16 %v989
    %v1464 = vunpack.c.h.b16 %v989
    %v1465 = vunpack.c.l.b16 %v990
    %v1466 = vunpack.c.h.b16 %v990
    %v1467 = vunpack.c.l.b16 %v991
    %v1468 = vunpack.c.h.b16 %v991
    %v1469 = vunpack.c.l.b16 %v992
    %v1470 = vunpack.c.h.b16 %v992
    %v1471 = vunpack.c.l.b16 %v993
    %v1472 = vunpack.c.h.b16 %v993
    %v1473 = vunpack.c.l.b16 %v994
    %v1474 = vunpack.c.h.b16 %v994
    %v1475 = vunpack.c.l.b16 %v995
    %v1476 = vunpack.c.h.b16 %v995
    %v1477 = vunpack.c.l.b16 %v996
    %v1478 = vunpack.c.h.b16 %v996
    %v1479 = vunpack.c.l.b16 %v997
    %v1480 = vunpack.c.h.b16 %v997
    %v1481 = vunpack.c.l.b16 %v998
    %v1482 = vunpack.c.h.b16 %v998
    %v1483 = vunpack.c.l.b16 %v999
    %v1484 = vunpack.c.h.b16 %v999
    %v1485 = vunpack.c.l.b16 %v1000
    %v1486 = vunpack.c.h.b16 %v1000
    %v1487 = vunpack.c.l.b16 %v1001
    %v1488 = vunpack.c.h.b16 %v1001
    %v1489 = vunpack.c.l.b16 %v1002
    %v1490 = vunpack.c.h.b16 %v1002
    %v1491 = vunpack.c.l.b16 %v1003
    %v1492 = vunpack.c.h.b16 %v1003
    %v1493 = vunpack.c.l.b16 %v1004
    %v1494 = vunpack.c.h.b16 %v1004
    %v1495 = vunpack.c.l.b16 %v1005
    %v1496 = vunpack.c.h.b16 %v1005
    %v1497 = vunpack.c.l.b16 %v1006
    %v1498 = vunpack.c.h.b16 %v1006
    %v1499 = vunpack.c.l.b16 %v1007
    %v1500 = vunpack.c.h.b16 %v1007
    %v1501 = vunpack.c.l.b16 %v1008
    %v1502 = vunpack.c.h.b16 %v1008
    %v1503 = vunpack.c.l.b16 %v1009
    %v1504 = vunpack.c.h.b16 %v1009
    %v1505 = vunpack.c.l.b16 %v1010
    %v1506 = vunpack.c.h.b16 %v1010
    %v1507 = vunpack.c.l.b16 %v1011
    %v1508 = vunpack.c.h.b16 %v1011
    %v1509 = vunpack.c.l.b16 %v1012
    %v1510 = vunpack.c.h.b16 %v1012
    %v1511 = vunpack.c.l.b16 %v1013
    %v1512 = vunpack.c.h.b16 %v1013
    %v1513 = vunpack.c.l.b16 %v1014
    %v1514 = vunpack.c.h.b16 %v1014
    %v1515 = vunpack.c.l.b16 %v1015
    %v1516 = vunpack.c.h.b16 %v1015
    %v1517 = vunpack.c.l.b16 %v1016
    %v1518 = vunpack.c.h.b16 %v1016
    %v1519 = vunpack.c.l.b16 %v1017
    %v1520 = vunpack.c.h.b16 %v1017
    %v1521 = vunpack.c.l.b16 %v1018
    %v1522 = vunpack.c.h.b16 %v1018
    %v1523 = vunpack.c.l.b16 %v1019
    %v1524 = vunpack.c.h.b16 %v1019
    %v1525 = vunpack.c.l.b16 %v1020
    %v1526 = vunpack.c.h.b16 %v1020
    %v1527 = vunpack.c.l.b16 %v1021
    %v1528 = vunpack.c.h.b16 %v1021
    %v1529 = vunpack.c.l.b16 %v1022
    %v1530 = vunpack.c.h.b16 %v1022
    %v1531 = vunpack.c.l.b16 %v1023
    %v1532 = vunpack.c.h.b16 %v1023
    %v1533 = vunpack.c.l.b16 %v1024
    %v1534 = vunpack.c.h.b16 %v1024
    %v1535 = vunpack.c.l.b16 %v1025
    %v1536 = vunpack.c.h.b16 %v1025
    %v1537 = vunpack.c.l.b16 %v1026
    %v1538 = vunpack.c.h.b16 %v1026
    %v1539 = vunpack.c.l.b16 %v1027
    %v1540 = vunpack.c.h.b16 %v1027
    %v1541 = vunpack.c.l.b16 %v1028
    %v1542 = vunpack.c.h.b16 %v1028
    %v1543 = vunpack.c.l.b16 %v1029
    %v1544 = vunpack.c.h.b16 %v1029
    %v1545 = vunpack.c.l.b16 %v1030
    %v1546 = vunpack.c.h.b16 %v1030
    %v1547 = vunpack.c.l.b16 %v1031
    %v1548 = vunpack.c.h.b16 %v1031
    %v1549 = vunpack.c.l.b16 %v1032
    %v1550 = vunpack.c.h.b16 %v1032
    %v1551 = vunpack.c.l.b16 %v1033
    %v1552 = vunpack.c.h.b16 %v1033
    %v1553 = vunpack.c.l.b16 %v1034
    %v1554 = vunpack.c.h.b16 %v1034
    %v1555 = vunpack.c.l.b16 %v1035
    %v1556 = vunpack.c.h.b16 %v1035
    %v1557 = vunpack.c.l.b16 %v1036
    %v1558 = vunpack.c.h.b16 %v1036
    %v1559 = vunpack.c.l.b16 %v1037
    %v1560 = vunpack.c.h.b16 %v1037
    %v1561 = vunpack.c.l.b16 %v1038
    %v1562 = vunpack.c.h.b16 %v1038
    %v1563 = vunpack.c.l.b16 %v1039
    %v1564 = vunpack.c.h.b16 %v1039
    %v1565 = vunpack.c.l.b16 %v1040
    %v1566 = vunpack.c.h.b16 %v1040
    %v1567 = vunpack.c.l.b16 %v1041
    %v1568 = vunpack.c.h.b16 %v1041
    %v1569 = vunpack.c.l.b16 %v1042
    %v1570 = vunpack.c.h.b16 %v1042
    %v1571 = vunpack.c.l.b16 %v1043
    %v1572 = vunpack.c.h.b16 %v1043
    %v1573 = vunpack.c.l.b16 %v1044
    %v1574 = vunpack.c.h.b16 %v1044
    %v1575 = vunpack.c.l.b16 %v1045
    %v1576 = vunpack.c.h.b16 %v1045
    %v1577 = vunpack.c.l.b16 %v1046
    %v1578 = vunpack.c.h.b16 %v1046
    %v1579 = vunpack.c.l.b16 %v1047
    %v1580 = vunpack.c.h.b16 %v1047
    %v1581 = vunpack.c.l.b16 %v1048
    %v1582 = vunpack.c.h.b16 %v1048
    %v1583 = vunpack.c.l.b16 %v1049
    %v1584 = vunpack.c.h.b16 %v1049
    %v1585 = vunpack.c.l.b16 %v1050
    %v1586 = vunpack.c.h.b16 %v1050
    %v1587 = vunpack.c.l.b16 %v1051
    %v1588 = vunpack.c.h.b16 %v1051
    %v1589 = vunpack.c.l.b16 %v1052
    %v1590 = vunpack.c.h.b16 %v1052
    %v1591 = vunpack.c.l.b16 %v1053
    %v1592 = vunpack.c.h.b16 %v1053
    %v1593 = vunpack.c.l.b16 %v1054
    %v1594 = vunpack.c.h.b16 %v1054
    %v1595 = vunpack.c.l.b16 %v1055
    %v1596 = vunpack.c.h.b16 %v1055
    %v1597 = vunpack.c.l.b16 %v1056
    %v1598 = vunpack.c.h.b16 %v1056
    %v1599 = vunpack.c.l.b16 %v1057
    %v1600 = vunpack.c.h.b16 %v1057
    %v1601 = vunpack.c.l.b16 %v1058
    %v1602 = vunpack.c.h.b16 %v1058
    %v1603 = vunpack.c.l.b16 %v1059
    %v1604 = vunpack.c.h.b16 %v1059
    %v1605 = vunpack.c.l.b16 %v1060
    %v1606 = vunpack.c.h.b16 %v1060
    %v1607 = vunpack.c.l.b16 %v1061
    %v1608 = vunpack.c.h.b16 %v1061
    %v1609 = vunpack.c.l.b16 %v1062
    %v1610 = vunpack.c.h.b16 %v1062
    %v1611 = vunpack.c.l.b16 %v1063
    %v1612 = vunpack.c.h.b16 %v1063
    %v1613 = vunpack.c.l.b16 %v1064
    %v1614 = vunpack.c.h.b16 %v1064
    %v1615 = vunpack.c.l.b16 %v1065
    %v1616 = vunpack.c.h.b16 %v1065
    %v1617 = vunpack.c.l.b16 %v1066
    %v1618 = vunpack.c.h.b16 %v1066
    %v1619 = vunpack.c.l.b16 %v1067
    %v1620 = vunpack.c.h.b16 %v1067
    %v1621 = vunpack.c.l.b16 %v1068
    %v1622 = vunpack.c.h.b16 %v1068
    %v1623 = vunpack.c.l.b16 %v1069
    %v1624 = vunpack.c.h.b16 %v1069
    %v1625 = vunpack.c.l.b16 %v1070
    %v1626 = vunpack.c.h.b16 %v1070
    %v1627 = vunpack.c.l.b16 %v1071
    %v1628 = vunpack.c.h.b16 %v1071
    %v1629 = vunpack.c.l.b16 %v1072
    %v1630 = vunpack.c.h.b16 %v1072
    %v1631 = vunpack.c.l.b16 %v1073
    %v1632 = vunpack.c.h.b16 %v1073
    %v1633 = vunpack.c.l.b16 %v1074
    %v1634 = vunpack.c.h.b16 %v1074
    %v1635 = vunpack.c.l.b16 %v1075
    %v1636 = vunpack.c.h.b16 %v1075
    %v1637 = vunpack.c.l.b16 %v1076
    %v1638 = vunpack.c.h.b16 %v1076
    %v1639 = vunpack.c.l.b16 %v1077
    %v1640 = vunpack.c.h.b16 %v1077
    %v1641 = vunpack.c.l.b16 %v1078
    %v1642 = vunpack.c.h.b16 %v1078
    %v1643 = vunpack.c.l.b16 %v1079
    %v1644 = vunpack.c.h.b16 %v1079
    %v1645 = vunpack.c.l.b16 %v1080
    %v1646 = vunpack.c.h.b16 %v1080
    %v1647 = vunpack.c.l.b16 %v1081
    %v1648 = vunpack.c.h.b16 %v1081
    %v1649 = vunpack.c.l.b16 %v1082
    %v1650 = vunpack.c.h.b16 %v1082
    %v1651 = vunpack.c.l.b16 %v1083
    %v1652 = vunpack.c.h.b16 %v1083
    %v1653 = vunpack.c.l.b16 %v1084
    %v1654 = vunpack.c.h.b16 %v1084
    %v1655 = vunpack.c.l.b16 %v1085
    %v1656 = vunpack.c.h.b16 %v1085
    %v1657 = vunpack.c.l.b16 %v1086
    %v1658 = vunpack.c.h.b16 %v1086
    %v1659 = vunpack.c.l.b16 %v1087
    %v1660 = vunpack.c.h.b16 %v1087
    %v1661 = vunpack.c.l.b16 %v1088
    %v1662 = vunpack.c.h.b16 %v1088
    %v1663 = vunpack.c.l.b16 %v1089
    %v1664 = vunpack.c.h.b16 %v1089
    %v1665 = vunpack.c.l.b16 %v1090
    %v1666 = vunpack.c.h.b16 %v1090
    %v1667 = vunpack.c.l.b16 %v1091
    %v1668 = vunpack.c.h.b16 %v1091
    %v1669 = vunpack.c.l.b16 %v1092
    %v1670 = vunpack.c.h.b16 %v1092
    %v1671 = vunpack.c.l.b16 %v1093
    %v1672 = vunpack.c.h.b16 %v1093
    %v1673 = vunpack.c.l.b16 %v1094
    %v1674 = vunpack.c.h.b16 %v1094
    %v1675 = vunpack.c.l.b16 %v1095
    %v1676 = vunpack.c.h.b16 %v1095
    %v1677 = vunpack.c.l.b16 %v1096
    %v1678 = vunpack.c.h.b16 %v1096
    %v1679 = vunpack.c.l.b16 %v1097
    %v1680 = vunpack.c.h.b16 %v1097
    %v1681 = vunpack.c.l.b16 %v1098
    %v1682 = vunpack.c.h.b16 %v1098
    %v1683 = vunpack.c.l.b16 %v1099
    %v1684 = vunpack.c.h.b16 %v1099
    %v1685 = vunpack.c.l.b16 %v1100
    %v1686 = vunpack.c.h.b16 %v1100
    %v1687 = vunpack.c.l.b16 %v1101
    %v1688 = vunpack.c.h.b16 %v1101
    %v1689 = vunpack.c.l.b16 %v1102
    %v1690 = vunpack.c.h.b16 %v1102
    %v1691 = vunpack.c.l.b16 %v1103
    %v1692 = vunpack.c.h.b16 %v1103
    %v1693 = vunpack.c.l.b16 %v1104
    %v1694 = vunpack.c.h.b16 %v1104
    %v1695 = vunpack.c.l.b16 %v1105
    %v1696 = vunpack.c.h.b16 %v1105
    %v1697 = vunpack.c.l.b16 %v1106
    %v1698 = vunpack.c.h.b16 %v1106
    %v1699 = vunpack.c.l.b16 %v1107
    %v1700 = vunpack.c.h.b16 %v1107
    %v1701 = vunpack.c.l.b16 %v1108
    %v1702 = vunpack.c.h.b16 %v1108
    %v1703 = vunpack.c.l.b16 %v1109
    %v1704 = vunpack.c.h.b16 %v1109
    %v1705 = vunpack.c.l.b16 %v1110
    %v1706 = vunpack.c.h.b16 %v1110
    %v1707 = vunpack.c.l.b16 %v1111
    %v1708 = vunpack.c.h.b16 %v1111
    %v1709 = vunpack.c.l.b16 %v1112
    %v1710 = vunpack.c.h.b16 %v1112
    %v1711 = vunpack.c.l.b16 %v1113
    %v1712 = vunpack.c.h.b16 %v1113
    %v1713 = vunpack.c.l.b16 %v1114
    %v1714 = vunpack.c.h.b16 %v1114
    %v1715 = vunpack.c.l.b16 %v1115
    %v1716 = vunpack.c.h.b16 %v1115
    %v1717 = vunpack.c.l.b16 %v1116
    %v1718 = vunpack.c.h.b16 %v1116
    %v1719 = vunpack.c.l.b16 %v1117
    %v1720 = vunpack.c.h.b16 %v1117
    %v1721 = vunpack.c.l.b16 %v1118
    %v1722 = vunpack.c.h.b16 %v1118
    %v1723 = vunpack.c.l.b16 %v1119
    %v1724 = vunpack.c.h.b16 %v1119
    %v1725 = vunpack.c.l.b16 %v1120
    %v1726 = vunpack.c.h.b16 %v1120
    %v1727 = vunpack.c.l.b16 %v1121
    %v1728 = vunpack.c.h.b16 %v1121
    %v1729 = vpack.c.b16 %v1349, %v1345
    %v1730 = vpack.c.b16 %v1350, %v1346
    %v1731 = vpack.c.b16 %v1351, %v1347
    %v1732 = vpack.c.b16 %v1352, %v1348
    %v1733 = vpack.c.b16 %v1357, %v1353
    %v1734 = vpack.c.b16 %v1358, %v1354
    %v1735 = vpack.c.b16 %v1359, %v1355
    %v1736 = vpack.c.b16 %v1360, %v1356
    %v1737 = vpack.c.b16 %v1365, %v1361
    %v1738 = vpack.c.b16 %v1366, %v1362
    %v1739 = vpack.c.b16 %v1367, %v1363
    %v1740 = vpack.c.b16 %v1368, %v1364
    %v1741 = vpack.c.b16 %v1373, %v1369
    %v1742 = vpack.c.b16 %v1374, %v1370
    %v1743 = vpack.c.b16 %v1375, %v1371
    %v1744 = vpack.c.b16 %v1376, %v1372
    %v1745 = vpack.c.b16 %v1381, %v1377
    %v1746 = vpack.c.b16 %v1382, %v1378
    %v1747 = vpack.c.b16 %v1383, %v1379
    %v1748 = vpack.c.b16 %v1384, %v1380
    %v1749 = vpack.c.b16 %v1389, %v1385
    %v1750 = vpack.c.b16 %v1390, %v1386
    %v1751 = vpack.c.b16 %v1391, %v1387
    %v1752 = vpack.c.b16 %v1392, %v1388
    %v1753 = vpack.c.b16 %v1397, %v1393
    %v1754 = vpack.c.b16 %v1398, %v1394
    %v1755 = vpack.c.b16 %v1399, %v1395
    %v1756 = vpack.c.b16 %v1400, %v1396
    %v1757 = vpack.c.b16 %v1405, %v1401
    %v1758 = vpack.c.b16 %v1406, %v1402
    %v1759 = vpack.c.b16 %v1407, %v1403
    %v1760 = vpack.c.b16 %v1408, %v1404
    %v1761 = vpack.c.b16 %v1413, %v1409
    %v1762 = vpack.c.b16 %v1414, %v1410
    %v1763 = vpack.c.b16 %v1415, %v1411
    %v1764 = vpack.c.b16 %v1416, %v1412
    %v1765 = vpack.c.b16 %v1421, %v1417
    %v1766 = vpack.c.b16 %v1422, %v1418
    %v1767 = vpack.c.b16 %v1423, %v1419
    %v1768 = vpack.c.b16 %v1424, %v1420
    %v1769 = vpack.c.b16 %v1429, %v1425
    %v1770 = vpack.c.b16 %v1430, %v1426
    %v1771 = vpack.c.b16 %v1431, %v1427
    %v1772 = vpack.c.b16 %v1432, %v1428
    %v1773 = vpack.c.b16 %v1437, %v1433
    %v1774 = vpack.c.b16 %v1438, %v1434
    %v1775 = vpack.c.b16 %v1439, %v1435
    %v1776 = vpack.c.b16 %v1440, %v1436
    %v1777 = vpack.c.b16 %v1445, %v1441
    %v1778 = vpack.c.b16 %v1446, %v1442
    %v1779 = vpack.c.b16 %v1447, %v1443
    %v1780 = vpack.c.b16 %v1448, %v1444
    %v1781 = vpack.c.b16 %v1453, %v1449
    %v1782 = vpack.c.b16 %v1454, %v1450
    %v1783 = vpack.c.b16 %v1455, %v1451
    %v1784 = vpack.c.b16 %v1456, %v1452
    %v1785 = vpack.c.b16 %v1461, %v1457
    %v1786 = vpack.c.b16 %v1462, %v1458
    %v1787 = vpack.c.b16 %v1463, %v1459
    %v1788 = vpack.c.b16 %v1464, %v1460
    %v1789 = vpack.c.b16 %v1469, %v1465
    %v1790 = vpack.c.b16 %v1470, %v1466
    %v1791 = vpack.c.b16 %v1471, %v1467
    %v1792 = vpack.c.b16 %v1472, %v1468
    %v1793 = vpack.c.b16 %v1477, %v1473
    %v1794 = vpack.c.b16 %v1478, %v1474
    %v1795 = vpack.c.b16 %v1479, %v1475
    %v1796 = vpack.c.b16 %v1480, %v1476
    %v1797 = vpack.c.b16 %v1485, %v1481
    %v1798 = vpack.c.b16 %v1486, %v1482
    %v1799 = vpack.c.b16 %v1487, %v1483
    %v1800 = vpack.c.b16 %v1488, %v1484
    %v1801 = vpack.c.b16 %v1493, %v1489
    %v1802 = vpack.c.b16 %v1494, %v1490
    %v1803 = vpack.c.b16 %v1495, %v1491
    %v1804 = vpack.c.b16 %v1496, %v1492
    %v1805 = vpack.c.b16 %v1501, %v1497
    %v1806 = vpack.c.b16 %v1502, %v1498
    %v1807 = vpack.c.b16 %v1503, %v1499
    %v1808 = vpack.c.b16 %v1504, %v1500
    %v1809 = vpack.c.b16 %v1509, %v1505
    %v1810 = vpack.c.b16 %v1510, %v1506
    %v1811 = vpack.c.b16 %v1511, %v1507
    %v1812 = vpack.c.b16 %v1512, %v1508
    %v1813 = vpack.c.b16 %v1517, %v1513
    %v1814 = vpack.c.b16 %v1518, %v1514
    %v1815 = vpack.c.b16 %v1519, %v1515
    %v1816 = vpack.c.b16 %v1520, %v1516
    %v1817 = vpack.c.b16 %v1525, %v1521
    %v1818 = vpack.c.b16 %v1526, %v1522
    %v1819 = vpack.c.b16 %v1527, %v1523
    %v1820 = vpack.c.b16 %v1528, %v1524
    %v1821 = vpack.c.b16 %v1533, %v1529
    %v1822 = vpack.c.b16 %v1534, %v1530
    %v1823 = vpack.c.b16 %v1535, %v1531
    %v1824 = vpack.c.b16 %v1536, %v1532
    %v1825 = vpack.c.b16 %v1541, %v1537
    %v1826 = vpack.c.b16 %v1542, %v1538
    %v1827 = vpack.c.b16 %v1543, %v1539
    %v1828 = vpack.c.b16 %v1544, %v1540
    %v1829 = vpack.c.b16 %v1549, %v1545
    %v1830 = vpack.c.b16 %v1550, %v1546
    %v1831 = vpack.c.b16 %v1551, %v1547
    %v1832 = vpack.c.b16 %v1552, %v1548
    %v1833 = vpack.c.b16 %v1557, %v1553
    %v1834 = vpack.c.b16 %v1558, %v1554
    %v1835 = vpack.c.b16 %v1559, %v1555
    %v1836 = vpack.c.b16 %v1560, %v1556
    %v1837 = vpack.c.b16 %v1565, %v1561
    %v1838 = vpack.c.b16 %v1566, %v1562
    %v1839 = vpack.c.b16 %v1567, %v1563
    %v1840 = vpack.c.b16 %v1568, %v1564
    %v1841 = vpack.c.b16 %v1573, %v1569
    %v1842 = vpack.c.b16 %v1574, %v1570
    %v1843 = vpack.c.b16 %v1575, %v1571
    %v1844 = vpack.c.b16 %v1576, %v1572
    %v1845 = vpack.c.b16 %v1581, %v1577
    %v1846 = vpack.c.b16 %v1582, %v1578
    %v1847 = vpack.c.b16 %v1583, %v1579
    %v1848 = vpack.c.b16 %v1584, %v1580
    %v1849 = vpack.c.b16 %v1589, %v1585
    %v1850 = vpack.c.b16 %v1590, %v1586
    %v1851 = vpack.c.b16 %v1591, %v1587
    %v1852 = vpack.c.b16 %v1592, %v1588
    %v1853 = vpack.c.b16 %v1597, %v1593
    %v1854 = vpack.c.b16 %v1598, %v1594
    %v1855 = vpack.c.b16 %v1599, %v1595
    %v1856 = vpack.c.b16 %v1600, %v1596
    %v1857 = vpack.c.b16 %v1605, %v1601
    %v1858 = vpack.c.b16 %v1606, %v1602
    %v1859 = vpack.c.b16 %v1607, %v1603
    %v1860 = vpack.c.b16 %v1608, %v1604
    %v1861 = vpack.c.b16 %v1613, %v1609
    %v1862 = vpack.c.b16 %v1614, %v1610
    %v1863 = vpack.c.b16 %v1615, %v1611
    %v1864 = vpack.c.b16 %v1616, %v1612
    %v1865 = vpack.c.b16 %v1621, %v1617
    %v1866 = vpack.c.b16 %v1622, %v1618
    %v1867 = vpack.c.b16 %v1623, %v1619
    %v1868 = vpack.c.b16 %v1624, %v1620
    %v1869 = vpack.c.b16 %v1629, %v1625
    %v1870 = vpack.c.b16 %v1630, %v1626
    %v1871 = vpack.c.b16 %v1631, %v1627
    %v1872 = vpack.c.b16 %v1632, %v1628
    %v1873 = vpack.c.b16 %v1637, %v1633
    %v1874 = vpack.c.b16 %v1638, %v1634
    %v1875 = vpack.c.b16 %v1639, %v1635
    %v1876 = vpack.c.b16 %v1640, %v1636
    %v1877 = vpack.c.b16 %v1645, %v1641
    %v1878 = vpack.c.b16 %v1646, %v1642
    %v1879 = vpack.c.b16 %v1647, %v1643
    %v1880 = vpack.c.b16 %v1648, %v1644
    %v1881 = vpack.c.b16 %v1653, %v1649
    %v1882 = vpack.c.b16 %v1654, %v1650
    %v1883 = vpack.c.b16 %v1655, %v1651
    %v1884 = vpack.c.b16 %v1656, %v1652
    %v1885 = vpack.c.b16 %v1661, %v1657
    %v1886 = vpack.c.b16 %v1662, %v1658
    %v1887 = vpack.c.b16 %v1663, %v1659
    %v1888 = vpack.c.b16 %v1664, %v1660
    %v1889 = vpack.c.b16 %v1669, %v1665
    %v1890 = vpack.c.b16 %v1670, %v1666
    %v1891 = vpack.c.b16 %v1671, %v1667
    %v1892 = vpack.c.b16 %v1672, %v1668
    %v1893 = vpack.c.b16 %v1677, %v1673
    %v1894 = vpack.c.b16 %v1678, %v1674
    %v1895 = vpack.c.b16 %v1679, %v1675
    %v1896 = vpack.c.b16 %v1680, %v1676
    %v1897 = vpack.c.b16 %v1685, %v1681
    %v1898 = vpack.c.b16 %v1686, %v1682
    %v1899 = vpack.c.b16 %v1687, %v1683
    %v1900 = vpack.c.b16 %v1688, %v1684
    %v1901 = vpack.c.b16 %v1693, %v1689
    %v1902 = vpack.c.b16 %v1694, %v1690
    %v1903 = vpack.c.b16 %v1695, %v1691
    %v1904 = vpack.c.b16 %v1696, %v1692
    %v1905 = vpack.c.b16 %v1701, %v1697
    %v1906 = vpack.c.b16 %v1702, %v1698
    %v1907 = vpack.c.b16 %v1703, %v1699
    %v1908 = vpack.c.b16 %v1704, %v1700
    %v1909 = vpack.c.b16 %v1709, %v1705
    %v1910 = vpack.c.b16 %v1710, %v1706
    %v1911 = vpack.c.b16 %v1711, %v1707
    %v1912 = vpack.c.b16 %v1712, %v1708
    %v1913 = vpack.c.b16 %v1717, %v1713
    %v1914 = vpack.c.b16 %v1718, %v1714
    %v1915 = vpack.c.b16 %v1719, %v1715
    %v1916 = vpack.c.b16 %v1720, %v1716
    %v1917 = vpack.c.b16 %v1725, %v1721
    %v1918 = vpack.c.b16 %v1726, %v1722
    %v1919 = vpack.c.b16 %v1727, %v1723
    %v1920 = vpack.c.b16 %v1728, %v1724
    %2113 = vmatprep.subr.bf16.mxu0 %v1758
    %2114 = vmatpush1.bf16.msra.mxu0 %v1757
    %2115 = vmatprep.subr.bf16.mxu0 %v1754
    %2116 = vmatpush1.bf16.msra.mxu0 %v1753
    %2117 = vmatprep.subr.bf16.mxu0 %v1750
    %2118 = vmatpush1.bf16.msra.mxu0 %v1749
    %2119 = vmatprep.subr.bf16.mxu0 %v1746
    %2120 = vmatpush1.bf16.msra.mxu0 %v1745
    %2121 = vmatprep.subr.bf16.mxu0 %v1742
    %2122 = vmatpush1.bf16.msra.mxu0 %v1741
    %2123 = vmatprep.subr.bf16.mxu0 %v1738
    %2124 = vmatpush1.bf16.msra.mxu0 %v1737
    %2125 = vmatprep.subr.bf16.mxu0 %v1734
    %2126 = vmatpush1.bf16.msra.mxu0 %v1733
    %2127 = vmatprep.subr.bf16.mxu0 %v1730
    %2128 = vmatpush1.bf16.msra.mxu0 %v1729
    %2129 = vmatprep.subr.bf16.mxu0 %v1790
    %2130 = vmatpush2.bf16.msra.mxu0 %v1789
    %2131 = vmatprep.subr.bf16.mxu0 %v1786
    %2132 = vmatpush2.bf16.msra.mxu0 %v1785
    %2133 = vmatprep.subr.bf16.mxu0 %v1782
    %2134 = vmatpush2.bf16.msra.mxu0 %v1781
    %2135 = vmatprep.subr.bf16.mxu0 %v1778
    %2136 = vmatpush2.bf16.msra.mxu0 %v1777
    %2137 = vmatprep.subr.bf16.mxu0 %v1774
    %2138 = vmatpush2.bf16.msra.mxu0 %v1773
    %2139 = vmatprep.subr.bf16.mxu0 %v1770
    %2140 = vmatpush2.bf16.msra.mxu0 %v1769
    %2141 = vmatprep.subr.bf16.mxu0 %v1766
    %2142 = vmatpush2.bf16.msra.mxu0 %v1765
    %2143 = vmatprep.subr.bf16.mxu0 %v1762
    %2144 = vmatpush2.bf16.msra.mxu0 %v1761
    %2145 = vmatprep.mubr.bf16.mxu0 %v1123
    %2146 = vmatmul.mubr.bf16.gmra.mxu0 %v1122
    %v2147 = vpop.f32.mrf.mxu0
    %v2148 = vadd.f32 0.0, %v2147
    %v2149 = vpop.f32.mrf.mxu0
    %v2150 = vadd.f32 0.0, %v2149
    %v2151 = vpop.f32.mrf.mxu0
    %v2152 = vadd.f32 0.0, %v2151
    %v2153 = vpop.f32.mrf.mxu0
    %v2154 = vadd.f32 0.0, %v2153
    %2155 = vmatprep.mubr.bf16.mxu0 %v1129
    %2156 = vmatmul.mubr.bf16.gmra.mxu0 %v1128
    %v2157 = vpop.f32.mrf.mxu0
    %v2158 = vadd.f32 0.0, %v2157
    %v2159 = vpop.f32.mrf.mxu0
    %v2160 = vadd.f32 0.0, %v2159
    %v2161 = vpop.f32.mrf.mxu0
    %v2162 = vadd.f32 0.0, %v2161
    %v2163 = vpop.f32.mrf.mxu0
    %v2164 = vadd.f32 0.0, %v2163
    %2165 = vmatprep.mubr.bf16.mxu0 %v1135
    %2166 = vmatmul.mubr.bf16.gmra.mxu0 %v1134
    %v2167 = vpop.f32.mrf.mxu0
    %v2168 = vadd.f32 0.0, %v2167
    %v2169 = vpop.f32.mrf.mxu0
    %v2170 = vadd.f32 0.0, %v2169
    %v2171 = vpop.f32.mrf.mxu0
    %v2172 = vadd.f32 0.0, %v2171
    %v2173 = vpop.f32.mrf.mxu0
    %v2174 = vadd.f32 0.0, %v2173
    %2175 = vmatprep.mubr.bf16.mxu0 %v1141
    %2176 = vmatmul.mubr.bf16.gmra.mxu0 %v1140
    %v2177 = vpop.f32.mrf.mxu0
    %v2178 = vadd.f32 0.0, %v2177
    %v2179 = vpop.f32.mrf.mxu0
    %v2180 = vadd.f32 0.0, %v2179
    %v2181 = vpop.f32.mrf.mxu0
    %v2182 = vpop.f32.mrf.mxu0
    %2183 = vdwg.mxu0
    %2184 = vmatprep.subr.bf16.mxu0 %v1822
    %2185 = vmatpush1.bf16.msra.mxu0 %v1821
    %2186 = vmatprep.subr.bf16.mxu0 %v1818
    %2187 = vmatpush1.bf16.msra.mxu0 %v1817
    %2188 = vmatprep.subr.bf16.mxu0 %v1814
    %2189 = vmatpush1.bf16.msra.mxu0 %v1813
    %2190 = vmatprep.subr.bf16.mxu0 %v1810
    %2191 = vmatpush1.bf16.msra.mxu0 %v1809
    %2192 = vmatprep.subr.bf16.mxu0 %v1806
    %2193 = vmatpush1.bf16.msra.mxu0 %v1805
    %2194 = vmatprep.subr.bf16.mxu0 %v1802
    %2195 = vmatpush1.bf16.msra.mxu0 %v1801
    %2196 = vmatprep.subr.bf16.mxu0 %v1798
    %2197 = vmatpush1.bf16.msra.mxu0 %v1797
    %2198 = vmatprep.subr.bf16.mxu0 %v1794
    %2199 = vmatpush1.bf16.msra.mxu0 %v1793
    %2200 = vmatprep.subr.bf16.mxu0 %v1854
    %2201 = vmatpush2.bf16.msra.mxu0 %v1853
    %2202 = vmatprep.subr.bf16.mxu0 %v1850
    %2203 = vmatpush2.bf16.msra.mxu0 %v1849
    %2204 = vmatprep.subr.bf16.mxu0 %v1846
    %2205 = vmatpush2.bf16.msra.mxu0 %v1845
    %2206 = vmatprep.subr.bf16.mxu0 %v1842
    %2207 = vmatpush2.bf16.msra.mxu0 %v1841
    %2208 = vmatprep.subr.bf16.mxu0 %v1838
    %2209 = vmatpush2.bf16.msra.mxu0 %v1837
    %2210 = vmatprep.subr.bf16.mxu0 %v1834
    %2211 = vmatpush2.bf16.msra.mxu0 %v1833
    %2212 = vmatprep.subr.bf16.mxu0 %v1830
    %2213 = vmatpush2.bf16.msra.mxu0 %v1829
    %2214 = vmatprep.subr.bf16.mxu0 %v1826
    %2215 = vmatpush2.bf16.msra.mxu0 %v1825
    %2216 = vmatprep.mubr.bf16.mxu0 %v1125
    %2217 = vmatmul.mubr.bf16.gmra.mxu0 %v1124
    %v2218 = vpop.f32.mrf.mxu0
    %v2219 = vadd.f32 %v2148, %v2218
    %v2220 = vpop.f32.mrf.mxu0
    %v2221 = vadd.f32 %v2150, %v2220
    %v2222 = vpop.f32.mrf.mxu0
    %v2223 = vadd.f32 %v2152, %v2222
    %v2224 = vpop.f32.mrf.mxu0
    %v2225 = vadd.f32 %v2154, %v2224
    %2226 = vmatprep.mubr.bf16.mxu0 %v1131
    %2227 = vmatmul.mubr.bf16.gmra.mxu0 %v1130
    %v2228 = vpop.f32.mrf.mxu0
    %v2229 = vadd.f32 %v2158, %v2228
    %v2230 = vpop.f32.mrf.mxu0
    %v2231 = vadd.f32 %v2160, %v2230
    %v2232 = vpop.f32.mrf.mxu0
    %v2233 = vadd.f32 %v2162, %v2232
    %v2234 = vpop.f32.mrf.mxu0
    %v2235 = vadd.f32 %v2164, %v2234
    %2236 = vmatprep.mubr.bf16.mxu0 %v1137
    %2237 = vmatmul.mubr.bf16.gmra.mxu0 %v1136
    %v2238 = vpop.f32.mrf.mxu0
    %v2239 = vadd.f32 %v2168, %v2238
    %v2240 = vpop.f32.mrf.mxu0
    %v2241 = vadd.f32 %v2170, %v2240
    %v2242 = vpop.f32.mrf.mxu0
    %v2243 = vadd.f32 %v2172, %v2242
    %v2244 = vpop.f32.mrf.mxu0
    %v2245 = vadd.f32 %v2174, %v2244
    %2246 = vmatprep.mubr.bf16.mxu0 %v1143
    %2247 = vmatmul.mubr.bf16.gmra.mxu0 %v1142
    %v2248 = vpop.f32.mrf.mxu0
    %v2249 = vadd.f32 %v2178, %v2248
    %v2250 = vpop.f32.mrf.mxu0
    %v2251 = vadd.f32 %v2180, %v2250
    %v2252 = vpop.f32.mrf.mxu0
    %v2253 = vpop.f32.mrf.mxu0
    %2254 = vdwg.mxu0
    %2255 = vmatprep.subr.bf16.mxu0 %v1886
    %2256 = vmatpush1.bf16.msra.mxu0 %v1885
    %2257 = vmatprep.subr.bf16.mxu0 %v1882
    %2258 = vmatpush1.bf16.msra.mxu0 %v1881
    %2259 = vmatprep.subr.bf16.mxu0 %v1878
    %2260 = vmatpush1.bf16.msra.mxu0 %v1877
    %2261 = vmatprep.subr.bf16.mxu0 %v1874
    %2262 = vmatpush1.bf16.msra.mxu0 %v1873
    %2263 = vmatprep.subr.bf16.mxu0 %v1870
    %2264 = vmatpush1.bf16.msra.mxu0 %v1869
    %2265 = vmatprep.subr.bf16.mxu0 %v1866
    %2266 = vmatpush1.bf16.msra.mxu0 %v1865
    %2267 = vmatprep.subr.bf16.mxu0 %v1862
    %2268 = vmatpush1.bf16.msra.mxu0 %v1861
    %2269 = vmatprep.subr.bf16.mxu0 %v1858
    %2270 = vmatpush1.bf16.msra.mxu0 %v1857
    %2271 = vmatprep.subr.bf16.mxu0 %v1918
    %2272 = vmatpush2.bf16.msra.mxu0 %v1917
    %2273 = vmatprep.subr.bf16.mxu0 %v1914
    %2274 = vmatpush2.bf16.msra.mxu0 %v1913
    %2275 = vmatprep.subr.bf16.mxu0 %v1910
    %2276 = vmatpush2.bf16.msra.mxu0 %v1909
    %2277 = vmatprep.subr.bf16.mxu0 %v1906
    %2278 = vmatpush2.bf16.msra.mxu0 %v1905
    %2279 = vmatprep.subr.bf16.mxu0 %v1902
    %2280 = vmatpush2.bf16.msra.mxu0 %v1901
    %2281 = vmatprep.subr.bf16.mxu0 %v1898
    %2282 = vmatpush2.bf16.msra.mxu0 %v1897
    %2283 = vmatprep.subr.bf16.mxu0 %v1894
    %2284 = vmatpush2.bf16.msra.mxu0 %v1893
    %2285 = vmatprep.subr.bf16.mxu0 %v1890
    %2286 = vmatpush2.bf16.msra.mxu0 %v1889
    %2287 = vmatprep.mubr.bf16.mxu0 %v1127
    %2288 = vmatmul.mubr.bf16.gmra.mxu0 %v1126
    %v2289 = vpop.f32.mrf.mxu0
    %v2290 = vadd.f32 %v2219, %v2289
    %v2291 = vpop.f32.mrf.mxu0
    %v2292 = vadd.f32 %v2221, %v2291
    %v2293 = vpop.f32.mrf.mxu0
    %v2294 = vadd.f32 %v2223, %v2293
    %v2295 = vpop.f32.mrf.mxu0
    %v2296 = vadd.f32 %v2225, %v2295
    %2297 = vmatprep.mubr.bf16.mxu0 %v1133
    %2298 = vmatmul.mubr.bf16.gmra.mxu0 %v1132
    %v2299 = vpop.f32.mrf.mxu0
    %v2300 = vadd.f32 %v2229, %v2299
    %v2301 = vpop.f32.mrf.mxu0
    %v2302 = vadd.f32 %v2231, %v2301
    %v2303 = vpop.f32.mrf.mxu0
    %v2304 = vadd.f32 %v2233, %v2303
    %v2305 = vpop.f32.mrf.mxu0
    %v2306 = vadd.f32 %v2235, %v2305
    %2307 = vmatprep.mubr.bf16.mxu0 %v1139
    %2308 = vmatmul.mubr.bf16.gmra.mxu0 %v1138
    %v2309 = vpop.f32.mrf.mxu0
    %v2310 = vadd.f32 %v2239, %v2309
    %v2311 = vpop.f32.mrf.mxu0
    %v2312 = vadd.f32 %v2241, %v2311
    %v2313 = vpop.f32.mrf.mxu0
    %v2314 = vadd.f32 %v2243, %v2313
    %v2315 = vpop.f32.mrf.mxu0
    %v2316 = vadd.f32 %v2245, %v2315
    %2317 = vmatprep.mubr.bf16.mxu0 %v1145
    %2318 = vmatmul.mubr.bf16.gmra.mxu0 %v1144
    %v2319 = vpop.f32.mrf.mxu0
    %v2320 = vadd.f32 %v2249, %v2319
    %v2321 = vpop.f32.mrf.mxu0
    %v2322 = vadd.f32 %v2251, %v2321
    %v2323 = vpop.f32.mrf.mxu0
    %v2324 = vpop.f32.mrf.mxu0
    %2325 = vdwg.mxu0
    %2326 = vmatprep.subr.bf16.mxu0 %v1760
    %2327 = vmatpush1.bf16.msra.mxu0 %v1759
    %2328 = vmatprep.subr.bf16.mxu0 %v1756
    %2329 = vmatpush1.bf16.msra.mxu0 %v1755
    %2330 = vmatprep.subr.bf16.mxu0 %v1752
    %2331 = vmatpush1.bf16.msra.mxu0 %v1751
    %2332 = vmatprep.subr.bf16.mxu0 %v1748
    %2333 = vmatpush1.bf16.msra.mxu0 %v1747
    %2334 = vmatprep.subr.bf16.mxu0 %v1744
    %2335 = vmatpush1.bf16.msra.mxu0 %v1743
    %2336 = vmatprep.subr.bf16.mxu0 %v1740
    %2337 = vmatpush1.bf16.msra.mxu0 %v1739
    %2338 = vmatprep.subr.bf16.mxu0 %v1736
    %2339 = vmatpush1.bf16.msra.mxu0 %v1735
    %2340 = vmatprep.subr.bf16.mxu0 %v1732
    %2341 = vmatpush1.bf16.msra.mxu0 %v1731
    %2342 = vmatprep.subr.bf16.mxu0 %v1792
    %2343 = vmatpush2.bf16.msra.mxu0 %v1791
    %2344 = vmatprep.subr.bf16.mxu0 %v1788
    %2345 = vmatpush2.bf16.msra.mxu0 %v1787
    %2346 = vmatprep.subr.bf16.mxu0 %v1784
    %2347 = vmatpush2.bf16.msra.mxu0 %v1783
    %2348 = vmatprep.subr.bf16.mxu0 %v1780
    %2349 = vmatpush2.bf16.msra.mxu0 %v1779
    %2350 = vmatprep.subr.bf16.mxu0 %v1776
    %2351 = vmatpush2.bf16.msra.mxu0 %v1775
    %2352 = vmatprep.subr.bf16.mxu0 %v1772
    %2353 = vmatpush2.bf16.msra.mxu0 %v1771
    %2354 = vmatprep.subr.bf16.mxu0 %v1768
    %2355 = vmatpush2.bf16.msra.mxu0 %v1767
    %2356 = vmatprep.subr.bf16.mxu0 %v1764
    %2357 = vmatpush2.bf16.msra.mxu0 %v1763
    %2358 = vmatprep.mubr.bf16.mxu0 %v1123
    %2359 = vmatmul.mubr.bf16.gmra.mxu0 %v1122
    %v2360 = vpop.f32.mrf.mxu0
    %v2361 = vadd.f32 0.0, %v2360
    %v2362 = vpop.f32.mrf.mxu0
    %v2363 = vadd.f32 0.0, %v2362
    %v2364 = vpop.f32.mrf.mxu0
    %v2365 = vadd.f32 0.0, %v2364
    %v2366 = vpop.f32.mrf.mxu0
    %v2367 = vadd.f32 0.0, %v2366
    %2368 = vmatprep.mubr.bf16.mxu0 %v1129
    %2369 = vmatmul.mubr.bf16.gmra.mxu0 %v1128
    %v2370 = vpop.f32.mrf.mxu0
    %v2371 = vadd.f32 0.0, %v2370
    %v2372 = vpop.f32.mrf.mxu0
    %v2373 = vadd.f32 0.0, %v2372
    %v2374 = vpop.f32.mrf.mxu0
    %v2375 = vadd.f32 0.0, %v2374
    %v2376 = vpop.f32.mrf.mxu0
    %v2377 = vadd.f32 0.0, %v2376
    %2378 = vmatprep.mubr.bf16.mxu0 %v1135
    %2379 = vmatmul.mubr.bf16.gmra.mxu0 %v1134
    %v2380 = vpop.f32.mrf.mxu0
    %v2381 = vadd.f32 0.0, %v2380
    %v2382 = vpop.f32.mrf.mxu0
    %v2383 = vadd.f32 0.0, %v2382
    %v2384 = vpop.f32.mrf.mxu0
    %v2385 = vadd.f32 0.0, %v2384
    %v2386 = vpop.f32.mrf.mxu0
    %v2387 = vadd.f32 0.0, %v2386
    %2388 = vmatprep.mubr.bf16.mxu0 %v1141
    %2389 = vmatmul.mubr.bf16.gmra.mxu0 %v1140
    %v2390 = vpop.f32.mrf.mxu0
    %v2391 = vadd.f32 0.0, %v2390
    %v2392 = vpop.f32.mrf.mxu0
    %v2393 = vadd.f32 0.0, %v2392
    %v2394 = vpop.f32.mrf.mxu0
    %v2395 = vpop.f32.mrf.mxu0
    %2396 = vdwg.mxu0
    %2397 = vmatprep.subr.bf16.mxu0 %v1824
    %2398 = vmatpush1.bf16.msra.mxu0 %v1823
    %2399 = vmatprep.subr.bf16.mxu0 %v1820
    %2400 = vmatpush1.bf16.msra.mxu0 %v1819
    %2401 = vmatprep.subr.bf16.mxu0 %v1816
    %2402 = vmatpush1.bf16.msra.mxu0 %v1815
    %2403 = vmatprep.subr.bf16.mxu0 %v1812
    %2404 = vmatpush1.bf16.msra.mxu0 %v1811
    %2405 = vmatprep.subr.bf16.mxu0 %v1808
    %2406 = vmatpush1.bf16.msra.mxu0 %v1807
    %2407 = vmatprep.subr.bf16.mxu0 %v1804
    %2408 = vmatpush1.bf16.msra.mxu0 %v1803
    %2409 = vmatprep.subr.bf16.mxu0 %v1800
    %2410 = vmatpush1.bf16.msra.mxu0 %v1799
    %2411 = vmatprep.subr.bf16.mxu0 %v1796
    %2412 = vmatpush1.bf16.msra.mxu0 %v1795
    %2413 = vmatprep.subr.bf16.mxu0 %v1856
    %2414 = vmatpush2.bf16.msra.mxu0 %v1855
    %2415 = vmatprep.subr.bf16.mxu0 %v1852
    %2416 = vmatpush2.bf16.msra.mxu0 %v1851
    %2417 = vmatprep.subr.bf16.mxu0 %v1848
    %2418 = vmatpush2.bf16.msra.mxu0 %v1847
    %2419 = vmatprep.subr.bf16.mxu0 %v1844
    %2420 = vmatpush2.bf16.msra.mxu0 %v1843
    %2421 = vmatprep.subr.bf16.mxu0 %v1840
    %2422 = vmatpush2.bf16.msra.mxu0 %v1839
    %2423 = vmatprep.subr.bf16.mxu0 %v1836
    %2424 = vmatpush2.bf16.msra.mxu0 %v1835
    %2425 = vmatprep.subr.bf16.mxu0 %v1832
    %2426 = vmatpush2.bf16.msra.mxu0 %v1831
    %2427 = vmatprep.subr.bf16.mxu0 %v1828
    %2428 = vmatpush2.bf16.msra.mxu0 %v1827
    %2429 = vmatprep.mubr.bf16.mxu0 %v1125
    %2430 = vmatmul.mubr.bf16.gmra.mxu0 %v1124
    %v2431 = vpop.f32.mrf.mxu0
    %v2432 = vadd.f32 %v2361, %v2431
    %v2433 = vpop.f32.mrf.mxu0
    %v2434 = vadd.f32 %v2363, %v2433
    %v2435 = vpop.f32.mrf.mxu0
    %v2436 = vadd.f32 %v2365, %v2435
    %v2437 = vpop.f32.mrf.mxu0
    %v2438 = vadd.f32 %v2367, %v2437
    %2439 = vmatprep.mubr.bf16.mxu0 %v1131
    %2440 = vmatmul.mubr.bf16.gmra.mxu0 %v1130
    %v2441 = vpop.f32.mrf.mxu0
    %v2442 = vadd.f32 %v2371, %v2441
    %v2443 = vpop.f32.mrf.mxu0
    %v2444 = vadd.f32 %v2373, %v2443
    %v2445 = vpop.f32.mrf.mxu0
    %v2446 = vadd.f32 %v2375, %v2445
    %v2447 = vpop.f32.mrf.mxu0
    %v2448 = vadd.f32 %v2377, %v2447
    %2449 = vmatprep.mubr.bf16.mxu0 %v1137
    %2450 = vmatmul.mubr.bf16.gmra.mxu0 %v1136
    %v2451 = vpop.f32.mrf.mxu0
    %v2452 = vadd.f32 %v2381, %v2451
    %v2453 = vpop.f32.mrf.mxu0
    %v2454 = vadd.f32 %v2383, %v2453
    %v2455 = vpop.f32.mrf.mxu0
    %v2456 = vadd.f32 %v2385, %v2455
    %v2457 = vpop.f32.mrf.mxu0
    %v2458 = vadd.f32 %v2387, %v2457
    %2459 = vmatprep.mubr.bf16.mxu0 %v1143
    %2460 = vmatmul.mubr.bf16.gmra.mxu0 %v1142
    %v2461 = vpop.f32.mrf.mxu0
    %v2462 = vadd.f32 %v2391, %v2461
    %v2463 = vpop.f32.mrf.mxu0
    %v2464 = vadd.f32 %v2393, %v2463
    %v2465 = vpop.f32.mrf.mxu0
    %v2466 = vpop.f32.mrf.mxu0
    %2467 = vdwg.mxu0
    %2468 = vmatprep.subr.bf16.mxu0 %v1888
    %2469 = vmatpush1.bf16.msra.mxu0 %v1887
    %2470 = vmatprep.subr.bf16.mxu0 %v1884
    %2471 = vmatpush1.bf16.msra.mxu0 %v1883
    %2472 = vmatprep.subr.bf16.mxu0 %v1880
    %2473 = vmatpush1.bf16.msra.mxu0 %v1879
    %2474 = vmatprep.subr.bf16.mxu0 %v1876
    %2475 = vmatpush1.bf16.msra.mxu0 %v1875
    %2476 = vmatprep.subr.bf16.mxu0 %v1872
    %2477 = vmatpush1.bf16.msra.mxu0 %v1871
    %2478 = vmatprep.subr.bf16.mxu0 %v1868
    %2479 = vmatpush1.bf16.msra.mxu0 %v1867
    %2480 = vmatprep.subr.bf16.mxu0 %v1864
    %2481 = vmatpush1.bf16.msra.mxu0 %v1863
    %2482 = vmatprep.subr.bf16.mxu0 %v1860
    %2483 = vmatpush1.bf16.msra.mxu0 %v1859
    %2484 = vmatprep.subr.bf16.mxu0 %v1920
    %2485 = vmatpush2.bf16.msra.mxu0 %v1919
    %2486 = vmatprep.subr.bf16.mxu0 %v1916
    %2487 = vmatpush2.bf16.msra.mxu0 %v1915
    %2488 = vmatprep.subr.bf16.mxu0 %v1912
    %2489 = vmatpush2.bf16.msra.mxu0 %v1911
    %2490 = vmatprep.subr.bf16.mxu0 %v1908
    %2491 = vmatpush2.bf16.msra.mxu0 %v1907
    %2492 = vmatprep.subr.bf16.mxu0 %v1904
    %2493 = vmatpush2.bf16.msra.mxu0 %v1903
    %2494 = vmatprep.subr.bf16.mxu0 %v1900
    %2495 = vmatpush2.bf16.msra.mxu0 %v1899
    %2496 = vmatprep.subr.bf16.mxu0 %v1896
    %2497 = vmatpush2.bf16.msra.mxu0 %v1895
    %2498 = vmatprep.subr.bf16.mxu0 %v1892
    %2499 = vmatpush2.bf16.msra.mxu0 %v1891
    %2500 = vmatprep.mubr.bf16.mxu0 %v1127
    %2501 = vmatmul.mubr.bf16.gmra.mxu0 %v1126
    %v2502 = vpop.f32.mrf.mxu0
    %v2503 = vadd.f32 %v2432, %v2502
    %v2504 = vpop.f32.mrf.mxu0
    %v2505 = vadd.f32 %v2434, %v2504
    %v2506 = vpop.f32.mrf.mxu0
    %v2507 = vadd.f32 %v2436, %v2506
    %v2508 = vpop.f32.mrf.mxu0
    %v2509 = vadd.f32 %v2438, %v2508
    %2510 = vmatprep.mubr.bf16.mxu0 %v1133
    %2511 = vmatmul.mubr.bf16.gmra.mxu0 %v1132
    %v2512 = vpop.f32.mrf.mxu0
    %v2513 = vadd.f32 %v2442, %v2512
    %v2514 = vpop.f32.mrf.mxu0
    %v2515 = vadd.f32 %v2444, %v2514
    %v2516 = vpop.f32.mrf.mxu0
    %v2517 = vadd.f32 %v2446, %v2516
    %v2518 = vpop.f32.mrf.mxu0
    %v2519 = vadd.f32 %v2448, %v2518
    %2520 = vmatprep.mubr.bf16.mxu0 %v1139
    %2521 = vmatmul.mubr.bf16.gmra.mxu0 %v1138
    %v2522 = vpop.f32.mrf.mxu0
    %v2523 = vadd.f32 %v2452, %v2522
    %v2524 = vpop.f32.mrf.mxu0
    %v2525 = vadd.f32 %v2454, %v2524
    %v2526 = vpop.f32.mrf.mxu0
    %v2527 = vadd.f32 %v2456, %v2526
    %v2528 = vpop.f32.mrf.mxu0
    %v2529 = vadd.f32 %v2458, %v2528
    %2530 = vmatprep.mubr.bf16.mxu0 %v1145
    %2531 = vmatmul.mubr.bf16.gmra.mxu0 %v1144
    %v2532 = vpop.f32.mrf.mxu0
    %v2533 = vadd.f32 %v2462, %v2532
    %v2534 = vpop.f32.mrf.mxu0
    %v2535 = vadd.f32 %v2464, %v2534
    %v2536 = vpop.f32.mrf.mxu0
    %v2537 = vpop.f32.mrf.mxu0
    %2538 = vdwg.mxu0
    %2539 = vmatprep.subr.bf16.mxu0 %v1758
    %2540 = vmatpush1.bf16.msra.mxu0 %v1757
    %2541 = vmatprep.subr.bf16.mxu0 %v1754
    %2542 = vmatpush1.bf16.msra.mxu0 %v1753
    %2543 = vmatprep.subr.bf16.mxu0 %v1750
    %2544 = vmatpush1.bf16.msra.mxu0 %v1749
    %2545 = vmatprep.subr.bf16.mxu0 %v1746
    %2546 = vmatpush1.bf16.msra.mxu0 %v1745
    %2547 = vmatprep.subr.bf16.mxu0 %v1742
    %2548 = vmatpush1.bf16.msra.mxu0 %v1741
    %2549 = vmatprep.subr.bf16.mxu0 %v1738
    %2550 = vmatpush1.bf16.msra.mxu0 %v1737
    %2551 = vmatprep.subr.bf16.mxu0 %v1734
    %2552 = vmatpush1.bf16.msra.mxu0 %v1733
    %2553 = vmatprep.subr.bf16.mxu0 %v1730
    %2554 = vmatpush1.bf16.msra.mxu0 %v1729
    %2555 = vmatprep.subr.bf16.mxu0 %v1790
    %2556 = vmatpush2.bf16.msra.mxu0 %v1789
    %2557 = vmatprep.subr.bf16.mxu0 %v1786
    %2558 = vmatpush2.bf16.msra.mxu0 %v1785
    %2559 = vmatprep.subr.bf16.mxu0 %v1782
    %2560 = vmatpush2.bf16.msra.mxu0 %v1781
    %2561 = vmatprep.subr.bf16.mxu0 %v1778
    %2562 = vmatpush2.bf16.msra.mxu0 %v1777
    %2563 = vmatprep.subr.bf16.mxu0 %v1774
    %2564 = vmatpush2.bf16.msra.mxu0 %v1773
    %2565 = vmatprep.subr.bf16.mxu0 %v1770
    %2566 = vmatpush2.bf16.msra.mxu0 %v1769
    %2567 = vmatprep.subr.bf16.mxu0 %v1766
    %2568 = vmatpush2.bf16.msra.mxu0 %v1765
    %2569 = vmatprep.subr.bf16.mxu0 %v1762
    %2570 = vmatpush2.bf16.msra.mxu0 %v1761
    %2571 = vmatprep.mubr.bf16.mxu0 %v1125
    %2572 = vmatmul.mubr.bf16.gmra.mxu0 %v1124
    %v2573 = vpop.f32.mrf.mxu0
    %v2574 = vadd.f32 0.0, %v2573
    %v2575 = vpop.f32.mrf.mxu0
    %v2576 = vadd.f32 0.0, %v2575
    %v2577 = vpop.f32.mrf.mxu0
    %v2578 = vadd.f32 0.0, %v2577
    %v2579 = vpop.f32.mrf.mxu0
    %v2580 = vadd.f32 0.0, %v2579
    %2581 = vmatprep.mubr.bf16.mxu0 %v1131
    %2582 = vmatmul.mubr.bf16.gmra.mxu0 %v1130
    %v2583 = vpop.f32.mrf.mxu0
    %v2584 = vadd.f32 0.0, %v2583
    %v2585 = vpop.f32.mrf.mxu0
    %v2586 = vadd.f32 0.0, %v2585
    %v2587 = vpop.f32.mrf.mxu0
    %v2588 = vadd.f32 0.0, %v2587
    %v2589 = vpop.f32.mrf.mxu0
    %v2590 = vadd.f32 0.0, %v2589
    %2591 = vmatprep.mubr.bf16.mxu0 %v1137
    %2592 = vmatmul.mubr.bf16.gmra.mxu0 %v1136
    %v2593 = vpop.f32.mrf.mxu0
    %v2594 = vadd.f32 0.0, %v2593
    %v2595 = vpop.f32.mrf.mxu0
    %v2596 = vadd.f32 0.0, %v2595
    %v2597 = vpop.f32.mrf.mxu0
    %v2598 = vadd.f32 0.0, %v2597
    %v2599 = vpop.f32.mrf.mxu0
    %v2600 = vadd.f32 0.0, %v2599
    %2601 = vmatprep.mubr.bf16.mxu0 %v1143
    %2602 = vmatmul.mubr.bf16.gmra.mxu0 %v1142
    %v2603 = vpop.f32.mrf.mxu0
    %v2604 = vadd.f32 0.0, %v2603
    %v2605 = vpop.f32.mrf.mxu0
    %v2606 = vadd.f32 0.0, %v2605
    %v2607 = vpop.f32.mrf.mxu0
    %v2608 = vpop.f32.mrf.mxu0
    %2609 = vdwg.mxu0
    %2610 = vmatprep.subr.bf16.mxu0 %v1822
    %2611 = vmatpush1.bf16.msra.mxu0 %v1821
    %2612 = vmatprep.subr.bf16.mxu0 %v1818
    %2613 = vmatpush1.bf16.msra.mxu0 %v1817
    %2614 = vmatprep.subr.bf16.mxu0 %v1814
    %2615 = vmatpush1.bf16.msra.mxu0 %v1813
    %2616 = vmatprep.subr.bf16.mxu0 %v1810
    %2617 = vmatpush1.bf16.msra.mxu0 %v1809
    %2618 = vmatprep.subr.bf16.mxu0 %v1806
    %2619 = vmatpush1.bf16.msra.mxu0 %v1805
    %2620 = vmatprep.subr.bf16.mxu0 %v1802
    %2621 = vmatpush1.bf16.msra.mxu0 %v1801
    %2622 = vmatprep.subr.bf16.mxu0 %v1798
    %2623 = vmatpush1.bf16.msra.mxu0 %v1797
    %2624 = vmatprep.subr.bf16.mxu0 %v1794
    %2625 = vmatpush1.bf16.msra.mxu0 %v1793
    %2626 = vmatprep.subr.bf16.mxu0 %v1854
    %2627 = vmatpush2.bf16.msra.mxu0 %v1853
    %2628 = vmatprep.subr.bf16.mxu0 %v1850
    %2629 = vmatpush2.bf16.msra.mxu0 %v1849
    %2630 = vmatprep.subr.bf16.mxu0 %v1846
    %2631 = vmatpush2.bf16.msra.mxu0 %v1845
    %2632 = vmatprep.subr.bf16.mxu0 %v1842
    %2633 = vmatpush2.bf16.msra.mxu0 %v1841
    %2634 = vmatprep.subr.bf16.mxu0 %v1838
    %2635 = vmatpush2.bf16.msra.mxu0 %v1837
    %2636 = vmatprep.subr.bf16.mxu0 %v1834
    %2637 = vmatpush2.bf16.msra.mxu0 %v1833
    %2638 = vmatprep.subr.bf16.mxu0 %v1830
    %2639 = vmatpush2.bf16.msra.mxu0 %v1829
    %2640 = vmatprep.subr.bf16.mxu0 %v1826
    %2641 = vmatpush2.bf16.msra.mxu0 %v1825
    %2642 = vmatprep.mubr.bf16.mxu0 %v1127
    %2643 = vmatmul.mubr.bf16.gmra.mxu0 %v1126
    %v2644 = vpop.f32.mrf.mxu0
    %v2645 = vadd.f32 %v2574, %v2644
    %v2646 = vpop.f32.mrf.mxu0
    %v2647 = vadd.f32 %v2576, %v2646
    %v2648 = vpop.f32.mrf.mxu0
    %v2649 = vadd.f32 %v2578, %v2648
    %v2650 = vpop.f32.mrf.mxu0
    %v2651 = vadd.f32 %v2580, %v2650
    %2652 = vmatprep.mubr.bf16.mxu0 %v1133
    %2653 = vmatmul.mubr.bf16.gmra.mxu0 %v1132
    %v2654 = vpop.f32.mrf.mxu0
    %v2655 = vadd.f32 %v2584, %v2654
    %v2656 = vpop.f32.mrf.mxu0
    %v2657 = vadd.f32 %v2586, %v2656
    %v2658 = vpop.f32.mrf.mxu0
    %v2659 = vadd.f32 %v2588, %v2658
    %v2660 = vpop.f32.mrf.mxu0
    %v2661 = vadd.f32 %v2590, %v2660
    %2662 = vmatprep.mubr.bf16.mxu0 %v1139
    %2663 = vmatmul.mubr.bf16.gmra.mxu0 %v1138
    %v2664 = vpop.f32.mrf.mxu0
    %v2665 = vadd.f32 %v2594, %v2664
    %v2666 = vpop.f32.mrf.mxu0
    %v2667 = vadd.f32 %v2596, %v2666
    %v2668 = vpop.f32.mrf.mxu0
    %v2669 = vadd.f32 %v2598, %v2668
    %v2670 = vpop.f32.mrf.mxu0
    %v2671 = vadd.f32 %v2600, %v2670
    %2672 = vmatprep.mubr.bf16.mxu0 %v1145
    %2673 = vmatmul.mubr.bf16.gmra.mxu0 %v1144
    %v2674 = vpop.f32.mrf.mxu0
    %v2675 = vadd.f32 %v2604, %v2674
    %v2676 = vpop.f32.mrf.mxu0
    %v2677 = vadd.f32 %v2606, %v2676
    %v2678 = vpop.f32.mrf.mxu0
    %v2679 = vpop.f32.mrf.mxu0
    %2680 = vdwg.mxu0
    %2681 = vmatprep.subr.bf16.mxu0 %v1886
    %2682 = vmatpush1.bf16.msra.mxu0 %v1885
    %2683 = vmatprep.subr.bf16.mxu0 %v1882
    %2684 = vmatpush1.bf16.msra.mxu0 %v1881
    %2685 = vmatprep.subr.bf16.mxu0 %v1878
    %2686 = vmatpush1.bf16.msra.mxu0 %v1877
    %2687 = vmatprep.subr.bf16.mxu0 %v1874
    %2688 = vmatpush1.bf16.msra.mxu0 %v1873
    %2689 = vmatprep.subr.bf16.mxu0 %v1870
    %2690 = vmatpush1.bf16.msra.mxu0 %v1869
    %2691 = vmatprep.subr.bf16.mxu0 %v1866
    %2692 = vmatpush1.bf16.msra.mxu0 %v1865
    %2693 = vmatprep.subr.bf16.mxu0 %v1862
    %2694 = vmatpush1.bf16.msra.mxu0 %v1861
    %2695 = vmatprep.subr.bf16.mxu0 %v1858
    %2696 = vmatpush1.bf16.msra.mxu0 %v1857
    %2697 = vmatprep.subr.bf16.mxu0 %v1918
    %2698 = vmatpush2.bf16.msra.mxu0 %v1917
    %2699 = vmatprep.subr.bf16.mxu0 %v1914
    %2700 = vmatpush2.bf16.msra.mxu0 %v1913
    %2701 = vmatprep.subr.bf16.mxu0 %v1910
    %2702 = vmatpush2.bf16.msra.mxu0 %v1909
    %2703 = vmatprep.subr.bf16.mxu0 %v1906
    %2704 = vmatpush2.bf16.msra.mxu0 %v1905
    %2705 = vmatprep.subr.bf16.mxu0 %v1902
    %2706 = vmatpush2.bf16.msra.mxu0 %v1901
    %2707 = vmatprep.subr.bf16.mxu0 %v1898
    %2708 = vmatpush2.bf16.msra.mxu0 %v1897
    %2709 = vmatprep.subr.bf16.mxu0 %v1894
    %2710 = vmatpush2.bf16.msra.mxu0 %v1893
    %2711 = vmatprep.subr.bf16.mxu0 %v1890
    %2712 = vmatpush2.bf16.msra.mxu0 %v1889
    %2713 = vmatprep.mubr.bf16.mxu0 %v1147
    %2714 = vmatmul.mubr.bf16.gmra.mxu0 %v1146
    %v2715 = vpop.f32.mrf.mxu0
    %v2716 = vadd.f32 %v2645, %v2715
    %v2717 = vpop.f32.mrf.mxu0
    %v2718 = vadd.f32 %v2647, %v2717
    %v2719 = vpop.f32.mrf.mxu0
    %v2720 = vadd.f32 %v2649, %v2719
    %v2721 = vpop.f32.mrf.mxu0
    %v2722 = vadd.f32 %v2651, %v2721
    %2723 = vmatprep.mubr.bf16.mxu0 %v1149
    %2724 = vmatmul.mubr.bf16.gmra.mxu0 %v1148
    %v2725 = vpop.f32.mrf.mxu0
    %v2726 = vadd.f32 %v2655, %v2725
    %v2727 = vpop.f32.mrf.mxu0
    %v2728 = vadd.f32 %v2657, %v2727
    %v2729 = vpop.f32.mrf.mxu0
    %v2730 = vadd.f32 %v2659, %v2729
    %v2731 = vpop.f32.mrf.mxu0
    %v2732 = vadd.f32 %v2661, %v2731
    %2733 = vmatprep.mubr.bf16.mxu0 %v1151
    %2734 = vmatmul.mubr.bf16.gmra.mxu0 %v1150
    %v2735 = vpop.f32.mrf.mxu0
    %v2736 = vadd.f32 %v2665, %v2735
    %v2737 = vpop.f32.mrf.mxu0
    %v2738 = vadd.f32 %v2667, %v2737
    %v2739 = vpop.f32.mrf.mxu0
    %v2740 = vadd.f32 %v2669, %v2739
    %v2741 = vpop.f32.mrf.mxu0
    %v2742 = vadd.f32 %v2671, %v2741
    %2743 = vmatprep.mubr.bf16.mxu0 %v1152
    %2744 = vmatmul.mubr.bf16.gmra.mxu0 %v1152
    %v2745 = vpop.f32.mrf.mxu0
    %v2746 = vadd.f32 %v2675, %v2745
    %v2747 = vpop.f32.mrf.mxu0
    %v2748 = vadd.f32 %v2677, %v2747
    %v2749 = vpop.f32.mrf.mxu0
    %v2750 = vpop.f32.mrf.mxu0
    %2751 = vdwg.mxu0
    %2752 = vmatprep.subr.bf16.mxu0 %v1760
    %2753 = vmatpush1.bf16.msra.mxu0 %v1759
    %2754 = vmatprep.subr.bf16.mxu0 %v1756
    %2755 = vmatpush1.bf16.msra.mxu0 %v1755
    %2756 = vmatprep.subr.bf16.mxu0 %v1752
    %2757 = vmatpush1.bf16.msra.mxu0 %v1751
    %2758 = vmatprep.subr.bf16.mxu0 %v1748
    %2759 = vmatpush1.bf16.msra.mxu0 %v1747
    %2760 = vmatprep.subr.bf16.mxu0 %v1744
    %2761 = vmatpush1.bf16.msra.mxu0 %v1743
    %2762 = vmatprep.subr.bf16.mxu0 %v1740
    %2763 = vmatpush1.bf16.msra.mxu0 %v1739
    %2764 = vmatprep.subr.bf16.mxu0 %v1736
    %2765 = vmatpush1.bf16.msra.mxu0 %v1735
    %2766 = vmatprep.subr.bf16.mxu0 %v1732
    %2767 = vmatpush1.bf16.msra.mxu0 %v1731
    %2768 = vmatprep.subr.bf16.mxu0 %v1792
    %2769 = vmatpush2.bf16.msra.mxu0 %v1791
    %2770 = vmatprep.subr.bf16.mxu0 %v1788
    %2771 = vmatpush2.bf16.msra.mxu0 %v1787
    %2772 = vmatprep.subr.bf16.mxu0 %v1784
    %2773 = vmatpush2.bf16.msra.mxu0 %v1783
    %2774 = vmatprep.subr.bf16.mxu0 %v1780
    %2775 = vmatpush2.bf16.msra.mxu0 %v1779
    %2776 = vmatprep.subr.bf16.mxu0 %v1776
    %2777 = vmatpush2.bf16.msra.mxu0 %v1775
    %2778 = vmatprep.subr.bf16.mxu0 %v1772
    %2779 = vmatpush2.bf16.msra.mxu0 %v1771
    %2780 = vmatprep.subr.bf16.mxu0 %v1768
    %2781 = vmatpush2.bf16.msra.mxu0 %v1767
    %2782 = vmatprep.subr.bf16.mxu0 %v1764
    %2783 = vmatpush2.bf16.msra.mxu0 %v1763
    %2784 = vmatprep.mubr.bf16.mxu0 %v1125
    %2785 = vmatmul.mubr.bf16.gmra.mxu0 %v1124
    %v2786 = vpop.f32.mrf.mxu0
    %v2787 = vadd.f32 0.0, %v2786
    %v2788 = vpop.f32.mrf.mxu0
    %v2789 = vadd.f32 0.0, %v2788
    %v2790 = vpop.f32.mrf.mxu0
    %v2791 = vadd.f32 0.0, %v2790
    %v2792 = vpop.f32.mrf.mxu0
    %v2793 = vadd.f32 0.0, %v2792
    %2794 = vmatprep.mubr.bf16.mxu0 %v1131
    %2795 = vmatmul.mubr.bf16.gmra.mxu0 %v1130
    %v2796 = vpop.f32.mrf.mxu0
    %v2797 = vadd.f32 0.0, %v2796
    %v2798 = vpop.f32.mrf.mxu0
    %v2799 = vadd.f32 0.0, %v2798
    %v2800 = vpop.f32.mrf.mxu0
    %v2801 = vadd.f32 0.0, %v2800
    %v2802 = vpop.f32.mrf.mxu0
    %v2803 = vadd.f32 0.0, %v2802
    %2804 = vmatprep.mubr.bf16.mxu0 %v1137
    %2805 = vmatmul.mubr.bf16.gmra.mxu0 %v1136
    %v2806 = vpop.f32.mrf.mxu0
    %v2807 = vadd.f32 0.0, %v2806
    %v2808 = vpop.f32.mrf.mxu0
    %v2809 = vadd.f32 0.0, %v2808
    %v2810 = vpop.f32.mrf.mxu0
    %v2811 = vadd.f32 0.0, %v2810
    %v2812 = vpop.f32.mrf.mxu0
    %v2813 = vadd.f32 0.0, %v2812
    %2814 = vmatprep.mubr.bf16.mxu0 %v1143
    %2815 = vmatmul.mubr.bf16.gmra.mxu0 %v1142
    %v2816 = vpop.f32.mrf.mxu0
    %v2817 = vadd.f32 0.0, %v2816
    %v2818 = vpop.f32.mrf.mxu0
    %v2819 = vadd.f32 0.0, %v2818
    %v2820 = vpop.f32.mrf.mxu0
    %v2821 = vpop.f32.mrf.mxu0
    %2822 = vdwg.mxu0
    %2823 = vmatprep.subr.bf16.mxu0 %v1824
    %2824 = vmatpush1.bf16.msra.mxu0 %v1823
    %2825 = vmatprep.subr.bf16.mxu0 %v1820
    %2826 = vmatpush1.bf16.msra.mxu0 %v1819
    %2827 = vmatprep.subr.bf16.mxu0 %v1816
    %2828 = vmatpush1.bf16.msra.mxu0 %v1815
    %2829 = vmatprep.subr.bf16.mxu0 %v1812
    %2830 = vmatpush1.bf16.msra.mxu0 %v1811
    %2831 = vmatprep.subr.bf16.mxu0 %v1808
    %2832 = vmatpush1.bf16.msra.mxu0 %v1807
    %2833 = vmatprep.subr.bf16.mxu0 %v1804
    %2834 = vmatpush1.bf16.msra.mxu0 %v1803
    %2835 = vmatprep.subr.bf16.mxu0 %v1800
    %2836 = vmatpush1.bf16.msra.mxu0 %v1799
    %2837 = vmatprep.subr.bf16.mxu0 %v1796
    %2838 = vmatpush1.bf16.msra.mxu0 %v1795
    %2839 = vmatprep.subr.bf16.mxu0 %v1856
    %2840 = vmatpush2.bf16.msra.mxu0 %v1855
    %2841 = vmatprep.subr.bf16.mxu0 %v1852
    %2842 = vmatpush2.bf16.msra.mxu0 %v1851
    %2843 = vmatprep.subr.bf16.mxu0 %v1848
    %2844 = vmatpush2.bf16.msra.mxu0 %v1847
    %2845 = vmatprep.subr.bf16.mxu0 %v1844
    %2846 = vmatpush2.bf16.msra.mxu0 %v1843
    %2847 = vmatprep.subr.bf16.mxu0 %v1840
    %2848 = vmatpush2.bf16.msra.mxu0 %v1839
    %2849 = vmatprep.subr.bf16.mxu0 %v1836
    %2850 = vmatpush2.bf16.msra.mxu0 %v1835
    %2851 = vmatprep.subr.bf16.mxu0 %v1832
    %2852 = vmatpush2.bf16.msra.mxu0 %v1831
    %2853 = vmatprep.subr.bf16.mxu0 %v1828
    %2854 = vmatpush2.bf16.msra.mxu0 %v1827
    %2855 = vmatprep.mubr.bf16.mxu0 %v1127
    %2856 = vmatmul.mubr.bf16.gmra.mxu0 %v1126
    %v2857 = vpop.f32.mrf.mxu0
    %v2858 = vadd.f32 %v2787, %v2857
    %v2859 = vpop.f32.mrf.mxu0
    %v2860 = vadd.f32 %v2789, %v2859
    %v2861 = vpop.f32.mrf.mxu0
    %v2862 = vadd.f32 %v2791, %v2861
    %v2863 = vpop.f32.mrf.mxu0
    %v2864 = vadd.f32 %v2793, %v2863
    %2865 = vmatprep.mubr.bf16.mxu0 %v1133
    %2866 = vmatmul.mubr.bf16.gmra.mxu0 %v1132
    %v2867 = vpop.f32.mrf.mxu0
    %v2868 = vadd.f32 %v2797, %v2867
    %v2869 = vpop.f32.mrf.mxu0
    %v2870 = vadd.f32 %v2799, %v2869
    %v2871 = vpop.f32.mrf.mxu0
    %v2872 = vadd.f32 %v2801, %v2871
    %v2873 = vpop.f32.mrf.mxu0
    %v2874 = vadd.f32 %v2803, %v2873
    %2875 = vmatprep.mubr.bf16.mxu0 %v1139
    %2876 = vmatmul.mubr.bf16.gmra.mxu0 %v1138
    %v2877 = vpop.f32.mrf.mxu0
    %v2878 = vadd.f32 %v2807, %v2877
    %v2879 = vpop.f32.mrf.mxu0
    %v2880 = vadd.f32 %v2809, %v2879
    %v2881 = vpop.f32.mrf.mxu0
    %v2882 = vadd.f32 %v2811, %v2881
    %v2883 = vpop.f32.mrf.mxu0
    %v2884 = vadd.f32 %v2813, %v2883
    %2885 = vmatprep.mubr.bf16.mxu0 %v1145
    %2886 = vmatmul.mubr.bf16.gmra.mxu0 %v1144
    %v2887 = vpop.f32.mrf.mxu0
    %v2888 = vadd.f32 %v2817, %v2887
    %v2889 = vpop.f32.mrf.mxu0
    %v2890 = vadd.f32 %v2819, %v2889
    %v2891 = vpop.f32.mrf.mxu0
    %v2892 = vpop.f32.mrf.mxu0
    %2893 = vdwg.mxu0
    %2894 = vmatprep.subr.bf16.mxu0 %v1888
    %2895 = vmatpush1.bf16.msra.mxu0 %v1887
    %2896 = vmatprep.subr.bf16.mxu0 %v1884
    %2897 = vmatpush1.bf16.msra.mxu0 %v1883
    %2898 = vmatprep.subr.bf16.mxu0 %v1880
    %2899 = vmatpush1.bf16.msra.mxu0 %v1879
    %2900 = vmatprep.subr.bf16.mxu0 %v1876
    %2901 = vmatpush1.bf16.msra.mxu0 %v1875
    %2902 = vmatprep.subr.bf16.mxu0 %v1872
    %2903 = vmatpush1.bf16.msra.mxu0 %v1871
    %2904 = vmatprep.subr.bf16.mxu0 %v1868
    %2905 = vmatpush1.bf16.msra.mxu0 %v1867
    %2906 = vmatprep.subr.bf16.mxu0 %v1864
    %2907 = vmatpush1.bf16.msra.mxu0 %v1863
    %2908 = vmatprep.subr.bf16.mxu0 %v1860
    %2909 = vmatpush1.bf16.msra.mxu0 %v1859
    %2910 = vmatprep.subr.bf16.mxu0 %v1920
    %2911 = vmatpush2.bf16.msra.mxu0 %v1919
    %2912 = vmatprep.subr.bf16.mxu0 %v1916
    %2913 = vmatpush2.bf16.msra.mxu0 %v1915
    %2914 = vmatprep.subr.bf16.mxu0 %v1912
    %2915 = vmatpush2.bf16.msra.mxu0 %v1911
    %2916 = vmatprep.subr.bf16.mxu0 %v1908
    %2917 = vmatpush2.bf16.msra.mxu0 %v1907
    %2918 = vmatprep.subr.bf16.mxu0 %v1904
    %2919 = vmatpush2.bf16.msra.mxu0 %v1903
    %2920 = vmatprep.subr.bf16.mxu0 %v1900
    %2921 = vmatpush2.bf16.msra.mxu0 %v1899
    %2922 = vmatprep.subr.bf16.mxu0 %v1896
    %2923 = vmatpush2.bf16.msra.mxu0 %v1895
    %2924 = vmatprep.subr.bf16.mxu0 %v1892
    %2925 = vmatpush2.bf16.msra.mxu0 %v1891
    %2926 = vmatprep.mubr.bf16.mxu0 %v1147
    %2927 = vmatmul.mubr.bf16.gmra.mxu0 %v1146
    %v2928 = vpop.f32.mrf.mxu0
    %v2929 = vadd.f32 %v2858, %v2928
    %v2930 = vpop.f32.mrf.mxu0
    %v2931 = vadd.f32 %v2860, %v2930
    %v2932 = vpop.f32.mrf.mxu0
    %v2933 = vadd.f32 %v2862, %v2932
    %v2934 = vpop.f32.mrf.mxu0
    %v2935 = vadd.f32 %v2864, %v2934
    %2936 = vmatprep.mubr.bf16.mxu0 %v1149
    %2937 = vmatmul.mubr.bf16.gmra.mxu0 %v1148
    %v2938 = vpop.f32.mrf.mxu0
    %v2939 = vadd.f32 %v2868, %v2938
    %v2940 = vpop.f32.mrf.mxu0
    %v2941 = vadd.f32 %v2870, %v2940
    %v2942 = vpop.f32.mrf.mxu0
    %v2943 = vadd.f32 %v2872, %v2942
    %v2944 = vpop.f32.mrf.mxu0
    %v2945 = vadd.f32 %v2874, %v2944
    %2946 = vmatprep.mubr.bf16.mxu0 %v1151
    %2947 = vmatmul.mubr.bf16.gmra.mxu0 %v1150
    %v2948 = vpop.f32.mrf.mxu0
    %v2949 = vadd.f32 %v2878, %v2948
    %v2950 = vpop.f32.mrf.mxu0
    %v2951 = vadd.f32 %v2880, %v2950
    %v2952 = vpop.f32.mrf.mxu0
    %v2953 = vadd.f32 %v2882, %v2952
    %v2954 = vpop.f32.mrf.mxu0
    %v2955 = vadd.f32 %v2884, %v2954
    %2956 = vmatprep.mubr.bf16.mxu0 %v1152
    %2957 = vmatmul.mubr.bf16.gmra.mxu0 %v1152
    %v2958 = vpop.f32.mrf.mxu0
    %v2959 = vadd.f32 %v2888, %v2958
    %v2960 = vpop.f32.mrf.mxu0
    %v2961 = vadd.f32 %v2890, %v2960
    %v2962 = vpop.f32.mrf.mxu0
    %v2963 = vpop.f32.mrf.mxu0
    %2964 = vdwg.mxu0
    %v2965 = vmax.f32 %v2290, %v2716
    %v2966 = vmax.f32 %v2292, %v2718
    %v2967 = vmax.f32 %v2503, %v2929
    %v2968 = vmax.f32 %v2505, %v2931
    %v2969 = vmax.f32 %v2294, %v2720
    %v2970 = vmax.f32 %v2296, %v2722
    %v2971 = vmax.f32 %v2507, %v2933
    %v2972 = vmax.f32 %v2509, %v2935
    %v2973 = vmax.f32 %v2300, %v2726
    %v2974 = vmax.f32 %v2302, %v2728
    %v2975 = vmax.f32 %v2513, %v2939
    %v2976 = vmax.f32 %v2515, %v2941
    %v2977 = vmax.f32 %v2304, %v2730
    %v2978 = vmax.f32 %v2306, %v2732
    %v2979 = vmax.f32 %v2517, %v2943
    %v2980 = vmax.f32 %v2519, %v2945
    %v2981 = vmax.f32 %v2310, %v2736
    %v2982 = vmax.f32 %v2312, %v2738
    %v2983 = vmax.f32 %v2523, %v2949
    %v2984 = vmax.f32 %v2525, %v2951
    %v2985 = vmax.f32 %v2314, %v2740
    %v2986 = vmax.f32 %v2316, %v2742
    %v2987 = vmax.f32 %v2527, %v2953
    %v2988 = vmax.f32 %v2529, %v2955
    %v2989 = vmax.f32 %v2320, %v2746
    %v2990 = vmax.f32 %v2322, %v2748
    %v2991 = vmax.f32 %v2533, %v2959
    %v2992 = vmax.f32 %v2535, %v2961
    %v2993 = vlaneseq
    %v2994 = vshrl.u32 %v2993, 7
    %v2995 = vsub.s32 1, %v2994
    %v2996 = vrot.slane %v55, %v2995
    %v2997 = vlaneseq
    %v2998 = vshrl.u32 %v2997, 7
    %v2999 = vsub.s32 3, %v2998
    %v3000 = vrot.slane %v55, %v2999
    %v3001 = vlaneseq
    %v3002 = vshrl.u32 %v3001, 7
    %v3003 = vsub.s32 5, %v3002
    %v3004 = vrot.slane %v55, %v3003
    %v3005 = vlaneseq
    %v3006 = vshrl.u32 %v3005, 7
    %v3007 = vsub.s32 7, %v3006
    %v3008 = vrot.slane %v55, %v3007
    %v3013 = vlaneseq
    %v3014 = vshrl.u32 %v3013, 7
    %v3015 = vsub.s32 1, %v3014
    %v3016 = vrot.slane %v2996, %v3015
    %v3017 = vlaneseq
    %v3018 = vshrl.u32 %v3017, 7
    %v3019 = vsub.s32 1, %v3018
    %v3020 = vrot.slane %v3000, %v3019
    %v3021 = vlaneseq
    %v3022 = vshrl.u32 %v3021, 7
    %v3023 = vsub.s32 1, %v3022
    %v3024 = vrot.slane %v3004, %v3023
    %v3025 = vlaneseq
    %v3026 = vshrl.u32 %v3025, 7
    %v3027 = vsub.s32 1, %v3026
    %v3028 = vrot.slane %v3008, %v3027
    %v3029 = vadd.f32 %v2965, %v3016
    %v3030 = vadd.f32 %v2966, %v3020
    %v3031 = vadd.f32 %v2967, %v3024
    %v3032 = vadd.f32 %v2968, %v3028
    %v3033 = vadd.f32 %v2969, %v3016
    %v3034 = vadd.f32 %v2970, %v3020
    %v3035 = vadd.f32 %v2971, %v3024
    %v3036 = vadd.f32 %v2972, %v3028
    %v3037 = vadd.f32 %v2973, %v3016
    %v3038 = vadd.f32 %v2974, %v3020
    %v3039 = vadd.f32 %v2975, %v3024
    %v3040 = vadd.f32 %v2976, %v3028
    %v3041 = vadd.f32 %v2977, %v3016
    %v3042 = vadd.f32 %v2978, %v3020
    %v3043 = vadd.f32 %v2979, %v3024
    %v3044 = vadd.f32 %v2980, %v3028
    %v3045 = vadd.f32 %v2981, %v3016
    %v3046 = vadd.f32 %v2982, %v3020
    %v3047 = vadd.f32 %v2983, %v3024
    %v3048 = vadd.f32 %v2984, %v3028
    %v3049 = vadd.f32 %v2985, %v3016
    %v3050 = vadd.f32 %v2986, %v3020
    %v3051 = vadd.f32 %v2987, %v3024
    %v3052 = vadd.f32 %v2988, %v3028
    %v3053 = vadd.f32 %v2989, %v3016
    %v3054 = vadd.f32 %v2990, %v3020
    %v3055 = vadd.f32 %v2991, %v3024
    %v3056 = vadd.f32 %v2992, %v3028
    %v3057 = vmax.f32 %v3029, 0.0
    %v3058 = vmax.f32 %v3030, 0.0
    %v3059 = vmax.f32 %v3031, 0.0
    %v3060 = vmax.f32 %v3032, 0.0
    %v3061 = vmax.f32 %v3033, 0.0
    %v3062 = vmax.f32 %v3034, 0.0
    %v3063 = vmax.f32 %v3035, 0.0
    %v3064 = vmax.f32 %v3036, 0.0
    %v3065 = vmax.f32 %v3037, 0.0
    %v3066 = vmax.f32 %v3038, 0.0
    %v3067 = vmax.f32 %v3039, 0.0
    %v3068 = vmax.f32 %v3040, 0.0
    %v3069 = vmax.f32 %v3041, 0.0
    %v3070 = vmax.f32 %v3042, 0.0
    %v3071 = vmax.f32 %v3043, 0.0
    %v3072 = vmax.f32 %v3044, 0.0
    %v3073 = vmax.f32 %v3045, 0.0
    %v3074 = vmax.f32 %v3046, 0.0
    %v3075 = vmax.f32 %v3047, 0.0
    %v3076 = vmax.f32 %v3048, 0.0
    %v3077 = vmax.f32 %v3049, 0.0
    %v3078 = vmax.f32 %v3050, 0.0
    %v3079 = vmax.f32 %v3051, 0.0
    %v3080 = vmax.f32 %v3052, 0.0
    %v3081 = vmax.f32 %v3053, 0.0
    %v3082 = vmax.f32 %v3054, 0.0
    %v3083 = vmax.f32 %v3055, 0.0
    %v3084 = vmax.f32 %v3056, 0.0
    %v3085 = vmax.f32 %v3057, %v3059
    %v3086 = vmax.f32 %v3058, %v3060
    %v3087 = vmax.f32 %v3061, %v3063
    %v3088 = vmax.f32 %v3062, %v3064
    %v3089 = vmax.f32 %v3065, %v3067
    %v3090 = vmax.f32 %v3066, %v3068
    %v3091 = vmax.f32 %v3069, %v3071
    %v3092 = vmax.f32 %v3070, %v3072
    %v3093 = vmax.f32 %v3073, %v3075
    %v3094 = vmax.f32 %v3074, %v3076
    %v3095 = vmax.f32 %v3077, %v3079
    %v3096 = vmax.f32 %v3078, %v3080
    %v3097 = vmax.f32 %v3081, %v3083
    %v3098 = vmax.f32 %v3082, %v3084
    %v3099 = vpack.c.bf16 %v3085, %v3085
    %v3100 = vpack.c.bf16 %v3086, %v3086
    %v3101 = vpack.c.bf16 %v3087, %v3087
    %v3102 = vpack.c.bf16 %v3088, %v3088
    %v3103 = vpack.c.bf16 %v3089, %v3089
    %v3104 = vpack.c.bf16 %v3090, %v3090
    %v3105 = vpack.c.bf16 %v3091, %v3091
    %v3106 = vpack.c.bf16 %v3092, %v3092
    %v3107 = vpack.c.bf16 %v3093, %v3093
    %v3108 = vpack.c.bf16 %v3094, %v3094
    %v3109 = vpack.c.bf16 %v3095, %v3095
    %v3110 = vpack.c.bf16 %v3096, %v3096
    %v3111 = vpack.c.bf16 %v3097, %v3097
    %v3112 = vpack.c.bf16 %v3098, %v3098
    %v3113 = vld [vmem:[%s3] sm:$0xf]
    %v3114 = vld [vmem:[%s3 + $0x4] sm:$0xf]
    %v3115 = vld [vmem:[%s3 + $0x8] sm:$0xf]
    %v3116 = vld [vmem:[%s3 + $0xc] sm:$0xf]
    %v3117 = vld [vmem:[%s3 + $0x10] sm:$0xf]
    %v3118 = vld [vmem:[%s3 + $0x14] sm:$0xf]
    %v3119 = vld [vmem:[%s3 + $0x18] sm:$0xf]
    %v3120 = vld [vmem:[%s3 + $0x1c] sm:$0xf]
    %v3121 = vld [vmem:[%s3 + $0x20] sm:$0xf]
    %v3122 = vld [vmem:[%s3 + $0x24] sm:$0xf]
    %v3123 = vld [vmem:[%s3 + $0x28] sm:$0xf]
    %v3124 = vld [vmem:[%s3 + $0x2c] sm:$0xf]
    %v3125 = vld [vmem:[%s3 + $0x30] sm:$0xf]
    %v3126 = vld [vmem:[%s3 + $0x34] sm:$0xf]
    %v3127 = vld [vmem:[%s3 + $0x38] sm:$0xf]
    %v3128 = vld [vmem:[%s3 + $0x3c] sm:$0xf]
    %v3129 = vld [vmem:[%s3 + $0x40] sm:$0xf]
    %v3130 = vld [vmem:[%s3 + $0x44] sm:$0xf]
    %v3131 = vld [vmem:[%s3 + $0x48] sm:$0xf]
    %v3132 = vld [vmem:[%s3 + $0x4c] sm:$0xf]
    %v3133 = vld [vmem:[%s3 + $0x50] sm:$0xf]
    %v3134 = vld [vmem:[%s3 + $0x54] sm:$0xf]
    %v3135 = vld [vmem:[%s3 + $0x58] sm:$0xf]
    %v3136 = vld [vmem:[%s3 + $0x5c] sm:$0xf]
    %v3137 = vld [vmem:[%s3 + $0x60] sm:$0xf]
    %v3138 = vld [vmem:[%s3 + $0x64] sm:$0xf]
    %v3139 = vld [vmem:[%s3 + $0x68] sm:$0xf]
    %v3140 = vld [vmem:[%s3 + $0x6c] sm:$0xf]
    %v3141 = vld [vmem:[%s3 + $0x70] sm:$0xf]
    %v3142 = vld [vmem:[%s3 + $0x74] sm:$0xf]
    %v3143 = vld [vmem:[%s3 + $0x78] sm:$0xf]
    %v3144 = vld [vmem:[%s3 + $0x7c] sm:$0xf]
    %v3145 = vld [vmem:[%s3 + $0x80] sm:$0xf]
    %v3146 = vld [vmem:[%s3 + $0x84] sm:$0xf]
    %v3147 = vld [vmem:[%s3 + $0x88] sm:$0xf]
    %v3148 = vld [vmem:[%s3 + $0x8c] sm:$0xf]
    %v3149 = vld [vmem:[%s3 + $0x90] sm:$0xf]
    %v3150 = vld [vmem:[%s3 + $0x94] sm:$0xf]
    %v3151 = vld [vmem:[%s3 + $0x98] sm:$0xf]
    %v3152 = vld [vmem:[%s3 + $0x9c] sm:$0xf]
    %v3153 = vld [vmem:[%s3 + $0xa0] sm:$0xf]
    %v3154 = vld [vmem:[%s3 + $0xa4] sm:$0xf]
    %v3155 = vld [vmem:[%s3 + $0xa8] sm:$0xf]
    %v3156 = vld [vmem:[%s3 + $0xac] sm:$0xf]
    %v3157 = vld [vmem:[%s3 + $0xb0] sm:$0xf]
    %v3158 = vld [vmem:[%s3 + $0xb4] sm:$0xf]
    %v3159 = vld [vmem:[%s3 + $0xb8] sm:$0xf]
    %v3160 = vld [vmem:[%s3 + $0xbc] sm:$0xf]
    %v3161 = vld [vmem:[%s3 + $0xc0] sm:$0xf]
    %v3162 = vld [vmem:[%s3 + $0xc4] sm:$0xf]
    %v3163 = vld [vmem:[%s3 + $0xc8] sm:$0xf]
    %v3164 = vld [vmem:[%s3 + $0xcc] sm:$0xf]
    %v3165 = vld [vmem:[%s3 + $0xd0] sm:$0xf]
    %v3166 = vld [vmem:[%s3 + $0xd4] sm:$0xf]
    %v3167 = vld [vmem:[%s3 + $0xd8] sm:$0xf]
    %v3168 = vld [vmem:[%s3 + $0xdc] sm:$0xf]
    %v3169 = vld [vmem:[%s3 + $0xe0] sm:$0xf]
    %v3170 = vld [vmem:[%s3 + $0xe4] sm:$0xf]
    %v3171 = vld [vmem:[%s3 + $0xe8] sm:$0xf]
    %v3172 = vld [vmem:[%s3 + $0xec] sm:$0xf]
    %v3173 = vld [vmem:[%s3 + $0xf0] sm:$0xf]
    %v3174 = vld [vmem:[%s3 + $0xf4] sm:$0xf]
    %v3175 = vld [vmem:[%s3 + $0xf8] sm:$0xf]
    %v3176 = vld [vmem:[%s3 + $0xfc] sm:$0xf]
    %v3177 = vld [vmem:[%s3 + $0x100] sm:$0xf]
    %v3178 = vld [vmem:[%s3 + $0x104] sm:$0xf]
    %v3179 = vld [vmem:[%s3 + $0x108] sm:$0xf]
    %v3180 = vld [vmem:[%s3 + $0x10c] sm:$0xf]
    %v3181 = vld [vmem:[%s3 + $0x110] sm:$0xf]
    %v3182 = vld [vmem:[%s3 + $0x114] sm:$0xf]
    %v3183 = vld [vmem:[%s3 + $0x118] sm:$0xf]
    %v3184 = vld [vmem:[%s3 + $0x11c] sm:$0xf]
    %v3185 = vld [vmem:[%s3 + $0x120] sm:$0xf]
    %v3186 = vld [vmem:[%s3 + $0x124] sm:$0xf]
    %v3187 = vld [vmem:[%s3 + $0x128] sm:$0xf]
    %v3188 = vld [vmem:[%s3 + $0x12c] sm:$0xf]
    %v3189 = vld [vmem:[%s3 + $0x130] sm:$0xf]
    %v3190 = vld [vmem:[%s3 + $0x134] sm:$0xf]
    %v3191 = vld [vmem:[%s3 + $0x138] sm:$0xf]
    %v3192 = vld [vmem:[%s3 + $0x13c] sm:$0xf]
    %v3193 = vld [vmem:[%s3 + $0x140] sm:$0xf]
    %v3194 = vld [vmem:[%s3 + $0x144] sm:$0xf]
    %v3195 = vld [vmem:[%s3 + $0x148] sm:$0xf]
    %v3196 = vld [vmem:[%s3 + $0x14c] sm:$0xf]
    %v3197 = vld [vmem:[%s3 + $0x150] sm:$0xf]
    %v3198 = vld [vmem:[%s3 + $0x154] sm:$0xf]
    %v3199 = vld [vmem:[%s3 + $0x158] sm:$0xf]
    %v3200 = vld [vmem:[%s3 + $0x15c] sm:$0xf]
    %v3201 = vld [vmem:[%s3 + $0x160] sm:$0xf]
    %v3202 = vld [vmem:[%s3 + $0x164] sm:$0xf]
    %v3203 = vld [vmem:[%s3 + $0x168] sm:$0xf]
    %v3204 = vld [vmem:[%s3 + $0x16c] sm:$0xf]
    %v3205 = vld [vmem:[%s3 + $0x170] sm:$0xf]
    %v3206 = vld [vmem:[%s3 + $0x174] sm:$0xf]
    %v3207 = vld [vmem:[%s3 + $0x178] sm:$0xf]
    %v3208 = vld [vmem:[%s3 + $0x17c] sm:$0xf]
    %v3209 = vld [vmem:[%s3 + $0x180] sm:$0xf]
    %v3210 = vld [vmem:[%s3 + $0x184] sm:$0xf]
    %v3211 = vld [vmem:[%s3 + $0x188] sm:$0xf]
    %v3212 = vld [vmem:[%s3 + $0x18c] sm:$0xf]
    %v3213 = vld [vmem:[%s3 + $0x190] sm:$0xf]
    %v3214 = vld [vmem:[%s3 + $0x194] sm:$0xf]
    %v3215 = vld [vmem:[%s3 + $0x198] sm:$0xf]
    %v3216 = vld [vmem:[%s3 + $0x19c] sm:$0xf]
    %v3217 = vld [vmem:[%s3 + $0x1a0] sm:$0xf]
    %v3218 = vld [vmem:[%s3 + $0x1a4] sm:$0xf]
    %v3219 = vld [vmem:[%s3 + $0x1a8] sm:$0xf]
    %v3220 = vld [vmem:[%s3 + $0x1ac] sm:$0xf]
    %v3221 = vld [vmem:[%s3 + $0x1b0] sm:$0xf]
    %v3222 = vld [vmem:[%s3 + $0x1b4] sm:$0xf]
    %v3223 = vld [vmem:[%s3 + $0x1b8] sm:$0xf]
    %v3224 = vld [vmem:[%s3 + $0x1bc] sm:$0xf]
    %v3225 = vld [vmem:[%s3 + $0x1c0] sm:$0xf]
    %v3226 = vld [vmem:[%s3 + $0x1c4] sm:$0xf]
    %v3227 = vld [vmem:[%s3 + $0x1c8] sm:$0xf]
    %v3228 = vld [vmem:[%s3 + $0x1cc] sm:$0xf]
    %v3229 = vld [vmem:[%s3 + $0x1d0] sm:$0xf]
    %v3230 = vld [vmem:[%s3 + $0x1d4] sm:$0xf]
    %v3231 = vld [vmem:[%s3 + $0x1d8] sm:$0xf]
    %v3232 = vld [vmem:[%s3 + $0x1dc] sm:$0xf]
    %v3233 = vld [vmem:[%s3 + $0x1e0] sm:$0xf]
    %v3234 = vld [vmem:[%s3 + $0x1e4] sm:$0xf]
    %v3235 = vld [vmem:[%s3 + $0x1e8] sm:$0xf]
    %v3236 = vld [vmem:[%s3 + $0x1ec] sm:$0xf]
    %v3237 = vld [vmem:[%s3 + $0x1f0] sm:$0xf]
    %v3238 = vld [vmem:[%s3 + $0x1f4] sm:$0xf]
    %v3239 = vld [vmem:[%s3 + $0x1f8] sm:$0xf]
    %v3240 = vld [vmem:[%s3 + $0x1fc] sm:$0xf]
    %v3241 = vld [vmem:[%s3 + $0x200] sm:$0xf]
    %v3242 = vld [vmem:[%s3 + $0x204] sm:$0xf]
    %v3243 = vld [vmem:[%s3 + $0x208] sm:$0xf]
    %v3244 = vld [vmem:[%s3 + $0x20c] sm:$0xf]
    %v3245 = vld [vmem:[%s3 + $0x210] sm:$0xf]
    %v3246 = vld [vmem:[%s3 + $0x214] sm:$0xf]
    %v3247 = vld [vmem:[%s3 + $0x218] sm:$0xf]
    %v3248 = vld [vmem:[%s3 + $0x21c] sm:$0xf]
    %v3249 = vld [vmem:[%s3 + $0x220] sm:$0xf]
    %v3250 = vld [vmem:[%s3 + $0x224] sm:$0xf]
    %v3251 = vld [vmem:[%s3 + $0x228] sm:$0xf]
    %v3252 = vld [vmem:[%s3 + $0x22c] sm:$0xf]
    %v3253 = vld [vmem:[%s3 + $0x230] sm:$0xf]
    %v3254 = vld [vmem:[%s3 + $0x234] sm:$0xf]
    %v3255 = vld [vmem:[%s3 + $0x238] sm:$0xf]
    %v3256 = vld [vmem:[%s3 + $0x23c] sm:$0xf]
    %v3257 = vld [vmem:[%s3 + $0x240] sm:$0xf]
    %v3258 = vld [vmem:[%s3 + $0x244] sm:$0xf]
    %v3259 = vld [vmem:[%s3 + $0x248] sm:$0xf]
    %v3260 = vld [vmem:[%s3 + $0x24c] sm:$0xf]
    %v3261 = vld [vmem:[%s3 + $0x250] sm:$0xf]
    %v3262 = vld [vmem:[%s3 + $0x254] sm:$0xf]
    %v3263 = vld [vmem:[%s3 + $0x258] sm:$0xf]
    %v3264 = vld [vmem:[%s3 + $0x25c] sm:$0xf]
    %v3265 = vld [vmem:[%s3 + $0x260] sm:$0xf]
    %v3266 = vld [vmem:[%s3 + $0x264] sm:$0xf]
    %v3267 = vld [vmem:[%s3 + $0x268] sm:$0xf]
    %v3268 = vld [vmem:[%s3 + $0x26c] sm:$0xf]
    %v3269 = vld [vmem:[%s3 + $0x270] sm:$0xf]
    %v3270 = vld [vmem:[%s3 + $0x274] sm:$0xf]
    %v3271 = vld [vmem:[%s3 + $0x278] sm:$0xf]
    %v3272 = vld [vmem:[%s3 + $0x27c] sm:$0xf]
    %v3273 = vld [vmem:[%s3 + $0x280] sm:$0xf]
    %v3274 = vld [vmem:[%s3 + $0x284] sm:$0xf]
    %v3275 = vld [vmem:[%s3 + $0x288] sm:$0xf]
    %v3276 = vld [vmem:[%s3 + $0x28c] sm:$0xf]
    %v3277 = vld [vmem:[%s3 + $0x290] sm:$0xf]
    %v3278 = vld [vmem:[%s3 + $0x294] sm:$0xf]
    %v3279 = vld [vmem:[%s3 + $0x298] sm:$0xf]
    %v3280 = vld [vmem:[%s3 + $0x29c] sm:$0xf]
    %v3281 = vld [vmem:[%s3 + $0x2a0] sm:$0xf]
    %v3282 = vld [vmem:[%s3 + $0x2a4] sm:$0xf]
    %v3283 = vld [vmem:[%s3 + $0x2a8] sm:$0xf]
    %v3284 = vld [vmem:[%s3 + $0x2ac] sm:$0xf]
    %v3285 = vld [vmem:[%s3 + $0x2b0] sm:$0xf]
    %v3286 = vld [vmem:[%s3 + $0x2b4] sm:$0xf]
    %v3287 = vld [vmem:[%s3 + $0x2b8] sm:$0xf]
    %v3288 = vld [vmem:[%s3 + $0x2bc] sm:$0xf]
    %v3289 = vld [vmem:[%s3 + $0x2c0] sm:$0xf]
    %v3290 = vld [vmem:[%s3 + $0x2c4] sm:$0xf]
    %v3291 = vld [vmem:[%s3 + $0x2c8] sm:$0xf]
    %v3292 = vld [vmem:[%s3 + $0x2cc] sm:$0xf]
    %v3293 = vld [vmem:[%s3 + $0x2d0] sm:$0xf]
    %v3294 = vld [vmem:[%s3 + $0x2d4] sm:$0xf]
    %v3295 = vld [vmem:[%s3 + $0x2d8] sm:$0xf]
    %v3296 = vld [vmem:[%s3 + $0x2dc] sm:$0xf]
    %v3297 = vld [vmem:[%s3 + $0x2e0] sm:$0xf]
    %v3298 = vld [vmem:[%s3 + $0x2e4] sm:$0xf]
    %v3299 = vld [vmem:[%s3 + $0x2e8] sm:$0xf]
    %v3300 = vld [vmem:[%s3 + $0x2ec] sm:$0xf]
    %v3301 = vld [vmem:[%s3 + $0x2f0] sm:$0xf]
    %v3302 = vld [vmem:[%s3 + $0x2f4] sm:$0xf]
    %v3303 = vld [vmem:[%s3 + $0x2f8] sm:$0xf]
    %v3304 = vld [vmem:[%s3 + $0x2fc] sm:$0xf]
    %v3305 = vld [vmem:[%s3 + $0x300] sm:$0xf]
    %v3306 = vld [vmem:[%s3 + $0x304] sm:$0xf]
    %v3307 = vld [vmem:[%s3 + $0x308] sm:$0xf]
    %v3308 = vld [vmem:[%s3 + $0x30c] sm:$0xf]
    %v3309 = vld [vmem:[%s3 + $0x310] sm:$0xf]
    %v3310 = vld [vmem:[%s3 + $0x314] sm:$0xf]
    %v3311 = vld [vmem:[%s3 + $0x318] sm:$0xf]
    %v3312 = vld [vmem:[%s3 + $0x31c] sm:$0xf]
    %v3313 = vld [vmem:[%s3 + $0x320] sm:$0xf]
    %v3314 = vld [vmem:[%s3 + $0x324] sm:$0xf]
    %v3315 = vld [vmem:[%s3 + $0x328] sm:$0xf]
    %v3316 = vld [vmem:[%s3 + $0x32c] sm:$0xf]
    %v3317 = vld [vmem:[%s3 + $0x330] sm:$0xf]
    %v3318 = vld [vmem:[%s3 + $0x334] sm:$0xf]
    %v3319 = vld [vmem:[%s3 + $0x338] sm:$0xf]
    %v3320 = vld [vmem:[%s3 + $0x33c] sm:$0xf]
    %v3321 = vld [vmem:[%s3 + $0x340] sm:$0xf]
    %v3322 = vld [vmem:[%s3 + $0x344] sm:$0xf]
    %v3323 = vld [vmem:[%s3 + $0x348] sm:$0xf]
    %v3324 = vld [vmem:[%s3 + $0x34c] sm:$0xf]
    %v3325 = vld [vmem:[%s3 + $0x350] sm:$0xf]
    %v3326 = vld [vmem:[%s3 + $0x354] sm:$0xf]
    %v3327 = vld [vmem:[%s3 + $0x358] sm:$0xf]
    %v3328 = vld [vmem:[%s3 + $0x35c] sm:$0xf]
    %v3329 = vld [vmem:[%s3 + $0x360] sm:$0xf]
    %v3330 = vld [vmem:[%s3 + $0x364] sm:$0xf]
    %v3331 = vld [vmem:[%s3 + $0x368] sm:$0xf]
    %v3332 = vld [vmem:[%s3 + $0x36c] sm:$0xf]
    %v3333 = vld [vmem:[%s3 + $0x370] sm:$0xf]
    %v3334 = vld [vmem:[%s3 + $0x374] sm:$0xf]
    %v3335 = vld [vmem:[%s3 + $0x378] sm:$0xf]
    %v3336 = vld [vmem:[%s3 + $0x37c] sm:$0xf]
    %v3337 = vlaneseq
    %v3338 = vshrl.u32 %v3337, 7
    %v3339 = vsub.s32 0, %v3338
    %v3340 = vrot.slane %v56, %v3339
    %v3565 = vunpack.c.l.b16 %v3113
    %v3566 = vunpack.c.l.b16 %v3114
    %v3567 = vunpack.c.l.b16 %v3115
    %v3568 = vunpack.c.l.b16 %v3116
    %v3569 = vunpack.c.l.b16 %v3117
    %v3570 = vunpack.c.l.b16 %v3118
    %v3571 = vunpack.c.l.b16 %v3119
    %v3572 = vunpack.c.l.b16 %v3120
    %v3573 = vunpack.c.l.b16 %v3121
    %v3574 = vunpack.c.l.b16 %v3122
    %v3575 = vunpack.c.l.b16 %v3123
    %v3576 = vunpack.c.l.b16 %v3124
    %v3577 = vunpack.c.l.b16 %v3125
    %v3578 = vunpack.c.l.b16 %v3126
    %v3579 = vunpack.c.l.b16 %v3127
    %v3580 = vunpack.c.l.b16 %v3128
    %v3581 = vunpack.c.l.b16 %v3129
    %v3582 = vunpack.c.l.b16 %v3130
    %v3583 = vunpack.c.l.b16 %v3131
    %v3584 = vunpack.c.l.b16 %v3132
    %v3585 = vunpack.c.l.b16 %v3133
    %v3586 = vunpack.c.l.b16 %v3134
    %v3587 = vunpack.c.l.b16 %v3135
    %v3588 = vunpack.c.l.b16 %v3136
    %v3589 = vunpack.c.l.b16 %v3137
    %v3590 = vunpack.c.l.b16 %v3138
    %v3591 = vunpack.c.l.b16 %v3139
    %v3592 = vunpack.c.l.b16 %v3140
    %v3593 = vunpack.c.l.b16 %v3141
    %v3594 = vunpack.c.l.b16 %v3142
    %v3595 = vunpack.c.l.b16 %v3143
    %v3596 = vunpack.c.l.b16 %v3144
    %v3597 = vunpack.c.l.b16 %v3145
    %v3598 = vunpack.c.l.b16 %v3146
    %v3599 = vunpack.c.l.b16 %v3147
    %v3600 = vunpack.c.l.b16 %v3148
    %v3601 = vunpack.c.l.b16 %v3149
    %v3602 = vunpack.c.l.b16 %v3150
    %v3603 = vunpack.c.l.b16 %v3151
    %v3604 = vunpack.c.l.b16 %v3152
    %v3605 = vunpack.c.l.b16 %v3153
    %v3606 = vunpack.c.l.b16 %v3154
    %v3607 = vunpack.c.l.b16 %v3155
    %v3608 = vunpack.c.l.b16 %v3156
    %v3609 = vunpack.c.l.b16 %v3157
    %v3610 = vunpack.c.l.b16 %v3158
    %v3611 = vunpack.c.l.b16 %v3159
    %v3612 = vunpack.c.l.b16 %v3160
    %v3613 = vunpack.c.l.b16 %v3161
    %v3614 = vunpack.c.l.b16 %v3162
    %v3615 = vunpack.c.l.b16 %v3163
    %v3616 = vunpack.c.l.b16 %v3164
    %v3617 = vunpack.c.l.b16 %v3165
    %v3618 = vunpack.c.l.b16 %v3166
    %v3619 = vunpack.c.l.b16 %v3167
    %v3620 = vunpack.c.l.b16 %v3168
    %v3621 = vunpack.c.l.b16 %v3169
    %v3622 = vunpack.c.l.b16 %v3170
    %v3623 = vunpack.c.l.b16 %v3171
    %v3624 = vunpack.c.l.b16 %v3172
    %v3625 = vunpack.c.l.b16 %v3173
    %v3626 = vunpack.c.l.b16 %v3174
    %v3627 = vunpack.c.l.b16 %v3175
    %v3628 = vunpack.c.l.b16 %v3176
    %v3629 = vunpack.c.l.b16 %v3177
    %v3630 = vunpack.c.l.b16 %v3178
    %v3631 = vunpack.c.l.b16 %v3179
    %v3632 = vunpack.c.l.b16 %v3180
    %v3633 = vunpack.c.l.b16 %v3181
    %v3634 = vunpack.c.l.b16 %v3182
    %v3635 = vunpack.c.l.b16 %v3183
    %v3636 = vunpack.c.l.b16 %v3184
    %v3637 = vunpack.c.l.b16 %v3185
    %v3638 = vunpack.c.l.b16 %v3186
    %v3639 = vunpack.c.l.b16 %v3187
    %v3640 = vunpack.c.l.b16 %v3188
    %v3641 = vunpack.c.l.b16 %v3189
    %v3642 = vunpack.c.l.b16 %v3190
    %v3643 = vunpack.c.l.b16 %v3191
    %v3644 = vunpack.c.l.b16 %v3192
    %v3645 = vunpack.c.l.b16 %v3193
    %v3646 = vunpack.c.l.b16 %v3194
    %v3647 = vunpack.c.l.b16 %v3195
    %v3648 = vunpack.c.l.b16 %v3196
    %v3649 = vunpack.c.l.b16 %v3197
    %v3650 = vunpack.c.l.b16 %v3198
    %v3651 = vunpack.c.l.b16 %v3199
    %v3652 = vunpack.c.l.b16 %v3200
    %v3653 = vunpack.c.l.b16 %v3201
    %v3654 = vunpack.c.l.b16 %v3202
    %v3655 = vunpack.c.l.b16 %v3203
    %v3656 = vunpack.c.l.b16 %v3204
    %v3657 = vunpack.c.l.b16 %v3205
    %v3658 = vunpack.c.l.b16 %v3206
    %v3659 = vunpack.c.l.b16 %v3207
    %v3660 = vunpack.c.l.b16 %v3208
    %v3661 = vunpack.c.l.b16 %v3209
    %v3662 = vunpack.c.l.b16 %v3210
    %v3663 = vunpack.c.l.b16 %v3211
    %v3664 = vunpack.c.l.b16 %v3212
    %v3665 = vunpack.c.l.b16 %v3213
    %v3666 = vunpack.c.l.b16 %v3214
    %v3667 = vunpack.c.l.b16 %v3215
    %v3668 = vunpack.c.l.b16 %v3216
    %v3669 = vunpack.c.l.b16 %v3217
    %v3670 = vunpack.c.l.b16 %v3218
    %v3671 = vunpack.c.l.b16 %v3219
    %v3672 = vunpack.c.l.b16 %v3220
    %v3673 = vunpack.c.l.b16 %v3221
    %v3674 = vunpack.c.l.b16 %v3222
    %v3675 = vunpack.c.l.b16 %v3223
    %v3676 = vunpack.c.l.b16 %v3224
    %v3677 = vunpack.c.l.b16 %v3225
    %v3678 = vunpack.c.l.b16 %v3226
    %v3679 = vunpack.c.l.b16 %v3227
    %v3680 = vunpack.c.l.b16 %v3228
    %v3681 = vunpack.c.l.b16 %v3229
    %v3682 = vunpack.c.l.b16 %v3230
    %v3683 = vunpack.c.l.b16 %v3231
    %v3684 = vunpack.c.l.b16 %v3232
    %v3685 = vunpack.c.l.b16 %v3233
    %v3686 = vunpack.c.l.b16 %v3234
    %v3687 = vunpack.c.l.b16 %v3235
    %v3688 = vunpack.c.l.b16 %v3236
    %v3689 = vunpack.c.l.b16 %v3237
    %v3690 = vunpack.c.l.b16 %v3238
    %v3691 = vunpack.c.l.b16 %v3239
    %v3692 = vunpack.c.l.b16 %v3240
    %v3693 = vunpack.c.l.b16 %v3241
    %v3694 = vunpack.c.l.b16 %v3242
    %v3695 = vunpack.c.l.b16 %v3243
    %v3696 = vunpack.c.l.b16 %v3244
    %v3697 = vunpack.c.l.b16 %v3245
    %v3698 = vunpack.c.l.b16 %v3246
    %v3699 = vunpack.c.l.b16 %v3247
    %v3700 = vunpack.c.l.b16 %v3248
    %v3701 = vunpack.c.l.b16 %v3249
    %v3702 = vunpack.c.l.b16 %v3250
    %v3703 = vunpack.c.l.b16 %v3251
    %v3704 = vunpack.c.l.b16 %v3252
    %v3705 = vunpack.c.l.b16 %v3253
    %v3706 = vunpack.c.l.b16 %v3254
    %v3707 = vunpack.c.l.b16 %v3255
    %v3708 = vunpack.c.l.b16 %v3256
    %v3709 = vunpack.c.l.b16 %v3257
    %v3710 = vunpack.c.l.b16 %v3258
    %v3711 = vunpack.c.l.b16 %v3259
    %v3712 = vunpack.c.l.b16 %v3260
    %v3713 = vunpack.c.l.b16 %v3261
    %v3714 = vunpack.c.l.b16 %v3262
    %v3715 = vunpack.c.l.b16 %v3263
    %v3716 = vunpack.c.l.b16 %v3264
    %v3717 = vunpack.c.l.b16 %v3265
    %v3718 = vunpack.c.l.b16 %v3266
    %v3719 = vunpack.c.l.b16 %v3267
    %v3720 = vunpack.c.l.b16 %v3268
    %v3721 = vunpack.c.l.b16 %v3269
    %v3722 = vunpack.c.l.b16 %v3270
    %v3723 = vunpack.c.l.b16 %v3271
    %v3724 = vunpack.c.l.b16 %v3272
    %v3725 = vunpack.c.l.b16 %v3273
    %v3726 = vunpack.c.l.b16 %v3274
    %v3727 = vunpack.c.l.b16 %v3275
    %v3728 = vunpack.c.l.b16 %v3276
    %v3729 = vunpack.c.l.b16 %v3277
    %v3730 = vunpack.c.l.b16 %v3278
    %v3731 = vunpack.c.l.b16 %v3279
    %v3732 = vunpack.c.l.b16 %v3280
    %v3733 = vunpack.c.l.b16 %v3281
    %v3734 = vunpack.c.l.b16 %v3282
    %v3735 = vunpack.c.l.b16 %v3283
    %v3736 = vunpack.c.l.b16 %v3284
    %v3737 = vunpack.c.l.b16 %v3285
    %v3738 = vunpack.c.l.b16 %v3286
    %v3739 = vunpack.c.l.b16 %v3287
    %v3740 = vunpack.c.l.b16 %v3288
    %v3741 = vunpack.c.l.b16 %v3289
    %v3742 = vunpack.c.l.b16 %v3290
    %v3743 = vunpack.c.l.b16 %v3291
    %v3744 = vunpack.c.l.b16 %v3292
    %v3745 = vunpack.c.l.b16 %v3293
    %v3746 = vunpack.c.l.b16 %v3294
    %v3747 = vunpack.c.l.b16 %v3295
    %v3748 = vunpack.c.l.b16 %v3296
    %v3749 = vunpack.c.l.b16 %v3297
    %v3750 = vunpack.c.l.b16 %v3298
    %v3751 = vunpack.c.l.b16 %v3299
    %v3752 = vunpack.c.l.b16 %v3300
    %v3753 = vunpack.c.l.b16 %v3301
    %v3754 = vunpack.c.l.b16 %v3302
    %v3755 = vunpack.c.l.b16 %v3303
    %v3756 = vunpack.c.l.b16 %v3304
    %v3757 = vunpack.c.l.b16 %v3305
    %v3758 = vunpack.c.l.b16 %v3306
    %v3759 = vunpack.c.l.b16 %v3307
    %v3760 = vunpack.c.l.b16 %v3308
    %v3761 = vunpack.c.l.b16 %v3309
    %v3762 = vunpack.c.l.b16 %v3310
    %v3763 = vunpack.c.l.b16 %v3311
    %v3764 = vunpack.c.l.b16 %v3312
    %v3765 = vunpack.c.l.b16 %v3313
    %v3766 = vunpack.c.l.b16 %v3314
    %v3767 = vunpack.c.l.b16 %v3315
    %v3768 = vunpack.c.l.b16 %v3316
    %v3769 = vunpack.c.l.b16 %v3317
    %v3770 = vunpack.c.l.b16 %v3318
    %v3771 = vunpack.c.l.b16 %v3319
    %v3772 = vunpack.c.l.b16 %v3320
    %v3773 = vunpack.c.l.b16 %v3321
    %v3774 = vunpack.c.l.b16 %v3322
    %v3775 = vunpack.c.l.b16 %v3323
    %v3776 = vunpack.c.l.b16 %v3324
    %v3777 = vunpack.c.l.b16 %v3325
    %v3778 = vunpack.c.l.b16 %v3326
    %v3779 = vunpack.c.l.b16 %v3327
    %v3780 = vunpack.c.l.b16 %v3328
    %v3781 = vunpack.c.l.b16 %v3329
    %v3782 = vunpack.c.l.b16 %v3330
    %v3783 = vunpack.c.l.b16 %v3331
    %v3784 = vunpack.c.l.b16 %v3332
    %v3785 = vunpack.c.l.b16 %v3333
    %v3786 = vunpack.c.l.b16 %v3334
    %v3787 = vunpack.c.l.b16 %v3335
    %v3788 = vunpack.c.l.b16 %v3336
    %v3789 = vpack.c.b16 %v3566, %v3565
    %v3790 = vpack.c.b16 %v3568, %v3567
    %v3791 = vpack.c.b16 %v3570, %v3569
    %v3792 = vpack.c.b16 %v3572, %v3571
    %v3793 = vpack.c.b16 %v3574, %v3573
    %v3794 = vpack.c.b16 %v3576, %v3575
    %v3795 = vpack.c.b16 %v3578, %v3577
    %v3796 = vpack.c.b16 %v3580, %v3579
    %v3797 = vpack.c.b16 %v3582, %v3581
    %v3798 = vpack.c.b16 %v3584, %v3583
    %v3799 = vpack.c.b16 %v3586, %v3585
    %v3800 = vpack.c.b16 %v3588, %v3587
    %v3801 = vpack.c.b16 %v3590, %v3589
    %v3802 = vpack.c.b16 %v3592, %v3591
    %v3803 = vpack.c.b16 %v3594, %v3593
    %v3804 = vpack.c.b16 %v3596, %v3595
    %v3805 = vpack.c.b16 %v3598, %v3597
    %v3806 = vpack.c.b16 %v3600, %v3599
    %v3807 = vpack.c.b16 %v3602, %v3601
    %v3808 = vpack.c.b16 %v3604, %v3603
    %v3809 = vpack.c.b16 %v3606, %v3605
    %v3810 = vpack.c.b16 %v3608, %v3607
    %v3811 = vpack.c.b16 %v3610, %v3609
    %v3812 = vpack.c.b16 %v3612, %v3611
    %v3813 = vpack.c.b16 %v3614, %v3613
    %v3814 = vpack.c.b16 %v3616, %v3615
    %v3815 = vpack.c.b16 %v3618, %v3617
    %v3816 = vpack.c.b16 %v3620, %v3619
    %v3817 = vpack.c.b16 %v3622, %v3621
    %v3818 = vpack.c.b16 %v3624, %v3623
    %v3819 = vpack.c.b16 %v3626, %v3625
    %v3820 = vpack.c.b16 %v3628, %v3627
    %v3821 = vpack.c.b16 %v3630, %v3629
    %v3822 = vpack.c.b16 %v3632, %v3631
    %v3823 = vpack.c.b16 %v3634, %v3633
    %v3824 = vpack.c.b16 %v3636, %v3635
    %v3825 = vpack.c.b16 %v3638, %v3637
    %v3826 = vpack.c.b16 %v3640, %v3639
    %v3827 = vpack.c.b16 %v3642, %v3641
    %v3828 = vpack.c.b16 %v3644, %v3643
    %v3829 = vpack.c.b16 %v3646, %v3645
    %v3830 = vpack.c.b16 %v3648, %v3647
    %v3831 = vpack.c.b16 %v3650, %v3649
    %v3832 = vpack.c.b16 %v3652, %v3651
    %v3833 = vpack.c.b16 %v3654, %v3653
    %v3834 = vpack.c.b16 %v3656, %v3655
    %v3835 = vpack.c.b16 %v3658, %v3657
    %v3836 = vpack.c.b16 %v3660, %v3659
    %v3837 = vpack.c.b16 %v3662, %v3661
    %v3838 = vpack.c.b16 %v3664, %v3663
    %v3839 = vpack.c.b16 %v3666, %v3665
    %v3840 = vpack.c.b16 %v3668, %v3667
    %v3841 = vpack.c.b16 %v3670, %v3669
    %v3842 = vpack.c.b16 %v3672, %v3671
    %v3843 = vpack.c.b16 %v3674, %v3673
    %v3844 = vpack.c.b16 %v3676, %v3675
    %v3845 = vpack.c.b16 %v3678, %v3677
    %v3846 = vpack.c.b16 %v3680, %v3679
    %v3847 = vpack.c.b16 %v3682, %v3681
    %v3848 = vpack.c.b16 %v3684, %v3683
    %v3849 = vpack.c.b16 %v3686, %v3685
    %v3850 = vpack.c.b16 %v3688, %v3687
    %v3851 = vpack.c.b16 %v3690, %v3689
    %v3852 = vpack.c.b16 %v3692, %v3691
    %v3853 = vpack.c.b16 %v3694, %v3693
    %v3854 = vpack.c.b16 %v3696, %v3695
    %v3855 = vpack.c.b16 %v3698, %v3697
    %v3856 = vpack.c.b16 %v3700, %v3699
    %v3857 = vpack.c.b16 %v3702, %v3701
    %v3858 = vpack.c.b16 %v3704, %v3703
    %v3859 = vpack.c.b16 %v3706, %v3705
    %v3860 = vpack.c.b16 %v3708, %v3707
    %v3861 = vpack.c.b16 %v3710, %v3709
    %v3862 = vpack.c.b16 %v3712, %v3711
    %v3863 = vpack.c.b16 %v3714, %v3713
    %v3864 = vpack.c.b16 %v3716, %v3715
    %v3865 = vpack.c.b16 %v3718, %v3717
    %v3866 = vpack.c.b16 %v3720, %v3719
    %v3867 = vpack.c.b16 %v3722, %v3721
    %v3868 = vpack.c.b16 %v3724, %v3723
    %v3869 = vpack.c.b16 %v3726, %v3725
    %v3870 = vpack.c.b16 %v3728, %v3727
    %v3871 = vpack.c.b16 %v3730, %v3729
    %v3872 = vpack.c.b16 %v3732, %v3731
    %v3873 = vpack.c.b16 %v3734, %v3733
    %v3874 = vpack.c.b16 %v3736, %v3735
    %v3875 = vpack.c.b16 %v3738, %v3737
    %v3876 = vpack.c.b16 %v3740, %v3739
    %v3877 = vpack.c.b16 %v3742, %v3741
    %v3878 = vpack.c.b16 %v3744, %v3743
    %v3879 = vpack.c.b16 %v3746, %v3745
    %v3880 = vpack.c.b16 %v3748, %v3747
    %v3881 = vpack.c.b16 %v3750, %v3749
    %v3882 = vpack.c.b16 %v3752, %v3751
    %v3883 = vpack.c.b16 %v3754, %v3753
    %v3884 = vpack.c.b16 %v3756, %v3755
    %v3885 = vpack.c.b16 %v3758, %v3757
    %v3886 = vpack.c.b16 %v3760, %v3759
    %v3887 = vpack.c.b16 %v3762, %v3761
    %v3888 = vpack.c.b16 %v3764, %v3763
    %v3889 = vpack.c.b16 %v3766, %v3765
    %v3890 = vpack.c.b16 %v3768, %v3767
    %v3891 = vpack.c.b16 %v3770, %v3769
    %v3892 = vpack.c.b16 %v3772, %v3771
    %v3893 = vpack.c.b16 %v3774, %v3773
    %v3894 = vpack.c.b16 %v3776, %v3775
    %v3895 = vpack.c.b16 %v3778, %v3777
    %v3896 = vpack.c.b16 %v3780, %v3779
    %v3897 = vpack.c.b16 %v3782, %v3781
    %v3898 = vpack.c.b16 %v3784, %v3783
    %v3899 = vpack.c.b16 %v3786, %v3785
    %v3900 = vpack.c.b16 %v3788, %v3787
    %4013 = vmatprep.subr.bf16.mxu0 0
    %4014 = vmatpush1.bf16.msra.mxu0 %v3796
    %4015 = vmatprep.subr.bf16.mxu0 0
    %4016 = vmatpush1.bf16.msra.mxu0 %v3795
    %4017 = vmatprep.subr.bf16.mxu0 0
    %4018 = vmatpush1.bf16.msra.mxu0 %v3794
    %4019 = vmatprep.subr.bf16.mxu0 0
    %4020 = vmatpush1.bf16.msra.mxu0 %v3793
    %4021 = vmatprep.subr.bf16.mxu0 0
    %4022 = vmatpush1.bf16.msra.mxu0 %v3792
    %4023 = vmatprep.subr.bf16.mxu0 0
    %4024 = vmatpush1.bf16.msra.mxu0 %v3791
    %4025 = vmatprep.subr.bf16.mxu0 0
    %4026 = vmatpush1.bf16.msra.mxu0 %v3790
    %4027 = vmatprep.subr.bf16.mxu0 0
    %4028 = vmatpush1.bf16.msra.mxu0 %v3789
    %4029 = vmatprep.subr.bf16.mxu0 0
    %4030 = vmatpush2.bf16.msra.mxu0 %v3804
    %4031 = vmatprep.subr.bf16.mxu0 0
    %4032 = vmatpush2.bf16.msra.mxu0 %v3803
    %4033 = vmatprep.subr.bf16.mxu0 0
    %4034 = vmatpush2.bf16.msra.mxu0 %v3802
    %4035 = vmatprep.subr.bf16.mxu0 0
    %4036 = vmatpush2.bf16.msra.mxu0 %v3801
    %4037 = vmatprep.subr.bf16.mxu0 0
    %4038 = vmatpush2.bf16.msra.mxu0 %v3800
    %4039 = vmatprep.subr.bf16.mxu0 0
    %4040 = vmatpush2.bf16.msra.mxu0 %v3799
    %4041 = vmatprep.subr.bf16.mxu0 0
    %4042 = vmatpush2.bf16.msra.mxu0 %v3798
    %4043 = vmatprep.subr.bf16.mxu0 0
    %4044 = vmatpush2.bf16.msra.mxu0 %v3797
    %4045 = vmatprep.mubr.bf16.mxu0 %v3100
    %4046 = vmatmul.mubr.bf16.gmra.mxu0 %v3099
    %v4047 = vpop.f32.mrf.mxu0
    %v4048 = vadd.f32 %v3340, %v4047
    %v4049 = vpop.f32.mrf.mxu0
    %v4050 = vpop.f32.mrf.mxu0
    %v4051 = vpop.f32.mrf.mxu0
    %4052 = vdwg.mxu0
    %4053 = vmatprep.subr.bf16.mxu0 0
    %4054 = vmatpush1.bf16.msra.mxu0 %v3812
    %4055 = vmatprep.subr.bf16.mxu0 0
    %4056 = vmatpush1.bf16.msra.mxu0 %v3811
    %4057 = vmatprep.subr.bf16.mxu0 0
    %4058 = vmatpush1.bf16.msra.mxu0 %v3810
    %4059 = vmatprep.subr.bf16.mxu0 0
    %4060 = vmatpush1.bf16.msra.mxu0 %v3809
    %4061 = vmatprep.subr.bf16.mxu0 0
    %4062 = vmatpush1.bf16.msra.mxu0 %v3808
    %4063 = vmatprep.subr.bf16.mxu0 0
    %4064 = vmatpush1.bf16.msra.mxu0 %v3807
    %4065 = vmatprep.subr.bf16.mxu0 0
    %4066 = vmatpush1.bf16.msra.mxu0 %v3806
    %4067 = vmatprep.subr.bf16.mxu0 0
    %4068 = vmatpush1.bf16.msra.mxu0 %v3805
    %4069 = vmatprep.subr.bf16.mxu0 0
    %4070 = vmatpush2.bf16.msra.mxu0 %v3820
    %4071 = vmatprep.subr.bf16.mxu0 0
    %4072 = vmatpush2.bf16.msra.mxu0 %v3819
    %4073 = vmatprep.subr.bf16.mxu0 0
    %4074 = vmatpush2.bf16.msra.mxu0 %v3818
    %4075 = vmatprep.subr.bf16.mxu0 0
    %4076 = vmatpush2.bf16.msra.mxu0 %v3817
    %4077 = vmatprep.subr.bf16.mxu0 0
    %4078 = vmatpush2.bf16.msra.mxu0 %v3816
    %4079 = vmatprep.subr.bf16.mxu0 0
    %4080 = vmatpush2.bf16.msra.mxu0 %v3815
    %4081 = vmatprep.subr.bf16.mxu0 0
    %4082 = vmatpush2.bf16.msra.mxu0 %v3814
    %4083 = vmatprep.subr.bf16.mxu0 0
    %4084 = vmatpush2.bf16.msra.mxu0 %v3813
    %4085 = vmatprep.mubr.bf16.mxu0 %v3102
    %4086 = vmatmul.mubr.bf16.gmra.mxu0 %v3101
    %v4087 = vpop.f32.mrf.mxu0
    %v4088 = vadd.f32 %v4048, %v4087
    %v4089 = vpop.f32.mrf.mxu0
    %v4090 = vpop.f32.mrf.mxu0
    %v4091 = vpop.f32.mrf.mxu0
    %4092 = vdwg.mxu0
    %4093 = vmatprep.subr.bf16.mxu0 0
    %4094 = vmatpush1.bf16.msra.mxu0 %v3828
    %4095 = vmatprep.subr.bf16.mxu0 0
    %4096 = vmatpush1.bf16.msra.mxu0 %v3827
    %4097 = vmatprep.subr.bf16.mxu0 0
    %4098 = vmatpush1.bf16.msra.mxu0 %v3826
    %4099 = vmatprep.subr.bf16.mxu0 0
    %4100 = vmatpush1.bf16.msra.mxu0 %v3825
    %4101 = vmatprep.subr.bf16.mxu0 0
    %4102 = vmatpush1.bf16.msra.mxu0 %v3824
    %4103 = vmatprep.subr.bf16.mxu0 0
    %4104 = vmatpush1.bf16.msra.mxu0 %v3823
    %4105 = vmatprep.subr.bf16.mxu0 0
    %4106 = vmatpush1.bf16.msra.mxu0 %v3822
    %4107 = vmatprep.subr.bf16.mxu0 0
    %4108 = vmatpush1.bf16.msra.mxu0 %v3821
    %4109 = vmatprep.subr.bf16.mxu0 0
    %4110 = vmatpush2.bf16.msra.mxu0 %v3836
    %4111 = vmatprep.subr.bf16.mxu0 0
    %4112 = vmatpush2.bf16.msra.mxu0 %v3835
    %4113 = vmatprep.subr.bf16.mxu0 0
    %4114 = vmatpush2.bf16.msra.mxu0 %v3834
    %4115 = vmatprep.subr.bf16.mxu0 0
    %4116 = vmatpush2.bf16.msra.mxu0 %v3833
    %4117 = vmatprep.subr.bf16.mxu0 0
    %4118 = vmatpush2.bf16.msra.mxu0 %v3832
    %4119 = vmatprep.subr.bf16.mxu0 0
    %4120 = vmatpush2.bf16.msra.mxu0 %v3831
    %4121 = vmatprep.subr.bf16.mxu0 0
    %4122 = vmatpush2.bf16.msra.mxu0 %v3830
    %4123 = vmatprep.subr.bf16.mxu0 0
    %4124 = vmatpush2.bf16.msra.mxu0 %v3829
    %4125 = vmatprep.mubr.bf16.mxu0 %v3104
    %4126 = vmatmul.mubr.bf16.gmra.mxu0 %v3103
    %v4127 = vpop.f32.mrf.mxu0
    %v4128 = vadd.f32 %v4088, %v4127
    %v4129 = vpop.f32.mrf.mxu0
    %v4130 = vpop.f32.mrf.mxu0
    %v4131 = vpop.f32.mrf.mxu0
    %4132 = vdwg.mxu0
    %4133 = vmatprep.subr.bf16.mxu0 0
    %4134 = vmatpush1.bf16.msra.mxu0 %v3844
    %4135 = vmatprep.subr.bf16.mxu0 0
    %4136 = vmatpush1.bf16.msra.mxu0 %v3843
    %4137 = vmatprep.subr.bf16.mxu0 0
    %4138 = vmatpush1.bf16.msra.mxu0 %v3842
    %4139 = vmatprep.subr.bf16.mxu0 0
    %4140 = vmatpush1.bf16.msra.mxu0 %v3841
    %4141 = vmatprep.subr.bf16.mxu0 0
    %4142 = vmatpush1.bf16.msra.mxu0 %v3840
    %4143 = vmatprep.subr.bf16.mxu0 0
    %4144 = vmatpush1.bf16.msra.mxu0 %v3839
    %4145 = vmatprep.subr.bf16.mxu0 0
    %4146 = vmatpush1.bf16.msra.mxu0 %v3838
    %4147 = vmatprep.subr.bf16.mxu0 0
    %4148 = vmatpush1.bf16.msra.mxu0 %v3837
    %4149 = vmatprep.subr.bf16.mxu0 0
    %4150 = vmatpush2.bf16.msra.mxu0 %v3852
    %4151 = vmatprep.subr.bf16.mxu0 0
    %4152 = vmatpush2.bf16.msra.mxu0 %v3851
    %4153 = vmatprep.subr.bf16.mxu0 0
    %4154 = vmatpush2.bf16.msra.mxu0 %v3850
    %4155 = vmatprep.subr.bf16.mxu0 0
    %4156 = vmatpush2.bf16.msra.mxu0 %v3849
    %4157 = vmatprep.subr.bf16.mxu0 0
    %4158 = vmatpush2.bf16.msra.mxu0 %v3848
    %4159 = vmatprep.subr.bf16.mxu0 0
    %4160 = vmatpush2.bf16.msra.mxu0 %v3847
    %4161 = vmatprep.subr.bf16.mxu0 0
    %4162 = vmatpush2.bf16.msra.mxu0 %v3846
    %4163 = vmatprep.subr.bf16.mxu0 0
    %4164 = vmatpush2.bf16.msra.mxu0 %v3845
    %4165 = vmatprep.mubr.bf16.mxu0 %v3106
    %4166 = vmatmul.mubr.bf16.gmra.mxu0 %v3105
    %v4167 = vpop.f32.mrf.mxu0
    %v4168 = vadd.f32 %v4128, %v4167
    %v4169 = vpop.f32.mrf.mxu0
    %v4170 = vpop.f32.mrf.mxu0
    %v4171 = vpop.f32.mrf.mxu0
    %4172 = vdwg.mxu0
    %4173 = vmatprep.subr.bf16.mxu0 0
    %4174 = vmatpush1.bf16.msra.mxu0 %v3860
    %4175 = vmatprep.subr.bf16.mxu0 0
    %4176 = vmatpush1.bf16.msra.mxu0 %v3859
    %4177 = vmatprep.subr.bf16.mxu0 0
    %4178 = vmatpush1.bf16.msra.mxu0 %v3858
    %4179 = vmatprep.subr.bf16.mxu0 0
    %4180 = vmatpush1.bf16.msra.mxu0 %v3857
    %4181 = vmatprep.subr.bf16.mxu0 0
    %4182 = vmatpush1.bf16.msra.mxu0 %v3856
    %4183 = vmatprep.subr.bf16.mxu0 0
    %4184 = vmatpush1.bf16.msra.mxu0 %v3855
    %4185 = vmatprep.subr.bf16.mxu0 0
    %4186 = vmatpush1.bf16.msra.mxu0 %v3854
    %4187 = vmatprep.subr.bf16.mxu0 0
    %4188 = vmatpush1.bf16.msra.mxu0 %v3853
    %4189 = vmatprep.subr.bf16.mxu0 0
    %4190 = vmatpush2.bf16.msra.mxu0 %v3868
    %4191 = vmatprep.subr.bf16.mxu0 0
    %4192 = vmatpush2.bf16.msra.mxu0 %v3867
    %4193 = vmatprep.subr.bf16.mxu0 0
    %4194 = vmatpush2.bf16.msra.mxu0 %v3866
    %4195 = vmatprep.subr.bf16.mxu0 0
    %4196 = vmatpush2.bf16.msra.mxu0 %v3865
    %4197 = vmatprep.subr.bf16.mxu0 0
    %4198 = vmatpush2.bf16.msra.mxu0 %v3864
    %4199 = vmatprep.subr.bf16.mxu0 0
    %4200 = vmatpush2.bf16.msra.mxu0 %v3863
    %4201 = vmatprep.subr.bf16.mxu0 0
    %4202 = vmatpush2.bf16.msra.mxu0 %v3862
    %4203 = vmatprep.subr.bf16.mxu0 0
    %4204 = vmatpush2.bf16.msra.mxu0 %v3861
    %4205 = vmatprep.mubr.bf16.mxu0 %v3108
    %4206 = vmatmul.mubr.bf16.gmra.mxu0 %v3107
    %v4207 = vpop.f32.mrf.mxu0
    %v4208 = vadd.f32 %v4168, %v4207
    %v4209 = vpop.f32.mrf.mxu0
    %v4210 = vpop.f32.mrf.mxu0
    %v4211 = vpop.f32.mrf.mxu0
    %4212 = vdwg.mxu0
    %4213 = vmatprep.subr.bf16.mxu0 0
    %4214 = vmatpush1.bf16.msra.mxu0 %v3876
    %4215 = vmatprep.subr.bf16.mxu0 0
    %4216 = vmatpush1.bf16.msra.mxu0 %v3875
    %4217 = vmatprep.subr.bf16.mxu0 0
    %4218 = vmatpush1.bf16.msra.mxu0 %v3874
    %4219 = vmatprep.subr.bf16.mxu0 0
    %4220 = vmatpush1.bf16.msra.mxu0 %v3873
    %4221 = vmatprep.subr.bf16.mxu0 0
    %4222 = vmatpush1.bf16.msra.mxu0 %v3872
    %4223 = vmatprep.subr.bf16.mxu0 0
    %4224 = vmatpush1.bf16.msra.mxu0 %v3871
    %4225 = vmatprep.subr.bf16.mxu0 0
    %4226 = vmatpush1.bf16.msra.mxu0 %v3870
    %4227 = vmatprep.subr.bf16.mxu0 0
    %4228 = vmatpush1.bf16.msra.mxu0 %v3869
    %4229 = vmatprep.subr.bf16.mxu0 0
    %4230 = vmatpush2.bf16.msra.mxu0 %v3884
    %4231 = vmatprep.subr.bf16.mxu0 0
    %4232 = vmatpush2.bf16.msra.mxu0 %v3883
    %4233 = vmatprep.subr.bf16.mxu0 0
    %4234 = vmatpush2.bf16.msra.mxu0 %v3882
    %4235 = vmatprep.subr.bf16.mxu0 0
    %4236 = vmatpush2.bf16.msra.mxu0 %v3881
    %4237 = vmatprep.subr.bf16.mxu0 0
    %4238 = vmatpush2.bf16.msra.mxu0 %v3880
    %4239 = vmatprep.subr.bf16.mxu0 0
    %4240 = vmatpush2.bf16.msra.mxu0 %v3879
    %4241 = vmatprep.subr.bf16.mxu0 0
    %4242 = vmatpush2.bf16.msra.mxu0 %v3878
    %4243 = vmatprep.subr.bf16.mxu0 0
    %4244 = vmatpush2.bf16.msra.mxu0 %v3877
    %4245 = vmatprep.mubr.bf16.mxu0 %v3110
    %4246 = vmatmul.mubr.bf16.gmra.mxu0 %v3109
    %v4247 = vpop.f32.mrf.mxu0
    %v4248 = vadd.f32 %v4208, %v4247
    %v4249 = vpop.f32.mrf.mxu0
    %v4250 = vpop.f32.mrf.mxu0
    %v4251 = vpop.f32.mrf.mxu0
    %4252 = vdwg.mxu0
    %4253 = vmatprep.subr.bf16.mxu0 0
    %4254 = vmatpush1.bf16.msra.mxu0 %v3892
    %4255 = vmatprep.subr.bf16.mxu0 0
    %4256 = vmatpush1.bf16.msra.mxu0 %v3891
    %4257 = vmatprep.subr.bf16.mxu0 0
    %4258 = vmatpush1.bf16.msra.mxu0 %v3890
    %4259 = vmatprep.subr.bf16.mxu0 0
    %4260 = vmatpush1.bf16.msra.mxu0 %v3889
    %4261 = vmatprep.subr.bf16.mxu0 0
    %4262 = vmatpush1.bf16.msra.mxu0 %v3888
    %4263 = vmatprep.subr.bf16.mxu0 0
    %4264 = vmatpush1.bf16.msra.mxu0 %v3887
    %4265 = vmatprep.subr.bf16.mxu0 0
    %4266 = vmatpush1.bf16.msra.mxu0 %v3886
    %4267 = vmatprep.subr.bf16.mxu0 0
    %4268 = vmatpush1.bf16.msra.mxu0 %v3885
    %4269 = vmatprep.subr.bf16.mxu0 0
    %4270 = vmatpush2.bf16.msra.mxu0 %v3900
    %4271 = vmatprep.subr.bf16.mxu0 0
    %4272 = vmatpush2.bf16.msra.mxu0 %v3899
    %4273 = vmatprep.subr.bf16.mxu0 0
    %4274 = vmatpush2.bf16.msra.mxu0 %v3898
    %4275 = vmatprep.subr.bf16.mxu0 0
    %4276 = vmatpush2.bf16.msra.mxu0 %v3897
    %4277 = vmatprep.subr.bf16.mxu0 0
    %4278 = vmatpush2.bf16.msra.mxu0 %v3896
    %4279 = vmatprep.subr.bf16.mxu0 0
    %4280 = vmatpush2.bf16.msra.mxu0 %v3895
    %4281 = vmatprep.subr.bf16.mxu0 0
    %4282 = vmatpush2.bf16.msra.mxu0 %v3894
    %4283 = vmatprep.subr.bf16.mxu0 0
    %4284 = vmatpush2.bf16.msra.mxu0 %v3893
    %4285 = vmatprep.mubr.bf16.mxu0 %v3112
    %4286 = vmatmul.mubr.bf16.gmra.mxu0 %v3111
    %v4287 = vpop.f32.mrf.mxu0
    %v4288 = vadd.f32 %v4248, %v4287
    %v4289 = vpop.f32.mrf.mxu0
    %v4290 = vpop.f32.mrf.mxu0
    %v4291 = vpop.f32.mrf.mxu0
    %4292 = vdwg.mxu0
    %v4293 = vmax.f32 %v4288, 0.0
    %v4294 = vpack.c.bf16 %v4293, %v4293
    %v4295 = vld [vmem:[%s4] sm:$0xf]
    %v4296 = vld [vmem:[%s4 + $0x4] sm:$0xf]
    %v4297 = vld [vmem:[%s4 + $0x8] sm:$0xf]
    %v4298 = vld [vmem:[%s4 + $0xc] sm:$0xf]
    %v4299 = vld [vmem:[%s4 + $0x10] sm:$0xf]
    %v4300 = vld [vmem:[%s4 + $0x14] sm:$0xf]
    %v4301 = vld [vmem:[%s4 + $0x18] sm:$0xf]
    %v4302 = vld [vmem:[%s4 + $0x1c] sm:$0xf]
    %v4303 = vld [vmem:[%s4 + $0x20] sm:$0xf]
    %v4304 = vld [vmem:[%s4 + $0x24] sm:$0xf]
    %v4305 = vld [vmem:[%s4 + $0x28] sm:$0xf]
    %v4306 = vld [vmem:[%s4 + $0x2c] sm:$0xf]
    %v4307 = vld [vmem:[%s4 + $0x30] sm:$0xf]
    %v4308 = vld [vmem:[%s4 + $0x34] sm:$0xf]
    %v4309 = vld [vmem:[%s4 + $0x38] sm:$0xf]
    %v4310 = vld [vmem:[%s4 + $0x3c] sm:$0xf]
    %v4311 = vlaneseq
    %v4312 = vshrl.u32 %v4311, 7
    %v4313 = vsub.s32 1, %v4312
    %v4314 = vrot.slane %v56, %v4313
    %v4331 = vunpack.c.l.b16 %v4295
    %v4332 = vunpack.c.l.b16 %v4296
    %v4333 = vunpack.c.l.b16 %v4297
    %v4334 = vunpack.c.l.b16 %v4298
    %v4335 = vunpack.c.l.b16 %v4299
    %v4336 = vunpack.c.l.b16 %v4300
    %v4337 = vunpack.c.l.b16 %v4301
    %v4338 = vunpack.c.l.b16 %v4302
    %v4339 = vunpack.c.l.b16 %v4303
    %v4340 = vunpack.c.l.b16 %v4304
    %v4341 = vunpack.c.l.b16 %v4305
    %v4342 = vunpack.c.l.b16 %v4306
    %v4343 = vunpack.c.l.b16 %v4307
    %v4344 = vunpack.c.l.b16 %v4308
    %v4345 = vunpack.c.l.b16 %v4309
    %v4346 = vunpack.c.l.b16 %v4310
    %v4347 = vpack.c.b16 %v4332, %v4331
    %v4348 = vpack.c.b16 %v4334, %v4333
    %v4349 = vpack.c.b16 %v4336, %v4335
    %v4350 = vpack.c.b16 %v4338, %v4337
    %v4351 = vpack.c.b16 %v4340, %v4339
    %v4352 = vpack.c.b16 %v4342, %v4341
    %v4353 = vpack.c.b16 %v4344, %v4343
    %v4354 = vpack.c.b16 %v4346, %v4345
    %4363 = vmatprep.subr.bf16.mxu0 0
    %4364 = vmatpush1.bf16.msra.mxu0 %v4354
    %4365 = vmatprep.subr.bf16.mxu0 0
    %4366 = vmatpush1.bf16.msra.mxu0 %v4353
    %4367 = vmatprep.subr.bf16.mxu0 0
    %4368 = vmatpush1.bf16.msra.mxu0 %v4352
    %4369 = vmatprep.subr.bf16.mxu0 0
    %4370 = vmatpush1.bf16.msra.mxu0 %v4351
    %4371 = vmatprep.subr.bf16.mxu0 0
    %4372 = vmatpush1.bf16.msra.mxu0 %v4350
    %4373 = vmatprep.subr.bf16.mxu0 0
    %4374 = vmatpush1.bf16.msra.mxu0 %v4349
    %4375 = vmatprep.subr.bf16.mxu0 0
    %4376 = vmatpush1.bf16.msra.mxu0 %v4348
    %4377 = vmatprep.subr.bf16.mxu0 0
    %4378 = vmatpush1.bf16.msra.mxu0 %v4347
    %4379 = vmatprep.subr.bf16.mxu0 0
    %4380 = vmatpush2.bf16.msra.mxu0 0
    %4381 = vmatprep.subr.bf16.mxu0 0
    %4382 = vmatpush2.bf16.msra.mxu0 0
    %4383 = vmatprep.subr.bf16.mxu0 0
    %4384 = vmatpush2.bf16.msra.mxu0 0
    %4385 = vmatprep.subr.bf16.mxu0 0
    %4386 = vmatpush2.bf16.msra.mxu0 0
    %4387 = vmatprep.subr.bf16.mxu0 0
    %4388 = vmatpush2.bf16.msra.mxu0 0
    %4389 = vmatprep.subr.bf16.mxu0 0
    %4390 = vmatpush2.bf16.msra.mxu0 0
    %4391 = vmatprep.subr.bf16.mxu0 0
    %4392 = vmatpush2.bf16.msra.mxu0 0
    %4393 = vmatprep.subr.bf16.mxu0 0
    %4394 = vmatpush2.bf16.msra.mxu0 0
    %4395 = vmatprep.mubr.bf16.mxu0 0
    %4396 = vmatmul.mubr.bf16.gmra.mxu0 %v4294
    %v4397 = vpop.f32.mrf.mxu0
    %v4398 = vadd.f32 %v4314, %v4397
    %v4399 = vpop.f32.mrf.mxu0
    %v4400 = vpop.f32.mrf.mxu0
    %v4401 = vpop.f32.mrf.mxu0
    %4402 = vdwg.mxu0
    %4403 = vst [vmem:[%s7] sm:$0xff] %v4398
    // Predicated region
    $region38: #{simple_cnn_forward.1} parent=1 // pred_check
      _
    $region39: #{simple_cnn_forward.1} parent=1 // pred_check_branch
      %4405 = sbr.rel (0) target = $region41
    $region40: #{simple_cnn_forward.1} parent=1 // pred_region
      _
    $region41: #{simple_cnn_forward.1} parent=1 // pred_fallthru
      _
    // Predicated region
    $region42: #{simple_cnn_forward.1} parent=1 // pred_check
      _
    $region43: #{simple_cnn_forward.1} parent=1 // pred_check_branch
      %4407 = sbr.rel (0) target = $region45
    $region44: #{simple_cnn_forward.1} parent=1 // pred_region
      _
    $region45: #{simple_cnn_forward.1} parent=1 // pred_fallthru
      _
    %4408 = vsyncpa [#allocation3], 1
    %4409 = vsyncpa [#allocation5], 1

</llo_original>
